<compile_context>
chip_gen: v6e
topology: v6e:2x2x1
jax: 0.10.0
libtpu: 0.0.40
codegen_flags: <defaults>
</compile_context>

<pallas_src>
import functools

import jax
import jax.numpy as jnp
import numpy as np
from jax.experimental import pallas as pl
from jax.experimental.pallas import tpu as pltpu


# ----------------------------------------------------------------------------
# BN folding (inference semantics: y = gamma*(x-mean)/sqrt(var+eps) + beta)
# ----------------------------------------------------------------------------
def _fold_bn(gamma, beta, mean, var, eps=1e-5):
    scale = gamma / jnp.sqrt(var + eps)
    bias = beta - mean * scale
    return scale, bias


# ----------------------------------------------------------------------------
# Fused Bottleneck kernel (one image per grid step)
# ----------------------------------------------------------------------------
def _bottleneck_kernel(x_ref, w1_ref, b1_ref, w2_ref, b2_ref, w3_ref, b3_ref,
                       o_ref, y1p_ref, *, H, W, TH):
    Cin = x_ref.shape[-1]
    Cmid = w1_ref.shape[-1]
    Cout = w3_ref.shape[-1]
    cdt = y1p_ref.dtype

    # ---- zero only the 1-pixel halo ring of the conv2 input scratch --------
    # (the interior is fully overwritten below, so no full-scratch clear)
    y1p_ref[0:1, :, :] = jnp.zeros((1, W + 2, Cmid), cdt)
    y1p_ref[H + 1:H + 2, :, :] = jnp.zeros((1, W + 2, Cmid), cdt)
    y1p_ref[:, 0:1, :] = jnp.zeros((H + 2, 1, Cmid), cdt)
    y1p_ref[:, W + 1:W + 2, :] = jnp.zeros((H + 2, 1, Cmid), cdt)

    # ---- conv1 (1x1) + bn1 + relu  (BN scale pre-folded into w1) -----------
    x_img = x_ref[0]                                        # (H, W, Cin)
    y1 = jnp.dot(x_img.reshape(H * W, Cin), w1_ref[...],
                 preferred_element_type=jnp.float32)
    y1 = jnp.maximum(y1 + b1_ref[...], 0.0)
    y1p_ref[1:H + 1, 1:W + 1, :] = y1.reshape(H, W, Cmid).astype(cdt)

    w2 = w2_ref[...]                                        # (3, 3, Cmid, Cmid)
    b2 = b2_ref[...]                                        # (1, Cmid) f32
    w3 = w3_ref[...]                                        # (Cmid, Cout)
    b3 = b3_ref[...]                                        # (1, Cout) f32

    # ---- conv2 (3x3, stride 1, dil 1) + bn2 + relu, then conv3 (1x1) + bn3 +
    #      residual + relu, processed in row tiles of TH output rows ---------
    for r0 in range(0, H, TH):
        th = min(TH, H - r0)
        # accumulator initialised with the bn2 bias (saves a zero-fill + add)
        acc = jnp.broadcast_to(b2, (th * W, Cmid))
        for kh in range(3):
            for kw in range(3):
                patch = y1p_ref[r0 + kh:r0 + kh + th, kw:kw + W, :]
                acc = acc + jnp.dot(patch.reshape(th * W, Cmid), w2[kh, kw],
                                    preferred_element_type=jnp.float32)
        y2 = jnp.maximum(acc, 0.0).astype(cdt)

        y3 = jnp.dot(y2, w3, preferred_element_type=jnp.float32) + b3
        res = x_img[r0:r0 + th].reshape(th * W, Cin).astype(jnp.float32)
        out = jnp.maximum(y3 + res, 0.0)
        o_ref[0:1, r0:r0 + th, :, :] = (
            out.reshape(1, th, W, Cout).astype(o_ref.dtype))


# ----------------------------------------------------------------------------
# NHWC wrapper (preferred entry point: no relayout passes)
# ----------------------------------------------------------------------------
def bottleneck_forward_nhwc(x_nhwc, p, compute_dtype=jnp.float32):
    N, H, W, Cin = x_nhwc.shape
    Cmid = p["w1"].shape[1]
    Cout = p["w3"].shape[1]
    assert Cin == Cout, "identity residual path requires inplanes == planes*4"

    s1, b1 = _fold_bn(*p["bn1"])
    s2, b2 = _fold_bn(*p["bn2"])
    s3, b3 = _fold_bn(*p["bn3"])

    cdt = compute_dtype
    # Fold BN scales into the conv weights (removes per-element VPU multiplies).
    w1f = (p["w1"] * s1[None, :]).astype(cdt)
    w2f = (p["w2"] * s2[None, None, None, :]).astype(cdt)
    w3f = (p["w3"] * s3[None, :]).astype(cdt)
    x = x_nhwc.astype(cdt)

    # Row-tile size for the conv2/conv3 inner loop: keep the f32 accumulator
    # around <= 256 KiB so it stays near vreg capacity instead of spilling big.
    TH = max(1, min(H, (256 * 1024) // max(1, W * Cmid * 4)))

    # Explicit VMEM budget with headroom (clamped for v7x's 64 MiB VMEM).
    dt_bytes = jnp.dtype(cdt).itemsize
    x_blk = H * W * Cin * dt_bytes
    o_blk = H * W * Cout * 4
    scratch_b = (H + 2) * (W + 2) * Cmid * dt_bytes
    w_bytes = (w1f.size + w2f.size + w3f.size) * dt_bytes + (2 * Cmid + Cout) * 4
    vmem_limit = int(min(max(2 * (2 * (x_blk + o_blk) + scratch_b + 2 * w_bytes),
                             32 << 20), 64 << 20))

    kernel = functools.partial(_bottleneck_kernel, H=H, W=W, TH=TH)
    return pl.pallas_call(
        kernel,
        grid=(N,),
        in_specs=[
            pl.BlockSpec((1, H, W, Cin), lambda n: (n, 0, 0, 0)),
            pl.BlockSpec((Cin, Cmid), lambda n: (0, 0)),
            pl.BlockSpec((1, Cmid), lambda n: (0, 0)),
            pl.BlockSpec((3, 3, Cmid, Cmid), lambda n: (0, 0, 0, 0)),
            pl.BlockSpec((1, Cmid), lambda n: (0, 0)),
            pl.BlockSpec((Cmid, Cout), lambda n: (0, 0)),
            pl.BlockSpec((1, Cout), lambda n: (0, 0)),
        ],
        out_specs=pl.BlockSpec((1, H, W, Cout), lambda n: (n, 0, 0, 0)),
        out_shape=jax.ShapeDtypeStruct((N, H, W, Cout), jnp.float32),
        scratch_shapes=[pltpu.VMEM((H + 2, W + 2, Cmid), cdt)],
        compiler_params=pltpu.CompilerParams(
            dimension_semantics=("parallel",),
            vmem_limit_bytes=vmem_limit),
    )(x, w1f, b1.reshape(1, Cmid).astype(jnp.float32),
      w2f, b2.reshape(1, Cmid).astype(jnp.float32),
      w3f, b3.reshape(1, Cout).astype(jnp.float32))


# ----------------------------------------------------------------------------
# NCHW wrapper (PyTorch calling convention)
# ----------------------------------------------------------------------------
def bottleneck_forward(x_nchw, p, compute_dtype=jnp.float32):
    # For best performance keep tensors channel-last end-to-end and call
    # bottleneck_forward_nhwc directly (avoids two full-array relayouts).
    x_nhwc = jnp.transpose(x_nchw, (0, 2, 3, 1))
    out_nhwc = bottleneck_forward_nhwc(x_nhwc, p, compute_dtype)
    return jnp.transpose(out_nhwc, (0, 3, 1, 2))


# ----------------------------------------------------------------------------
# Pure-JAX reference (lax conv, NCHW) for validation
# ----------------------------------------------------------------------------
def bottleneck_reference(x, p):
    def conv(x, w_oihw, padding):
        return jax.lax.conv_general_dilated(
            x, w_oihw, (1, 1), padding,
            dimension_numbers=("NCHW", "OIHW", "NCHW"))

    def bn(x, params):
        s, b = _fold_bn(*params)
        return x * s[None, :, None, None] + b[None, :, None, None]

    relu = lambda t: jnp.maximum(t, 0.0)
    w1 = p["w1"].T[:, :, None, None]                 # (Cout, Cin, 1, 1)
    w2 = jnp.transpose(p["w2"], (3, 2, 0, 1))        # (kh,kw,Cin,Cout)->(Cout,Cin,kh,kw)
    w3 = p["w3"].T[:, :, None, None]

    out = relu(bn(conv(x, w1, "VALID"), p["bn1"]))
    out = relu(bn(conv(out, w2, ((1, 1), (1, 1))), p["bn2"]))
    out = bn(conv(out, w3, "VALID"), p["bn3"])
    return relu(out + x)


# ----------------------------------------------------------------------------
def make_params(key, inplanes, planes, base_width=64):
    expansion = 4
    width = int(planes * (base_width / 64.0))
    cout = planes * expansion
    ks = jax.random.split(key, 16)

    def bn_params(k, c):
        k1, k2, k3, k4 = jax.random.split(k, 4)
        gamma = jax.random.uniform(k1, (c,), jnp.float32, 0.5, 1.5)
        beta = 0.1 * jax.random.normal(k2, (c,), jnp.float32)
        mean = 0.1 * jax.random.normal(k3, (c,), jnp.float32)
        var = jax.random.uniform(k4, (c,), jnp.float32, 0.5, 1.5)
        return (gamma, beta, mean, var)

    return {
        # weights stored in kernel-friendly layouts:
        "w1": 0.1 * jax.random.normal(ks[0], (inplanes, width), jnp.float32),     # (Cin, Cout)
        "w2": 0.1 * jax.random.normal(ks[1], (3, 3, width, width), jnp.float32),  # (kh, kw, Cin, Cout)
        "w3": 0.1 * jax.random.normal(ks[2], (width, cout), jnp.float32),         # (Cin, Cout)
        "bn1": bn_params(ks[3], width),
        "bn2": bn_params(ks[4], width),
        "bn3": bn_params(ks[5], cout),
    }


if __name__ == "__main__":
    key = jax.random.PRNGKey(0)
    k_x, k_p = jax.random.split(key)

    # Small but lane-friendly shapes: planes=32 -> width=32, Cout=128=inplanes
    # so the identity residual applies (downsample=None) and the output lane
    # dim is 128 (lane-dense stores).
    N, inplanes, H, W = 2, 128, 16, 16
    planes = 32

    params = make_params(k_p, inplanes, planes)
    x = jax.random.normal(k_x, (N, inplanes, H, W), jnp.float32)

    ref = jax.block_until_ready(bottleneck_reference(x, params))

    # f32 compute path: strict correctness check.
    out_f32 = jax.block_until_ready(bottleneck_forward(x, params, jnp.float32))
    assert out_f32.shape == (N, planes * 4, H, W), out_f32.shape
    np.testing.assert_allclose(np.asarray(out_f32), np.asarray(ref),
                               rtol=1e-4, atol=1e-4)

    # bf16 MXU path (v6e/v7x recommendation): looser tolerance.
    out_bf16 = jax.block_until_ready(bottleneck_forward(x, params, jnp.bfloat16))
    np.testing.assert_allclose(np.asarray(out_bf16), np.asarray(ref),
                               rtol=1e-1, atol=1e-1)

    print("KERNEL_OK")
</pallas_src>

<mosaic_0001>
module attributes {stable_mosaic.version = 11 : i64} {
  func.func @_bottleneck_kernel(%arg0: i32, %arg1: memref<1x16x16x128xf32, #tpu.memory_space<vmem>>, %arg2: memref<128x32xf32, #tpu.memory_space<vmem>>, %arg3: memref<1x32xf32, #tpu.memory_space<vmem>>, %arg4: memref<3x3x32x32xf32, #tpu.memory_space<vmem>>, %arg5: memref<1x32xf32, #tpu.memory_space<vmem>>, %arg6: memref<32x128xf32, #tpu.memory_space<vmem>>, %arg7: memref<1x128xf32, #tpu.memory_space<vmem>>, %arg8: memref<1x16x16x128xf32, #tpu.memory_space<vmem>>, %arg9: memref<18x18x32xf32, #tpu.memory_space<vmem>>) attributes {dimension_semantics = [#tpu.dimension_semantics<parallel>], iteration_bounds = array<i64: 2>, scalar_prefetch = 0 : i64, scratch_operands = 1 : i64, tpu.core_type = #tpu.core_type<tc>, window_params = [{transform_indices = @transform_0, window_bounds = array<i64: 1, 16, 16, 128>}, {pipeline_mode = #tpu.pipeline_mode<synchronous>, transform_indices = @transform_1, window_bounds = array<i64: 128, 32>}, {pipeline_mode = #tpu.pipeline_mode<synchronous>, transform_indices = @transform_2, window_bounds = array<i64: 1, 32>}, {pipeline_mode = #tpu.pipeline_mode<synchronous>, transform_indices = @transform_3, window_bounds = array<i64: 3, 3, 32, 32>}, {pipeline_mode = #tpu.pipeline_mode<synchronous>, transform_indices = @transform_4, window_bounds = array<i64: 1, 32>}, {pipeline_mode = #tpu.pipeline_mode<synchronous>, transform_indices = @transform_5, window_bounds = array<i64: 32, 128>}, {pipeline_mode = #tpu.pipeline_mode<synchronous>, transform_indices = @transform_6, window_bounds = array<i64: 1, 128>}, {transform_indices = @transform_7, window_bounds = array<i64: 1, 16, 16, 128>}]} {
    %cst = arith.constant 0.000000e+00 : f32
    %0 = vector.broadcast %cst : f32 to vector<1x18x32xf32>
    %c0 = arith.constant 0 : index
    %c0_0 = arith.constant 0 : index
    %c0_1 = arith.constant 0 : index
    %1 = vector.load %arg9[%c0, %c0_0, %c0_1] : memref<18x18x32xf32, #tpu.memory_space<vmem>>, vector<1x18x32xf32>
    tpu.vector_store %arg9[%c0, %c0_0, %c0_1], %0 {strides = array<i32>} : memref<18x18x32xf32, #tpu.memory_space<vmem>>, vector<1x18x32xf32>,
    %cst_2 = arith.constant 0.000000e+00 : f32
    %2 = vector.broadcast %cst_2 : f32 to vector<1x18x32xf32>
    %c17 = arith.constant 17 : index
    %c0_3 = arith.constant 0 : index
    %c0_4 = arith.constant 0 : index
    %3 = vector.load %arg9[%c17, %c0_3, %c0_4] : memref<18x18x32xf32, #tpu.memory_space<vmem>>, vector<1x18x32xf32>
    tpu.vector_store %arg9[%c17, %c0_3, %c0_4], %2 {strides = array<i32>} : memref<18x18x32xf32, #tpu.memory_space<vmem>>, vector<1x18x32xf32>,
    %cst_5 = arith.constant 0.000000e+00 : f32
    %4 = vector.broadcast %cst_5 : f32 to vector<18x1x32xf32>
    %c0_6 = arith.constant 0 : index
    %c0_7 = arith.constant 0 : index
    %c0_8 = arith.constant 0 : index
    %5 = vector.load %arg9[%c0_6, %c0_7, %c0_8] : memref<18x18x32xf32, #tpu.memory_space<vmem>>, vector<18x1x32xf32>
    tpu.vector_store %arg9[%c0_6, %c0_7, %c0_8], %4 {strides = array<i32>} : memref<18x18x32xf32, #tpu.memory_space<vmem>>, vector<18x1x32xf32>,
    %cst_9 = arith.constant 0.000000e+00 : f32
    %6 = vector.broadcast %cst_9 : f32 to vector<18x1x32xf32>
    %c0_10 = arith.constant 0 : index
    %c17_11 = arith.constant 17 : index
    %c0_12 = arith.constant 0 : index
    %7 = vector.load %arg9[%c0_10, %c17_11, %c0_12] : memref<18x18x32xf32, #tpu.memory_space<vmem>>, vector<18x1x32xf32>
    tpu.vector_store %arg9[%c0_10, %c17_11, %c0_12], %6 {strides = array<i32>} : memref<18x18x32xf32, #tpu.memory_space<vmem>>, vector<18x1x32xf32>,
    %c0_13 = arith.constant 0 : index
    %c0_14 = arith.constant 0 : index
    %c0_15 = arith.constant 0 : index
    %c0_16 = arith.constant 0 : index
    %8 = vector.load %arg1[%c0_13, %c0_14, %c0_15, %c0_16] : memref<1x16x16x128xf32, #tpu.memory_space<vmem>>, vector<1x16x16x128xf32>
    %9 = vector.shape_cast %8 : vector<1x16x16x128xf32> to vector<16x16x128xf32>
    %10 = vector.shape_cast %9 : vector<16x16x128xf32> to vector<256x128xf32>
    %c0_17 = arith.constant 0 : index
    %c0_18 = arith.constant 0 : index
    %11 = vector.load %arg2[%c0_17, %c0_18] : memref<128x32xf32, #tpu.memory_space<vmem>>, vector<128x32xf32>
    %cst_19 = arith.constant dense<0.000000e+00> : vector<256x32xf32>
    %12 = tpu.matmul %10, %11, %cst_19 {dimension_numbers = #tpu.dot_dimension_numbers<[1], [0], [0], [1], [0, 0, 1, 1], [], []>} : vector<256x128xf32>, vector<128x32xf32>, vector<256x32xf32> -> vector<256x32xf32>
    %c0_20 = arith.constant 0 : index
    %c0_21 = arith.constant 0 : index
    %13 = vector.load %arg3[%c0_20, %c0_21] : memref<1x32xf32, #tpu.memory_space<vmem>>, vector<1x32xf32>
    %14 = vector.broadcast %13 : vector<1x32xf32> to vector<256x32xf32>
    %15 = arith.addf %12, %14 : vector<256x32xf32>
    %cst_22 = arith.constant 0.000000e+00 : f32
    %16 = vector.broadcast %cst_22 : f32 to vector<256x32xf32>
    %17 = arith.maximumf %15, %16 : vector<256x32xf32>
    %18 = vector.shape_cast %17 : vector<256x32xf32> to vector<16x16x32xf32>
    %c1 = arith.constant 1 : index
    %c1_23 = arith.constant 1 : index
    %c0_24 = arith.constant 0 : index
    %19 = vector.load %arg9[%c1, %c1_23, %c0_24] : memref<18x18x32xf32, #tpu.memory_space<vmem>>, vector<16x16x32xf32>
    tpu.vector_store %arg9[%c1, %c1_23, %c0_24], %18 {strides = array<i32>} : memref<18x18x32xf32, #tpu.memory_space<vmem>>, vector<16x16x32xf32>,
    %c0_25 = arith.constant 0 : index
    %c0_26 = arith.constant 0 : index
    %c0_27 = arith.constant 0 : index
    %c0_28 = arith.constant 0 : index
    %20 = vector.load %arg4[%c0_25, %c0_26, %c0_27, %c0_28] : memref<3x3x32x32xf32, #tpu.memory_space<vmem>>, vector<3x3x32x32xf32>
    %c0_29 = arith.constant 0 : index
    %c0_30 = arith.constant 0 : index
    %21 = vector.load %arg5[%c0_29, %c0_30] : memref<1x32xf32, #tpu.memory_space<vmem>>, vector<1x32xf32>
    %c0_31 = arith.constant 0 : index
    %c0_32 = arith.constant 0 : index
    %22 = vector.load %arg6[%c0_31, %c0_32] : memref<32x128xf32, #tpu.memory_space<vmem>>, vector<32x128xf32>
    %c0_33 = arith.constant 0 : index
    %c0_34 = arith.constant 0 : index
    %23 = vector.load %arg7[%c0_33, %c0_34] : memref<1x128xf32, #tpu.memory_space<vmem>>, vector<1x128xf32>
    %24 = vector.shape_cast %21 : vector<1x32xf32> to vector<1x32xf32>
    %25 = vector.broadcast %24 : vector<1x32xf32> to vector<256x32xf32>
    %c0_35 = arith.constant 0 : index
    %c0_36 = arith.constant 0 : index
    %c0_37 = arith.constant 0 : index
    %26 = vector.load %arg9[%c0_35, %c0_36, %c0_37] : memref<18x18x32xf32, #tpu.memory_space<vmem>>, vector<16x16x32xf32>
    %27 = vector.shape_cast %26 : vector<16x16x32xf32> to vector<256x32xf32>
    %28 = vector.extract_strided_slice %20 {offsets = [0, 0, 0, 0], sizes = [1, 1, 32, 32], strides = [1, 1, 1, 1]} : vector<3x3x32x32xf32> to vector<1x1x32x32xf32>
    %29 = vector.shape_cast %28 : vector<1x1x32x32xf32> to vector<32x32xf32>
    %cst_38 = arith.constant dense<0.000000e+00> : vector<256x32xf32>
    %30 = tpu.matmul %27, %29, %cst_38 {dimension_numbers = #tpu.dot_dimension_numbers<[1], [0], [0], [1], [0, 0, 1, 1], [], []>} : vector<256x32xf32>, vector<32x32xf32>, vector<256x32xf32> -> vector<256x32xf32>
    %31 = arith.addf %25, %30 : vector<256x32xf32>
    %c0_39 = arith.constant 0 : index
    %c1_40 = arith.constant 1 : index
    %c0_41 = arith.constant 0 : index
    %32 = vector.load %arg9[%c0_39, %c1_40, %c0_41] : memref<18x18x32xf32, #tpu.memory_space<vmem>>, vector<16x16x32xf32>
    %33 = vector.shape_cast %32 : vector<16x16x32xf32> to vector<256x32xf32>
    %34 = vector.extract_strided_slice %20 {offsets = [0, 1, 0, 0], sizes = [1, 1, 32, 32], strides = [1, 1, 1, 1]} : vector<3x3x32x32xf32> to vector<1x1x32x32xf32>
    %35 = vector.shape_cast %34 : vector<1x1x32x32xf32> to vector<32x32xf32>
    %cst_42 = arith.constant dense<0.000000e+00> : vector<256x32xf32>
    %36 = tpu.matmul %33, %35, %cst_42 {dimension_numbers = #tpu.dot_dimension_numbers<[1], [0], [0], [1], [0, 0, 1, 1], [], []>} : vector<256x32xf32>, vector<32x32xf32>, vector<256x32xf32> -> vector<256x32xf32>
    %37 = arith.addf %31, %36 : vector<256x32xf32>
    %c0_43 = arith.constant 0 : index
    %c2 = arith.constant 2 : index
    %c0_44 = arith.constant 0 : index
    %38 = vector.load %arg9[%c0_43, %c2, %c0_44] : memref<18x18x32xf32, #tpu.memory_space<vmem>>, vector<16x16x32xf32>
    %39 = vector.shape_cast %38 : vector<16x16x32xf32> to vector<256x32xf32>
    %40 = vector.extract_strided_slice %20 {offsets = [0, 2, 0, 0], sizes = [1, 1, 32, 32], strides = [1, 1, 1, 1]} : vector<3x3x32x32xf32> to vector<1x1x32x32xf32>
    %41 = vector.shape_cast %40 : vector<1x1x32x32xf32> to vector<32x32xf32>
    %cst_45 = arith.constant dense<0.000000e+00> : vector<256x32xf32>
    %42 = tpu.matmul %39, %41, %cst_45 {dimension_numbers = #tpu.dot_dimension_numbers<[1], [0], [0], [1], [0, 0, 1, 1], [], []>} : vector<256x32xf32>, vector<32x32xf32>, vector<256x32xf32> -> vector<256x32xf32>
    %43 = arith.addf %37, %42 : vector<256x32xf32>
    %c1_46 = arith.constant 1 : index
    %c0_47 = arith.constant 0 : index
    %c0_48 = arith.constant 0 : index
    %44 = vector.load %arg9[%c1_46, %c0_47, %c0_48] : memref<18x18x32xf32, #tpu.memory_space<vmem>>, vector<16x16x32xf32>
    %45 = vector.shape_cast %44 : vector<16x16x32xf32> to vector<256x32xf32>
    %46 = vector.extract_strided_slice %20 {offsets = [1, 0, 0, 0], sizes = [1, 1, 32, 32], strides = [1, 1, 1, 1]} : vector<3x3x32x32xf32> to vector<1x1x32x32xf32>
    %47 = vector.shape_cast %46 : vector<1x1x32x32xf32> to vector<32x32xf32>
    %cst_49 = arith.constant dense<0.000000e+00> : vector<256x32xf32>
    %48 = tpu.matmul %45, %47, %cst_49 {dimension_numbers = #tpu.dot_dimension_numbers<[1], [0], [0], [1], [0, 0, 1, 1], [], []>} : vector<256x32xf32>, vector<32x32xf32>, vector<256x32xf32> -> vector<256x32xf32>
    %49 = arith.addf %43, %48 : vector<256x32xf32>
    %c1_50 = arith.constant 1 : index
    %c1_51 = arith.constant 1 : index
    %c0_52 = arith.constant 0 : index
    %50 = vector.load %arg9[%c1_50, %c1_51, %c0_52] : memref<18x18x32xf32, #tpu.memory_space<vmem>>, vector<16x16x32xf32>
    %51 = vector.shape_cast %50 : vector<16x16x32xf32> to vector<256x32xf32>
    %52 = vector.extract_strided_slice %20 {offsets = [1, 1, 0, 0], sizes = [1, 1, 32, 32], strides = [1, 1, 1, 1]} : vector<3x3x32x32xf32> to vector<1x1x32x32xf32>
    %53 = vector.shape_cast %52 : vector<1x1x32x32xf32> to vector<32x32xf32>
    %cst_53 = arith.constant dense<0.000000e+00> : vector<256x32xf32>
    %54 = tpu.matmul %51, %53, %cst_53 {dimension_numbers = #tpu.dot_dimension_numbers<[1], [0], [0], [1], [0, 0, 1, 1], [], []>} : vector<256x32xf32>, vector<32x32xf32>, vector<256x32xf32> -> vector<256x32xf32>
    %55 = arith.addf %49, %54 : vector<256x32xf32>
    %c1_54 = arith.constant 1 : index
    %c2_55 = arith.constant 2 : index
    %c0_56 = arith.constant 0 : index
    %56 = vector.load %arg9[%c1_54, %c2_55, %c0_56] : memref<18x18x32xf32, #tpu.memory_space<vmem>>, vector<16x16x32xf32>
    %57 = vector.shape_cast %56 : vector<16x16x32xf32> to vector<256x32xf32>
    %58 = vector.extract_strided_slice %20 {offsets = [1, 2, 0, 0], sizes = [1, 1, 32, 32], strides = [1, 1, 1, 1]} : vector<3x3x32x32xf32> to vector<1x1x32x32xf32>
    %59 = vector.shape_cast %58 : vector<1x1x32x32xf32> to vector<32x32xf32>
    %cst_57 = arith.constant dense<0.000000e+00> : vector<256x32xf32>
    %60 = tpu.matmul %57, %59, %cst_57 {dimension_numbers = #tpu.dot_dimension_numbers<[1], [0], [0], [1], [0, 0, 1, 1], [], []>} : vector<256x32xf32>, vector<32x32xf32>, vector<256x32xf32> -> vector<256x32xf32>
    %61 = arith.addf %55, %60 : vector<256x32xf32>
    %c2_58 = arith.constant 2 : index
    %c0_59 = arith.constant 0 : index
    %c0_60 = arith.constant 0 : index
    %62 = vector.load %arg9[%c2_58, %c0_59, %c0_60] : memref<18x18x32xf32, #tpu.memory_space<vmem>>, vector<16x16x32xf32>
    %63 = vector.shape_cast %62 : vector<16x16x32xf32> to vector<256x32xf32>
    %64 = vector.extract_strided_slice %20 {offsets = [2, 0, 0, 0], sizes = [1, 1, 32, 32], strides = [1, 1, 1, 1]} : vector<3x3x32x32xf32> to vector<1x1x32x32xf32>
    %65 = vector.shape_cast %64 : vector<1x1x32x32xf32> to vector<32x32xf32>
    %cst_61 = arith.constant dense<0.000000e+00> : vector<256x32xf32>
    %66 = tpu.matmul %63, %65, %cst_61 {dimension_numbers = #tpu.dot_dimension_numbers<[1], [0], [0], [1], [0, 0, 1, 1], [], []>} : vector<256x32xf32>, vector<32x32xf32>, vector<256x32xf32> -> vector<256x32xf32>
    %67 = arith.addf %61, %66 : vector<256x32xf32>
    %c2_62 = arith.constant 2 : index
    %c1_63 = arith.constant 1 : index
    %c0_64 = arith.constant 0 : index
    %68 = vector.load %arg9[%c2_62, %c1_63, %c0_64] : memref<18x18x32xf32, #tpu.memory_space<vmem>>, vector<16x16x32xf32>
    %69 = vector.shape_cast %68 : vector<16x16x32xf32> to vector<256x32xf32>
    %70 = vector.extract_strided_slice %20 {offsets = [2, 1, 0, 0], sizes = [1, 1, 32, 32], strides = [1, 1, 1, 1]} : vector<3x3x32x32xf32> to vector<1x1x32x32xf32>
    %71 = vector.shape_cast %70 : vector<1x1x32x32xf32> to vector<32x32xf32>
    %cst_65 = arith.constant dense<0.000000e+00> : vector<256x32xf32>
    %72 = tpu.matmul %69, %71, %cst_65 {dimension_numbers = #tpu.dot_dimension_numbers<[1], [0], [0], [1], [0, 0, 1, 1], [], []>} : vector<256x32xf32>, vector<32x32xf32>, vector<256x32xf32> -> vector<256x32xf32>
    %73 = arith.addf %67, %72 : vector<256x32xf32>
    %c2_66 = arith.constant 2 : index
    %c2_67 = arith.constant 2 : index
    %c0_68 = arith.constant 0 : index
    %74 = vector.load %arg9[%c2_66, %c2_67, %c0_68] : memref<18x18x32xf32, #tpu.memory_space<vmem>>, vector<16x16x32xf32>
    %75 = vector.shape_cast %74 : vector<16x16x32xf32> to vector<256x32xf32>
    %76 = vector.extract_strided_slice %20 {offsets = [2, 2, 0, 0], sizes = [1, 1, 32, 32], strides = [1, 1, 1, 1]} : vector<3x3x32x32xf32> to vector<1x1x32x32xf32>
    %77 = vector.shape_cast %76 : vector<1x1x32x32xf32> to vector<32x32xf32>
    %cst_69 = arith.constant dense<0.000000e+00> : vector<256x32xf32>
    %78 = tpu.matmul %75, %77, %cst_69 {dimension_numbers = #tpu.dot_dimension_numbers<[1], [0], [0], [1], [0, 0, 1, 1], [], []>} : vector<256x32xf32>, vector<32x32xf32>, vector<256x32xf32> -> vector<256x32xf32>
    %79 = arith.addf %73, %78 : vector<256x32xf32>
    %cst_70 = arith.constant 0.000000e+00 : f32
    %80 = vector.broadcast %cst_70 : f32 to vector<256x32xf32>
    %81 = arith.maximumf %79, %80 : vector<256x32xf32>
    %cst_71 = arith.constant dense<0.000000e+00> : vector<256x128xf32>
    %82 = tpu.matmul %81, %22, %cst_71 {dimension_numbers = #tpu.dot_dimension_numbers<[1], [0], [0], [1], [0, 0, 1, 1], [], []>} : vector<256x32xf32>, vector<32x128xf32>, vector<256x128xf32> -> vector<256x128xf32>
    %83 = vector.broadcast %23 : vector<1x128xf32> to vector<256x128xf32>
    %84 = arith.addf %82, %83 : vector<256x128xf32>
    %85 = vector.shape_cast %9 : vector<16x16x128xf32> to vector<256x128xf32>
    %86 = arith.addf %84, %85 : vector<256x128xf32>
    %cst_72 = arith.constant 0.000000e+00 : f32
    %87 = vector.broadcast %cst_72 : f32 to vector<256x128xf32>
    %88 = arith.maximumf %86, %87 : vector<256x128xf32>
    %89 = vector.shape_cast %88 : vector<256x128xf32> to vector<1x16x16x128xf32>
    %c0_73 = arith.constant 0 : index
    %c0_74 = arith.constant 0 : index
    %c0_75 = arith.constant 0 : index
    %c0_76 = arith.constant 0 : index
    %90 = vector.load %arg8[%c0_73, %c0_74, %c0_75, %c0_76] : memref<1x16x16x128xf32, #tpu.memory_space<vmem>>, vector<1x16x16x128xf32>
    tpu.vector_store %arg8[%c0_73, %c0_74, %c0_75, %c0_76], %89 {strides = array<i32>} : memref<1x16x16x128xf32, #tpu.memory_space<vmem>>, vector<1x16x16x128xf32>,
    return
  }
  func.func @transform_0(%arg0: i32) -> (i32, i32, i32, i32) {
    %c0_i32 = arith.constant 0 : i32
    %c0_i32_0 = arith.constant 0 : i32
    %c0_i32_1 = arith.constant 0 : i32
    %c0_i32_2 = arith.constant 0 : i32
    return %arg0, %c0_i32, %c0_i32_0, %c0_i32_1 : i32, i32, i32, i32
  }
  func.func @transform_1(%arg0: i32) -> (i32, i32) {
    %c0_i32 = arith.constant 0 : i32
    %c0_i32_0 = arith.constant 0 : i32
    %c0_i32_1 = arith.constant 0 : i32
    return %c0_i32, %c0_i32_0 : i32, i32
  }
  func.func @transform_2(%arg0: i32) -> (i32, i32) {
    %c0_i32 = arith.constant 0 : i32
    %c0_i32_0 = arith.constant 0 : i32
    %c0_i32_1 = arith.constant 0 : i32
    return %c0_i32, %c0_i32_0 : i32, i32
  }
  func.func @transform_3(%arg0: i32) -> (i32, i32, i32, i32) {
    %c0_i32 = arith.constant 0 : i32
    %c0_i32_0 = arith.constant 0 : i32
    %c0_i32_1 = arith.constant 0 : i32
    %c0_i32_2 = arith.constant 0 : i32
    %c0_i32_3 = arith.constant 0 : i32
    return %c0_i32, %c0_i32_0, %c0_i32_1, %c0_i32_2 : i32, i32, i32, i32
  }
  func.func @transform_4(%arg0: i32) -> (i32, i32) {
    %c0_i32 = arith.constant 0 : i32
    %c0_i32_0 = arith.constant 0 : i32
    %c0_i32_1 = arith.constant 0 : i32
    return %c0_i32, %c0_i32_0 : i32, i32
  }
  func.func @transform_5(%arg0: i32) -> (i32, i32) {
    %c0_i32 = arith.constant 0 : i32
    %c0_i32_0 = arith.constant 0 : i32
    %c0_i32_1 = arith.constant 0 : i32
    return %c0_i32, %c0_i32_0 : i32, i32
  }
  func.func @transform_6(%arg0: i32) -> (i32, i32) {
    %c0_i32 = arith.constant 0 : i32
    %c0_i32_0 = arith.constant 0 : i32
    %c0_i32_1 = arith.constant 0 : i32
    return %c0_i32, %c0_i32_0 : i32, i32
  }
  func.func @transform_7(%arg0: i32) -> (i32, i32, i32, i32) {
    %c0_i32 = arith.constant 0 : i32
    %c0_i32_0 = arith.constant 0 : i32
    %c0_i32_1 = arith.constant 0 : i32
    %c0_i32_2 = arith.constant 0 : i32
    return %arg0, %c0_i32, %c0_i32_0, %c0_i32_1 : i32, i32, i32, i32
  }
}

</mosaic_0001>

<llo_original>
// kernel: tpu_custom_call.1
$region0: #{tpu_custom_call.1}
  #allocation0 [shape = 'u32[]', space=smem, size = 0x4, offset = 0x4, fixed_abs, tag = 'smem constant byte address 0x4 - core index']
  #allocation1 [shape = 'u32[144,128]{1,0:T(1,128)}', space=vmem, size = 0x12000, scoped, tag = 'internal scratch']
  #allocation2 [shape = 'f32[18,18,32]{2,1,0:T(8,128)}', space=vmem, size = 0x36000, scoped, tag = 'scratch operand']
  %s0 = inlined_call_operand.hbm [shape: f32[2,16,16,128], index: 0, kind: input, shape index: {}]
  %s1 = inlined_call_operand.vmem [shape: f32[128,32], index: 1, kind: input, shape index: {}]
  %s2 = inlined_call_operand.vmem [shape: f32[1,32], index: 2, kind: input, shape index: {}]
  %s3 = inlined_call_operand.hbm [shape: f32[3,3,32,32], index: 3, kind: input, shape index: {}]
  %s4 = inlined_call_operand.vmem [shape: f32[1,32], index: 4, kind: input, shape index: {}]
  %s5 = inlined_call_operand.vmem [shape: f32[32,128], index: 5, kind: input, shape index: {}]
  %s6 = inlined_call_operand.vmem [shape: f32[1,128], index: 6, kind: input, shape index: {}]
  %s7 = inlined_call_operand.hbm [shape: f32[2,16,16,128], index: 7, kind: output, shape index: {}]
  %s8 = sld [smem:[#allocation0]]
  $region69: #{tpu_custom_call.1} parent=0
    _
  %s10 = ssub.s32 1, %s8
  %s11 = scalar_select 0, %s10, %s8
  $region1: #{tpu_custom_call.1} parent=0
    #allocation3 [shape = 'u8[262144]{0}', space=vmem, size = 0x40000, scoped, tag = 'input window, operand 0']
    #allocation4 [shape = 's32[2]{0}', space=sflag, size = 0x8, scoped, tag = 'scoped memory for tpu_custom_call.1']
    #allocation5 [shape = 's32[2]{0}', space=sflag, size = 0x8, scoped, tag = 'scoped memory for tpu_custom_call.1']
    #allocation6 [shape = 'u8[147456]{0}', space=vmem, size = 0x24000, scoped, tag = 'input window, operand 3, single buffered']
    #allocation7 [shape = 's32[1]{0}', space=sflag, size = 0x4, scoped, tag = 'scoped memory for tpu_custom_call.1']
    #allocation8 [shape = 'u8[262144]{0}', space=vmem, size = 0x40000, scoped, tag = 'output window, operand 0']
    %12 = vsyncpa [#allocation4], 0
    %s13 = scalar_lea.sflag [#allocation4], 1
    %14 = vsyncpa %s13, 0
    %15 = vsyncpa [#allocation7], 0
    %16 = vsyncpa [#allocation5], 0
    %s17 = scalar_lea.sflag [#allocation5], 1
    %18 = vsyncpa %s17, 0
    loop: start=0, step=1, limit=4
    $region2: #{tpu_custom_call.1} parent=1 // loop_pre_header
      _
    $region3: #{tpu_custom_call.1} parent=1 // loop_header
      %s20 = sphi 0, %s24
      %p21 = scmp.ge.s32.totalorder %s20, 4
      %s30 = sphi 0, %s32
      %s33 = sphi 0, %s30
      %s34 = sphi 0, %s33
      %s50 = sphi 0, %s34
      %s54 = sphi 0, %s54
      %s56 = sphi 0, %s54
      %s57 = sphi 0, %s56
      %s71 = sphi 0, %s57
      %s75 = sphi 0, %s75
      %s77 = sphi 0, %s75
      %s78 = sphi 0, %s77
      %s92 = sphi 0, %s78
      %s96 = sphi 0, %s96
      %s98 = sphi 0, %s96
      %s99 = sphi 0, %s98
      %s113 = sphi 0, %s99
      %s117 = sphi 0, %s117
      %s119 = sphi 0, %s117
      %s120 = sphi 0, %s119
      %s134 = sphi 0, %s120
      %s138 = sphi 0, %s138
      %s140 = sphi 0, %s138
      %s141 = sphi 0, %s140
      %s155 = sphi 0, %s141
      %s159 = sphi 0, %s159
      %s161 = sphi 0, %s159
      %s162 = sphi 0, %s161
      %s176 = sphi 0, %s162
      %s182 = sphi 0, %s184
      %s185 = sphi 0, %s182
      %s186 = sphi 0, %s185
      %s202 = sphi 0, %s186
    $region4: #{tpu_custom_call.1} parent=1 // loop_header_branch
      %23 = sbr.rel (%p21) target = $region8
    $region5: #{tpu_custom_call.1} parent=1 // loop_body
      %s25 = ssub.s32 %s20, 1
      %s26 = ssub.s32 %s20, 2
      %s27 = sadd.s32 %s20, 1
      %s28 = ssub.s32 %s20, %s27
      %p29 = scmp.eq.s32.totalorder %s28, 0
      %s31 = sadd.s32 %s30, 1
      %s32 = scalar_select %p29, %s30, %s31
      %p35 = pneg %p29
      %p36 = scmp.eq.s32.totalorder %s20, 1
      %p37 = por %p35, %p36
      %p38 = scmp.ne.s32.totalorder %s30, %s33
      %p39 = scmp.eq.s32.totalorder %s20, 0
      %p40 = por %p38, %p39
      %p41 = scmp.ne.s32.totalorder %s30, %s33
      %p42 = scmp.eq.s32.totalorder %s25, 1
      %p43 = por %p41, %p42
      %p44 = scmp.ne.s32.totalorder %s33, %s34
      %p45 = scmp.eq.s32.totalorder %s25, 0
      %p46 = por %p44, %p45
      %p47 = scmp.ne.s32.totalorder %s33, %s34
      %p48 = scmp.eq.s32.totalorder %s26, 1
      %p49 = por %p47, %p48
      %p51 = scmp.ne.s32.totalorder %s34, %s50
      %p52 = scmp.eq.s32.totalorder %s26, 0
      %p53 = por %p51, %p52
      %s55 = sadd.s32 %s54, 1
      %p58 = scmp.eq.s32.totalorder %s20, 1
      %p59 = scmp.ne.s32.totalorder %s54, %s56
      %p60 = scmp.eq.s32.totalorder %s20, 0
      %p61 = por %p59, %p60
      %p62 = scmp.ne.s32.totalorder %s54, %s56
      %p63 = scmp.eq.s32.totalorder %s25, 1
      %p64 = por %p62, %p63
      %p65 = scmp.ne.s32.totalorder %s56, %s57
      %p66 = scmp.eq.s32.totalorder %s25, 0
      %p67 = por %p65, %p66
      %p68 = scmp.ne.s32.totalorder %s56, %s57
      %p69 = scmp.eq.s32.totalorder %s26, 1
      %p70 = por %p68, %p69
      %p72 = scmp.ne.s32.totalorder %s57, %s71
      %p73 = scmp.eq.s32.totalorder %s26, 0
      %p74 = por %p72, %p73
      %s76 = sadd.s32 %s75, 1
      %p79 = scmp.eq.s32.totalorder %s20, 1
      %p80 = scmp.ne.s32.totalorder %s75, %s77
      %p81 = scmp.eq.s32.totalorder %s20, 0
      %p82 = por %p80, %p81
      %p83 = scmp.ne.s32.totalorder %s75, %s77
      %p84 = scmp.eq.s32.totalorder %s25, 1
      %p85 = por %p83, %p84
      %p86 = scmp.ne.s32.totalorder %s77, %s78
      %p87 = scmp.eq.s32.totalorder %s25, 0
      %p88 = por %p86, %p87
      %p89 = scmp.ne.s32.totalorder %s77, %s78
      %p90 = scmp.eq.s32.totalorder %s26, 1
      %p91 = por %p89, %p90
      %p93 = scmp.ne.s32.totalorder %s78, %s92
      %p94 = scmp.eq.s32.totalorder %s26, 0
      %p95 = por %p93, %p94
      %s97 = sadd.s32 %s96, 1
      %p100 = scmp.eq.s32.totalorder %s20, 1
      %p101 = scmp.ne.s32.totalorder %s96, %s98
      %p102 = scmp.eq.s32.totalorder %s20, 0
      %p103 = por %p101, %p102
      %p104 = scmp.ne.s32.totalorder %s96, %s98
      %p105 = scmp.eq.s32.totalorder %s25, 1
      %p106 = por %p104, %p105
      %p107 = scmp.ne.s32.totalorder %s98, %s99
      %p108 = scmp.eq.s32.totalorder %s25, 0
      %p109 = por %p107, %p108
      %p110 = scmp.ne.s32.totalorder %s98, %s99
      %p111 = scmp.eq.s32.totalorder %s26, 1
      %p112 = por %p110, %p111
      %p114 = scmp.ne.s32.totalorder %s99, %s113
      %p115 = scmp.eq.s32.totalorder %s26, 0
      %p116 = por %p114, %p115
      %s118 = sadd.s32 %s117, 1
      %p121 = scmp.eq.s32.totalorder %s20, 1
      %p122 = scmp.ne.s32.totalorder %s117, %s119
      %p123 = scmp.eq.s32.totalorder %s20, 0
      %p124 = por %p122, %p123
      %p125 = scmp.ne.s32.totalorder %s117, %s119
      %p126 = scmp.eq.s32.totalorder %s25, 1
      %p127 = por %p125, %p126
      %p128 = scmp.ne.s32.totalorder %s119, %s120
      %p129 = scmp.eq.s32.totalorder %s25, 0
      %p130 = por %p128, %p129
      %p131 = scmp.ne.s32.totalorder %s119, %s120
      %p132 = scmp.eq.s32.totalorder %s26, 1
      %p133 = por %p131, %p132
      %p135 = scmp.ne.s32.totalorder %s120, %s134
      %p136 = scmp.eq.s32.totalorder %s26, 0
      %p137 = por %p135, %p136
      %s139 = sadd.s32 %s138, 1
      %p142 = scmp.eq.s32.totalorder %s20, 1
      %p143 = scmp.ne.s32.totalorder %s138, %s140
      %p144 = scmp.eq.s32.totalorder %s20, 0
      %p145 = por %p143, %p144
      %p146 = scmp.ne.s32.totalorder %s138, %s140
      %p147 = scmp.eq.s32.totalorder %s25, 1
      %p148 = por %p146, %p147
      %p149 = scmp.ne.s32.totalorder %s140, %s141
      %p150 = scmp.eq.s32.totalorder %s25, 0
      %p151 = por %p149, %p150
      %p152 = scmp.ne.s32.totalorder %s140, %s141
      %p153 = scmp.eq.s32.totalorder %s26, 1
      %p154 = por %p152, %p153
      %p156 = scmp.ne.s32.totalorder %s141, %s155
      %p157 = scmp.eq.s32.totalorder %s26, 0
      %p158 = por %p156, %p157
      %s160 = sadd.s32 %s159, 1
      %p163 = scmp.eq.s32.totalorder %s20, 1
      %p164 = scmp.ne.s32.totalorder %s159, %s161
      %p165 = scmp.eq.s32.totalorder %s20, 0
      %p166 = por %p164, %p165
      %p167 = scmp.ne.s32.totalorder %s159, %s161
      %p168 = scmp.eq.s32.totalorder %s25, 1
      %p169 = por %p167, %p168
      %p170 = scmp.ne.s32.totalorder %s161, %s162
      %p171 = scmp.eq.s32.totalorder %s25, 0
      %p172 = por %p170, %p171
      %p173 = scmp.ne.s32.totalorder %s161, %s162
      %p174 = scmp.eq.s32.totalorder %s26, 1
      %p175 = por %p173, %p174
      %p177 = scmp.ne.s32.totalorder %s162, %s176
      %p178 = scmp.eq.s32.totalorder %s26, 0
      %p179 = por %p177, %p178
      %s180 = ssub.s32 %s20, %s27
      %p181 = scmp.eq.s32.totalorder %s180, 0
      %s183 = sadd.s32 %s182, 1
      %s184 = scalar_select %p181, %s182, %s183
      %p187 = pneg %p181
      %p188 = scmp.eq.s32.totalorder %s20, 1
      %p189 = por %p187, %p188
      %p190 = scmp.ne.s32.totalorder %s182, %s185
      %p191 = scmp.eq.s32.totalorder %s20, 0
      %p192 = por %p190, %p191
      %p193 = scmp.ne.s32.totalorder %s182, %s185
      %p194 = scmp.eq.s32.totalorder %s25, 1
      %p195 = por %p193, %p194
      %p196 = scmp.ne.s32.totalorder %s185, %s186
      %p197 = scmp.eq.s32.totalorder %s25, 0
      %p198 = por %p196, %p197
      %p199 = scmp.ne.s32.totalorder %s185, %s186
      %p200 = scmp.eq.s32.totalorder %s26, 1
      %p201 = por %p199, %p200
      %p203 = scmp.ne.s32.totalorder %s186, %s202
      %p204 = scmp.eq.s32.totalorder %s26, 0
      %p205 = por %p203, %p204
      %p206 = scmp.le.s32.totalorder 1, %s20
      %p207 = scmp.lt.s32.totalorder %s20, 3
      %p208 = pnand %p206, %p207
      %p209 = pneg %p208
      // Predicated region
      $region9: #{tpu_custom_call.1} parent=5 // pred_check
        _
      $region10: #{tpu_custom_call.1} parent=5 // pred_check_branch
        %211 = sbr.rel (%p208) target = $region12
      $region11: #{tpu_custom_call.1} parent=5 // pred_region
        %s212 = ssub.s32 %s20, 1
        // Predicated region
        $region13: #{tpu_custom_call.1} parent=11 // pred_check
          %p213 = pneg %p67
        $region14: #{tpu_custom_call.1} parent=11 // pred_check_branch
          %215 = sbr.rel (%p213) target = $region16
        $region15: #{tpu_custom_call.1} parent=11 // pred_region
          _
        $region16: #{tpu_custom_call.1} parent=11 // pred_fallthru
          _
        // Predicated region
        $region17: #{tpu_custom_call.1} parent=11 // pred_check
          %p216 = pneg %p88
        $region18: #{tpu_custom_call.1} parent=11 // pred_check_branch
          %218 = sbr.rel (%p216) target = $region20
        $region19: #{tpu_custom_call.1} parent=11 // pred_region
          _
        $region20: #{tpu_custom_call.1} parent=11 // pred_fallthru
          _
        // Predicated region
        $region21: #{tpu_custom_call.1} parent=11 // pred_check
          %p219 = pneg %p109
        $region22: #{tpu_custom_call.1} parent=11 // pred_check_branch
          %221 = sbr.rel (%p219) target = $region24
        $region23: #{tpu_custom_call.1} parent=11 // pred_region
          %s223 = ssub.s32 4608, 4608
          %224 = vsyncadd [#allocation7], %s223
          %s225 = sshll.u32 [#allocation6], 4
          %s226 = int_to_ptr.vmem [resolvable:$true] %s225
          %231 = dma.hbm_to_vmem [thread:$0]  %s3, 4608, %s226, [#allocation7], 128, 128, 8
        $region24: #{tpu_custom_call.1} parent=11 // pred_fallthru
          _
        // Predicated region
        $region25: #{tpu_custom_call.1} parent=11 // pred_check
          %p232 = pneg %p130
        $region26: #{tpu_custom_call.1} parent=11 // pred_check_branch
          %234 = sbr.rel (%p232) target = $region28
        $region27: #{tpu_custom_call.1} parent=11 // pred_region
          _
        $region28: #{tpu_custom_call.1} parent=11 // pred_fallthru
          _
        // Predicated region
        $region29: #{tpu_custom_call.1} parent=11 // pred_check
          %p235 = pneg %p151
        $region30: #{tpu_custom_call.1} parent=11 // pred_check_branch
          %237 = sbr.rel (%p235) target = $region32
        $region31: #{tpu_custom_call.1} parent=11 // pred_region
          _
        $region32: #{tpu_custom_call.1} parent=11 // pred_fallthru
          _
        // Predicated region
        $region33: #{tpu_custom_call.1} parent=11 // pred_check
          %p238 = pneg %p172
        $region34: #{tpu_custom_call.1} parent=11 // pred_check_branch
          %240 = sbr.rel (%p238) target = $region36
        $region35: #{tpu_custom_call.1} parent=11 // pred_region
          _
        $region36: #{tpu_custom_call.1} parent=11 // pred_fallthru
          _
      $region12: #{tpu_custom_call.1} parent=5 // pred_fallthru
        _
      %p241 = scmp.lt.s32.totalorder %s20, 2
      // Predicated region
      $region37: #{tpu_custom_call.1} parent=5 // pred_check
        %p242 = pneg %p241
      $region38: #{tpu_custom_call.1} parent=5 // pred_check_branch
        %244 = sbr.rel (%p242) target = $region40
      $region39: #{tpu_custom_call.1} parent=5 // pred_region
        // Predicated region
        $region41: #{tpu_custom_call.1} parent=39 // pred_check
          %p245 = pneg %p40
        $region42: #{tpu_custom_call.1} parent=39 // pred_check_branch
          %247 = sbr.rel (%p245) target = $region44
        $region43: #{tpu_custom_call.1} parent=39 // pred_region
          %s248 = sand.u32 %s30, 1
          %s249 = scalar_lea.sflag [#allocation4], %s248
          %s250 = sand.u32 %s30, 1
          %s251 = smul.addr %s250, 256
          %s252 = scalar_lea.vmem [#allocation3], %s251
          %s254 = ssub.s32 4096, 4096
          %255 = vsyncadd %s249, %s254
          %s256 = smul.addr %s20, 32
          %s257 = smul.addr %s256, 128
          %s258 = scalar_lea.hbm %s0, %s257
          %s259 = sshll.u32 %s252, 4
          %s260 = int_to_ptr.vmem [resolvable:$true] %s259
          %265 = dma.hbm_to_vmem [thread:$0]  %s258, 4096, %s260, %s249, 128, 128, 8
        $region44: #{tpu_custom_call.1} parent=39 // pred_fallthru
          _
      $region40: #{tpu_custom_call.1} parent=5 // pred_fallthru
        _
      %p266 = scmp.le.s32.totalorder 1, %s20
      %p267 = scmp.lt.s32.totalorder %s20, 3
      %p268 = pnand %p266, %p267
      %p269 = pneg %p268
      // Predicated region
      $region45: #{tpu_custom_call.1} parent=5 // pred_check
        _
      $region46: #{tpu_custom_call.1} parent=5 // pred_check_branch
        %271 = sbr.rel (%p268) target = $region48
      $region47: #{tpu_custom_call.1} parent=5 // pred_region
        %s272 = ssub.s32 %s20, 1
        %s273 = sand.u32 %s33, 1
        %s274 = scalar_lea.sflag [#allocation4], %s273
        %s275 = sand.u32 %s33, 1
        %s276 = smul.addr %s275, 256
        %s277 = scalar_lea.vmem [#allocation3], %s276
        // Predicated region
        $region49: #{tpu_custom_call.1} parent=47 // pred_check
          %p278 = pneg %p46
        $region50: #{tpu_custom_call.1} parent=47 // pred_check_branch
          %280 = sbr.rel (%p278) target = $region52
        $region51: #{tpu_custom_call.1} parent=47 // pred_region
          %281 = dma.done %s274, 4096
        $region52: #{tpu_custom_call.1} parent=47 // pred_fallthru
          _
        // Predicated region
        $region53: #{tpu_custom_call.1} parent=47 // pred_check
          %p282 = pneg %p109
        $region54: #{tpu_custom_call.1} parent=47 // pred_check_branch
          %284 = sbr.rel (%p282) target = $region56
        $region55: #{tpu_custom_call.1} parent=47 // pred_region
          %285 = dma.done [#allocation7], 4608
        $region56: #{tpu_custom_call.1} parent=47 // pred_fallthru
          _
        %s286 = sand.u32 %s33, 1
        %s287 = scalar_lea.sflag [#allocation4], %s286
        %s288 = sand.u32 %s33, 1
        %s289 = smul.addr %s288, 256
        %s290 = scalar_lea.vmem [#allocation3], %s289
        %p291 = pneg %p46
        %p292 = pneg %p43
        %p293 = pneg %p67
        %p294 = pneg %p64
        %p295 = pneg %p88
        %p296 = pneg %p85
        %p297 = pneg %p109
        %p298 = pneg %p106
        %p299 = pneg %p130
        %p300 = pneg %p127
        %p301 = pneg %p151
        %p302 = pneg %p148
        %p303 = pneg %p172
        %p304 = pneg %p169
        %p305 = pneg %p198
        %p306 = pneg %p195
        %s307 = sand.u32 %s185, 1
        %s308 = scalar_lea.sflag [#allocation5], %s307
        %s309 = sand.u32 %s185, 1
        %s310 = smul.addr %s309, 256
        %s311 = scalar_lea.vmem [#allocation8], %s310
        %vm312 = vcmask 261120
        %313 = vst.msk [vmem:[#allocation2] sm:$0xff] %vm312, 0.0
        %314 = vst.msk [vmem:[#allocation2 + $0x8] sm:$0xff] %vm312, 0.0
        %vm315 = vcmask 254976
        %316 = vst.msk [vmem:[#allocation2 + $0x10] sm:$0x3] %vm315, 0.0
        %s317 = scalar_lea.vmem [#allocation2], 408
        %318 = vst.msk [vmem:[%s317] sm:$0xff] %vm312, 0.0
        %319 = vst.msk [vmem:[%s317 + $0x8] sm:$0xff] %vm312, 0.0
        %320 = vst.msk [vmem:[%s317 + $0x10] sm:$0x3] %vm315, 0.0
        %vm321 = vcmask 253952
        %322 = vst.msk [vmem:[#allocation2] sm:$0x1] %vm321, 0.0
        %323 = vst.msk [vmem:[#allocation2 + $0x18] sm:$0x1] %vm321, 0.0
        %324 = vst.msk [vmem:[#allocation2 + $0x30] sm:$0x1] %vm321, 0.0
        %325 = vst.msk [vmem:[#allocation2 + $0x48] sm:$0x1] %vm321, 0.0
        %326 = vst.msk [vmem:[#allocation2 + $0x60] sm:$0x1] %vm321, 0.0
        %327 = vst.msk [vmem:[#allocation2 + $0x78] sm:$0x1] %vm321, 0.0
        %328 = vst.msk [vmem:[#allocation2 + $0x90] sm:$0x1] %vm321, 0.0
        %329 = vst.msk [vmem:[#allocation2 + $0xa8] sm:$0x1] %vm321, 0.0
        %330 = vst.msk [vmem:[#allocation2 + $0xc0] sm:$0x1] %vm321, 0.0
        %331 = vst.msk [vmem:[#allocation2 + $0xd8] sm:$0x1] %vm321, 0.0
        %332 = vst.msk [vmem:[#allocation2 + $0xf0] sm:$0x1] %vm321, 0.0
        %333 = vst.msk [vmem:[#allocation2 + $0x108] sm:$0x1] %vm321, 0.0
        %334 = vst.msk [vmem:[#allocation2 + $0x120] sm:$0x1] %vm321, 0.0
        %335 = vst.msk [vmem:[#allocation2 + $0x138] sm:$0x1] %vm321, 0.0
        %336 = vst.msk [vmem:[#allocation2 + $0x150] sm:$0x1] %vm321, 0.0
        %337 = vst.msk [vmem:[#allocation2 + $0x168] sm:$0x1] %vm321, 0.0
        %338 = vst.msk [vmem:[#allocation2 + $0x180] sm:$0x1] %vm321, 0.0
        %339 = vst.msk [vmem:[#allocation2 + $0x198] sm:$0x1] %vm321, 0.0
        %340 = vst.msk [vmem:[#allocation2 + $0x11] sm:$0x1] %vm321, 0.0
        %341 = vst.msk [vmem:[#allocation2 + $0x29] sm:$0x1] %vm321, 0.0
        %342 = vst.msk [vmem:[#allocation2 + $0x41] sm:$0x1] %vm321, 0.0
        %343 = vst.msk [vmem:[#allocation2 + $0x59] sm:$0x1] %vm321, 0.0
        %344 = vst.msk [vmem:[#allocation2 + $0x71] sm:$0x1] %vm321, 0.0
        %345 = vst.msk [vmem:[#allocation2 + $0x89] sm:$0x1] %vm321, 0.0
        %346 = vst.msk [vmem:[#allocation2 + $0xa1] sm:$0x1] %vm321, 0.0
        %347 = vst.msk [vmem:[#allocation2 + $0xb9] sm:$0x1] %vm321, 0.0
        %348 = vst.msk [vmem:[#allocation2 + $0xd1] sm:$0x1] %vm321, 0.0
        %349 = vst.msk [vmem:[#allocation2 + $0xe9] sm:$0x1] %vm321, 0.0
        %350 = vst.msk [vmem:[#allocation2 + $0x101] sm:$0x1] %vm321, 0.0
        %351 = vst.msk [vmem:[#allocation2 + $0x119] sm:$0x1] %vm321, 0.0
        %352 = vst.msk [vmem:[#allocation2 + $0x131] sm:$0x1] %vm321, 0.0
        %353 = vst.msk [vmem:[#allocation2 + $0x149] sm:$0x1] %vm321, 0.0
        %354 = vst.msk [vmem:[#allocation2 + $0x161] sm:$0x1] %vm321, 0.0
        %355 = vst.msk [vmem:[#allocation2 + $0x179] sm:$0x1] %vm321, 0.0
        %356 = vst.msk [vmem:[#allocation2 + $0x191] sm:$0x1] %vm321, 0.0
        %357 = vst.msk [vmem:[#allocation2 + $0x1a9] sm:$0x1] %vm321, 0.0
        %v358 = vld [vmem:[%s277] sm:$0xff]
        %v359 = vld [vmem:[%s277 + $0x8] sm:$0xff]
        %v360 = vld [vmem:[%s277 + $0x10] sm:$0xff]
        %v361 = vld [vmem:[%s277 + $0x18] sm:$0xff]
        %v362 = vld [vmem:[%s277 + $0x20] sm:$0xff]
        %v363 = vld [vmem:[%s277 + $0x28] sm:$0xff]
        %v364 = vld [vmem:[%s277 + $0x30] sm:$0xff]
        %v365 = vld [vmem:[%s277 + $0x38] sm:$0xff]
        %v366 = vld [vmem:[%s277 + $0x40] sm:$0xff]
        %v367 = vld [vmem:[%s277 + $0x48] sm:$0xff]
        %v368 = vld [vmem:[%s277 + $0x50] sm:$0xff]
        %v369 = vld [vmem:[%s277 + $0x58] sm:$0xff]
        %v370 = vld [vmem:[%s277 + $0x60] sm:$0xff]
        %v371 = vld [vmem:[%s277 + $0x68] sm:$0xff]
        %v372 = vld [vmem:[%s277 + $0x70] sm:$0xff]
        %v373 = vld [vmem:[%s277 + $0x78] sm:$0xff]
        %v374 = vld [vmem:[%s277 + $0x80] sm:$0xff]
        %v375 = vld [vmem:[%s277 + $0x88] sm:$0xff]
        %v376 = vld [vmem:[%s277 + $0x90] sm:$0xff]
        %v377 = vld [vmem:[%s277 + $0x98] sm:$0xff]
        %v378 = vld [vmem:[%s277 + $0xa0] sm:$0xff]
        %v379 = vld [vmem:[%s277 + $0xa8] sm:$0xff]
        %v380 = vld [vmem:[%s277 + $0xb0] sm:$0xff]
        %v381 = vld [vmem:[%s277 + $0xb8] sm:$0xff]
        %v382 = vld [vmem:[%s277 + $0xc0] sm:$0xff]
        %v383 = vld [vmem:[%s277 + $0xc8] sm:$0xff]
        %v384 = vld [vmem:[%s277 + $0xd0] sm:$0xff]
        %v385 = vld [vmem:[%s277 + $0xd8] sm:$0xff]
        %v386 = vld [vmem:[%s277 + $0xe0] sm:$0xff]
        %v387 = vld [vmem:[%s277 + $0xe8] sm:$0xff]
        %v388 = vld [vmem:[%s277 + $0xf0] sm:$0xff]
        %v389 = vld [vmem:[%s277 + $0xf8] sm:$0xff]
        %v390 = vld [vmem:[%s1] sm:$0xff]
        %v391 = vld [vmem:[%s1 + $0x8] sm:$0xff]
        %v392 = vld [vmem:[%s1 + $0x10] sm:$0xff]
        %v393 = vld [vmem:[%s1 + $0x18] sm:$0xff]
        %v394 = vld [vmem:[%s1 + $0x20] sm:$0xff]
        %v395 = vld [vmem:[%s1 + $0x28] sm:$0xff]
        %v396 = vld [vmem:[%s1 + $0x30] sm:$0xff]
        %v397 = vld [vmem:[%s1 + $0x38] sm:$0xff]
        %v398 = vld [vmem:[%s1 + $0x40] sm:$0xff]
        %v399 = vld [vmem:[%s1 + $0x48] sm:$0xff]
        %v400 = vld [vmem:[%s1 + $0x50] sm:$0xff]
        %v401 = vld [vmem:[%s1 + $0x58] sm:$0xff]
        %v402 = vld [vmem:[%s1 + $0x60] sm:$0xff]
        %v403 = vld [vmem:[%s1 + $0x68] sm:$0xff]
        %v404 = vld [vmem:[%s1 + $0x70] sm:$0xff]
        %v405 = vld [vmem:[%s1 + $0x78] sm:$0xff]
        %v406 = vld [vmem:[%s2] sm:$0x1]
        %v408 = vlaneseq
        %v409 = vshrl.u32 %v408, 7
        %v410 = vsub.s32 0, %v409
        %v411 = vrot.slane %v406, %v410
        %413 = vmatprep.subr.mxu0 0.0
        %414 = vmatpush1.msra.mxu0 %v405
        %415 = vmatprep.subr.mxu0 0.0
        %416 = vmatpush1.msra.mxu0 %v404
        %417 = vmatprep.subr.mxu0 0.0
        %418 = vmatpush1.msra.mxu0 %v403
        %419 = vmatprep.subr.mxu0 0.0
        %420 = vmatpush1.msra.mxu0 %v402
        %421 = vmatprep.subr.mxu0 0.0
        %422 = vmatpush1.msra.mxu0 %v401
        %423 = vmatprep.subr.mxu0 0.0
        %424 = vmatpush1.msra.mxu0 %v400
        %425 = vmatprep.subr.mxu0 0.0
        %426 = vmatpush1.msra.mxu0 %v399
        %427 = vmatprep.subr.mxu0 0.0
        %428 = vmatpush1.msra.mxu0 %v398
        %429 = vmatprep.subr.mxu0 0.0
        %430 = vmatpush1.msra.mxu0 %v397
        %431 = vmatprep.subr.mxu0 0.0
        %432 = vmatpush1.msra.mxu0 %v396
        %433 = vmatprep.subr.mxu0 0.0
        %434 = vmatpush1.msra.mxu0 %v395
        %435 = vmatprep.subr.mxu0 0.0
        %436 = vmatpush1.msra.mxu0 %v394
        %437 = vmatprep.subr.mxu0 0.0
        %438 = vmatpush1.msra.mxu0 %v393
        %439 = vmatprep.subr.mxu0 0.0
        %440 = vmatpush1.msra.mxu0 %v392
        %441 = vmatprep.subr.mxu0 0.0
        %442 = vmatpush1.msra.mxu0 %v391
        %443 = vmatprep.subr.mxu0 0.0
        %444 = vmatpush1.msra.mxu0 %v390
        %445 = vmatprep.subr.mxu0 0.0
        %446 = vmatpush2.msra.mxu0 0.0
        %447 = vmatprep.subr.mxu0 0.0
        %448 = vmatpush2.msra.mxu0 0.0
        %449 = vmatprep.subr.mxu0 0.0
        %450 = vmatpush2.msra.mxu0 0.0
        %451 = vmatprep.subr.mxu0 0.0
        %452 = vmatpush2.msra.mxu0 0.0
        %453 = vmatprep.subr.mxu0 0.0
        %454 = vmatpush2.msra.mxu0 0.0
        %455 = vmatprep.subr.mxu0 0.0
        %456 = vmatpush2.msra.mxu0 0.0
        %457 = vmatprep.subr.mxu0 0.0
        %458 = vmatpush2.msra.mxu0 0.0
        %459 = vmatprep.subr.mxu0 0.0
        %460 = vmatpush2.msra.mxu0 0.0
        %461 = vmatprep.subr.mxu0 0.0
        %462 = vmatpush2.msra.mxu0 0.0
        %463 = vmatprep.subr.mxu0 0.0
        %464 = vmatpush2.msra.mxu0 0.0
        %465 = vmatprep.subr.mxu0 0.0
        %466 = vmatpush2.msra.mxu0 0.0
        %467 = vmatprep.subr.mxu0 0.0
        %468 = vmatpush2.msra.mxu0 0.0
        %469 = vmatprep.subr.mxu0 0.0
        %470 = vmatpush2.msra.mxu0 0.0
        %471 = vmatprep.subr.mxu0 0.0
        %472 = vmatpush2.msra.mxu0 0.0
        %473 = vmatprep.subr.mxu0 0.0
        %474 = vmatpush2.msra.mxu0 0.0
        %475 = vmatprep.subr.mxu0 0.0
        %476 = vmatpush2.msra.mxu0 0.0
        %477 = vmatprep.mubr.f32.mxu0 0.0
        %478 = vmatmul.mubr.f32.gmra.mxu0 %v358
        %v479 = vpop.f32.mrf.mxu0
        %v480 = vadd.f32 %v411, %v479
        %v481 = vpop.f32.mrf.mxu0
        %482 = vmatprep.mubr.f32.mxu0 0.0
        %483 = vmatmul.mubr.f32.gmra.mxu0 %v359
        %v484 = vpop.f32.mrf.mxu0
        %v485 = vadd.f32 %v411, %v484
        %v486 = vpop.f32.mrf.mxu0
        %487 = vmatprep.mubr.f32.mxu0 0.0
        %488 = vmatmul.mubr.f32.gmra.mxu0 %v360
        %v489 = vpop.f32.mrf.mxu0
        %v490 = vadd.f32 %v411, %v489
        %v491 = vpop.f32.mrf.mxu0
        %492 = vmatprep.mubr.f32.mxu0 0.0
        %493 = vmatmul.mubr.f32.gmra.mxu0 %v361
        %v494 = vpop.f32.mrf.mxu0
        %v495 = vadd.f32 %v411, %v494
        %v496 = vpop.f32.mrf.mxu0
        %497 = vmatprep.mubr.f32.mxu0 0.0
        %498 = vmatmul.mubr.f32.gmra.mxu0 %v362
        %v499 = vpop.f32.mrf.mxu0
        %v500 = vadd.f32 %v411, %v499
        %v501 = vpop.f32.mrf.mxu0
        %502 = vmatprep.mubr.f32.mxu0 0.0
        %503 = vmatmul.mubr.f32.gmra.mxu0 %v363
        %v504 = vpop.f32.mrf.mxu0
        %v505 = vadd.f32 %v411, %v504
        %v506 = vpop.f32.mrf.mxu0
        %507 = vmatprep.mubr.f32.mxu0 0.0
        %508 = vmatmul.mubr.f32.gmra.mxu0 %v364
        %v509 = vpop.f32.mrf.mxu0
        %v510 = vadd.f32 %v411, %v509
        %v511 = vpop.f32.mrf.mxu0
        %512 = vmatprep.mubr.f32.mxu0 0.0
        %513 = vmatmul.mubr.f32.gmra.mxu0 %v365
        %v514 = vpop.f32.mrf.mxu0
        %v515 = vadd.f32 %v411, %v514
        %v516 = vpop.f32.mrf.mxu0
        %517 = vmatprep.mubr.f32.mxu0 0.0
        %518 = vmatmul.mubr.f32.gmra.mxu0 %v366
        %v519 = vpop.f32.mrf.mxu0
        %v520 = vadd.f32 %v411, %v519
        %v521 = vpop.f32.mrf.mxu0
        %522 = vmatprep.mubr.f32.mxu0 0.0
        %523 = vmatmul.mubr.f32.gmra.mxu0 %v367
        %v524 = vpop.f32.mrf.mxu0
        %v525 = vadd.f32 %v411, %v524
        %v526 = vpop.f32.mrf.mxu0
        %527 = vmatprep.mubr.f32.mxu0 0.0
        %528 = vmatmul.mubr.f32.gmra.mxu0 %v368
        %v529 = vpop.f32.mrf.mxu0
        %v530 = vadd.f32 %v411, %v529
        %v531 = vpop.f32.mrf.mxu0
        %532 = vmatprep.mubr.f32.mxu0 0.0
        %533 = vmatmul.mubr.f32.gmra.mxu0 %v369
        %v534 = vpop.f32.mrf.mxu0
        %v535 = vadd.f32 %v411, %v534
        %v536 = vpop.f32.mrf.mxu0
        %537 = vmatprep.mubr.f32.mxu0 0.0
        %538 = vmatmul.mubr.f32.gmra.mxu0 %v370
        %v539 = vpop.f32.mrf.mxu0
        %v540 = vadd.f32 %v411, %v539
        %v541 = vpop.f32.mrf.mxu0
        %542 = vmatprep.mubr.f32.mxu0 0.0
        %543 = vmatmul.mubr.f32.gmra.mxu0 %v371
        %v544 = vpop.f32.mrf.mxu0
        %v545 = vadd.f32 %v411, %v544
        %v546 = vpop.f32.mrf.mxu0
        %547 = vmatprep.mubr.f32.mxu0 0.0
        %548 = vmatmul.mubr.f32.gmra.mxu0 %v372
        %v549 = vpop.f32.mrf.mxu0
        %v550 = vadd.f32 %v411, %v549
        %v551 = vpop.f32.mrf.mxu0
        %552 = vmatprep.mubr.f32.mxu0 0.0
        %553 = vmatmul.mubr.f32.gmra.mxu0 %v373
        %v554 = vpop.f32.mrf.mxu0
        %v555 = vadd.f32 %v411, %v554
        %v556 = vpop.f32.mrf.mxu0
        %557 = vmatprep.mubr.f32.mxu0 0.0
        %558 = vmatmul.mubr.f32.gmra.mxu0 %v374
        %v559 = vpop.f32.mrf.mxu0
        %v560 = vadd.f32 %v411, %v559
        %v561 = vpop.f32.mrf.mxu0
        %562 = vmatprep.mubr.f32.mxu0 0.0
        %563 = vmatmul.mubr.f32.gmra.mxu0 %v375
        %v564 = vpop.f32.mrf.mxu0
        %v565 = vadd.f32 %v411, %v564
        %v566 = vpop.f32.mrf.mxu0
        %567 = vmatprep.mubr.f32.mxu0 0.0
        %568 = vmatmul.mubr.f32.gmra.mxu0 %v376
        %v569 = vpop.f32.mrf.mxu0
        %v570 = vadd.f32 %v411, %v569
        %v571 = vpop.f32.mrf.mxu0
        %572 = vmatprep.mubr.f32.mxu0 0.0
        %573 = vmatmul.mubr.f32.gmra.mxu0 %v377
        %v574 = vpop.f32.mrf.mxu0
        %v575 = vadd.f32 %v411, %v574
        %v576 = vpop.f32.mrf.mxu0
        %577 = vmatprep.mubr.f32.mxu0 0.0
        %578 = vmatmul.mubr.f32.gmra.mxu0 %v378
        %v579 = vpop.f32.mrf.mxu0
        %v580 = vadd.f32 %v411, %v579
        %v581 = vpop.f32.mrf.mxu0
        %582 = vmatprep.mubr.f32.mxu0 0.0
        %583 = vmatmul.mubr.f32.gmra.mxu0 %v379
        %v584 = vpop.f32.mrf.mxu0
        %v585 = vadd.f32 %v411, %v584
        %v586 = vpop.f32.mrf.mxu0
        %587 = vmatprep.mubr.f32.mxu0 0.0
        %588 = vmatmul.mubr.f32.gmra.mxu0 %v380
        %v589 = vpop.f32.mrf.mxu0
        %v590 = vadd.f32 %v411, %v589
        %v591 = vpop.f32.mrf.mxu0
        %592 = vmatprep.mubr.f32.mxu0 0.0
        %593 = vmatmul.mubr.f32.gmra.mxu0 %v381
        %v594 = vpop.f32.mrf.mxu0
        %v595 = vadd.f32 %v411, %v594
        %v596 = vpop.f32.mrf.mxu0
        %597 = vmatprep.mubr.f32.mxu0 0.0
        %598 = vmatmul.mubr.f32.gmra.mxu0 %v382
        %v599 = vpop.f32.mrf.mxu0
        %v600 = vadd.f32 %v411, %v599
        %v601 = vpop.f32.mrf.mxu0
        %602 = vmatprep.mubr.f32.mxu0 0.0
        %603 = vmatmul.mubr.f32.gmra.mxu0 %v383
        %v604 = vpop.f32.mrf.mxu0
        %v605 = vadd.f32 %v411, %v604
        %v606 = vpop.f32.mrf.mxu0
        %607 = vmatprep.mubr.f32.mxu0 0.0
        %608 = vmatmul.mubr.f32.gmra.mxu0 %v384
        %v609 = vpop.f32.mrf.mxu0
        %v610 = vadd.f32 %v411, %v609
        %v611 = vpop.f32.mrf.mxu0
        %612 = vmatprep.mubr.f32.mxu0 0.0
        %613 = vmatmul.mubr.f32.gmra.mxu0 %v385
        %v614 = vpop.f32.mrf.mxu0
        %v615 = vadd.f32 %v411, %v614
        %v616 = vpop.f32.mrf.mxu0
        %617 = vmatprep.mubr.f32.mxu0 0.0
        %618 = vmatmul.mubr.f32.gmra.mxu0 %v386
        %v619 = vpop.f32.mrf.mxu0
        %v620 = vadd.f32 %v411, %v619
        %v621 = vpop.f32.mrf.mxu0
        %622 = vmatprep.mubr.f32.mxu0 0.0
        %623 = vmatmul.mubr.f32.gmra.mxu0 %v387
        %v624 = vpop.f32.mrf.mxu0
        %v625 = vadd.f32 %v411, %v624
        %v626 = vpop.f32.mrf.mxu0
        %627 = vmatprep.mubr.f32.mxu0 0.0
        %628 = vmatmul.mubr.f32.gmra.mxu0 %v388
        %v629 = vpop.f32.mrf.mxu0
        %v630 = vadd.f32 %v411, %v629
        %v631 = vpop.f32.mrf.mxu0
        %632 = vmatprep.mubr.f32.mxu0 0.0
        %633 = vmatmul.mubr.f32.gmra.mxu0 %v389
        %v634 = vpop.f32.mrf.mxu0
        %v635 = vadd.f32 %v411, %v634
        %v636 = vpop.f32.mrf.mxu0
        %637 = vdwg.mxu0
        %v638 = vmax.f32 %v480, 0.0
        %v639 = vmax.f32 %v485, 0.0
        %v640 = vmax.f32 %v490, 0.0
        %v641 = vmax.f32 %v495, 0.0
        %v642 = vmax.f32 %v500, 0.0
        %v643 = vmax.f32 %v505, 0.0
        %v644 = vmax.f32 %v510, 0.0
        %v645 = vmax.f32 %v515, 0.0
        %v646 = vmax.f32 %v520, 0.0
        %v647 = vmax.f32 %v525, 0.0
        %v648 = vmax.f32 %v530, 0.0
        %v649 = vmax.f32 %v535, 0.0
        %v650 = vmax.f32 %v540, 0.0
        %v651 = vmax.f32 %v545, 0.0
        %v652 = vmax.f32 %v550, 0.0
        %v653 = vmax.f32 %v555, 0.0
        %v654 = vmax.f32 %v560, 0.0
        %v655 = vmax.f32 %v565, 0.0
        %v656 = vmax.f32 %v570, 0.0
        %v657 = vmax.f32 %v575, 0.0
        %v658 = vmax.f32 %v580, 0.0
        %v659 = vmax.f32 %v585, 0.0
        %v660 = vmax.f32 %v590, 0.0
        %v661 = vmax.f32 %v595, 0.0
        %v662 = vmax.f32 %v600, 0.0
        %v663 = vmax.f32 %v605, 0.0
        %v664 = vmax.f32 %v610, 0.0
        %v665 = vmax.f32 %v615, 0.0
        %v666 = vmax.f32 %v620, 0.0
        %v667 = vmax.f32 %v625, 0.0
        %v668 = vmax.f32 %v630, 0.0
        %v669 = vmax.f32 %v635, 0.0
        %s670 = scalar_lea.vmem [#allocation2], 24
        %671 = vst.msk [vmem:[%s670 + $0x1] sm:$0xff] %vm312, %v638
        %672 = vst.msk [vmem:[%s670 + $0x9] sm:$0xff] %vm312, %v639
        %673 = vst.msk [vmem:[%s670 + $0x19] sm:$0xff] %vm312, %v640
        %674 = vst.msk [vmem:[%s670 + $0x21] sm:$0xff] %vm312, %v641
        %675 = vst.msk [vmem:[%s670 + $0x31] sm:$0xff] %vm312, %v642
        %676 = vst.msk [vmem:[%s670 + $0x39] sm:$0xff] %vm312, %v643
        %677 = vst.msk [vmem:[%s670 + $0x49] sm:$0xff] %vm312, %v644
        %678 = vst.msk [vmem:[%s670 + $0x51] sm:$0xff] %vm312, %v645
        %679 = vst.msk [vmem:[%s670 + $0x61] sm:$0xff] %vm312, %v646
        %680 = vst.msk [vmem:[%s670 + $0x69] sm:$0xff] %vm312, %v647
        %681 = vst.msk [vmem:[%s670 + $0x79] sm:$0xff] %vm312, %v648
        %682 = vst.msk [vmem:[%s670 + $0x81] sm:$0xff] %vm312, %v649
        %683 = vst.msk [vmem:[%s670 + $0x91] sm:$0xff] %vm312, %v650
        %684 = vst.msk [vmem:[%s670 + $0x99] sm:$0xff] %vm312, %v651
        %685 = vst.msk [vmem:[%s670 + $0xa9] sm:$0xff] %vm312, %v652
        %686 = vst.msk [vmem:[%s670 + $0xb1] sm:$0xff] %vm312, %v653
        %687 = vst.msk [vmem:[%s670 + $0xc1] sm:$0xff] %vm312, %v654
        %688 = vst.msk [vmem:[%s670 + $0xc9] sm:$0xff] %vm312, %v655
        %689 = vst.msk [vmem:[%s670 + $0xd9] sm:$0xff] %vm312, %v656
        %690 = vst.msk [vmem:[%s670 + $0xe1] sm:$0xff] %vm312, %v657
        %691 = vst.msk [vmem:[%s670 + $0xf1] sm:$0xff] %vm312, %v658
        %692 = vst.msk [vmem:[%s670 + $0xf9] sm:$0xff] %vm312, %v659
        %693 = vst.msk [vmem:[%s670 + $0x109] sm:$0xff] %vm312, %v660
        %694 = vst.msk [vmem:[%s670 + $0x111] sm:$0xff] %vm312, %v661
        %695 = vst.msk [vmem:[%s670 + $0x121] sm:$0xff] %vm312, %v662
        %696 = vst.msk [vmem:[%s670 + $0x129] sm:$0xff] %vm312, %v663
        %697 = vst.msk [vmem:[%s670 + $0x139] sm:$0xff] %vm312, %v664
        %698 = vst.msk [vmem:[%s670 + $0x141] sm:$0xff] %vm312, %v665
        %699 = vst.msk [vmem:[%s670 + $0x151] sm:$0xff] %vm312, %v666
        %700 = vst.msk [vmem:[%s670 + $0x159] sm:$0xff] %vm312, %v667
        %701 = vst.msk [vmem:[%s670 + $0x169] sm:$0xff] %vm312, %v668
        %702 = vst.msk [vmem:[%s670 + $0x171] sm:$0xff] %vm312, %v669
        %v703 = vld [vmem:[#allocation6] sm:$0xff]
        %v704 = vld [vmem:[#allocation6 + $0x8] sm:$0xff]
        %v705 = vld [vmem:[#allocation6 + $0x10] sm:$0xff]
        %v706 = vld [vmem:[#allocation6 + $0x18] sm:$0xff]
        %v707 = vld [vmem:[#allocation6 + $0x20] sm:$0xff]
        %v708 = vld [vmem:[#allocation6 + $0x28] sm:$0xff]
        %v709 = vld [vmem:[#allocation6 + $0x30] sm:$0xff]
        %v710 = vld [vmem:[#allocation6 + $0x38] sm:$0xff]
        %v711 = vld [vmem:[#allocation6 + $0x40] sm:$0xff]
        %v712 = vld [vmem:[#allocation6 + $0x48] sm:$0xff]
        %v713 = vld [vmem:[#allocation6 + $0x50] sm:$0xff]
        %v714 = vld [vmem:[#allocation6 + $0x58] sm:$0xff]
        %v715 = vld [vmem:[#allocation6 + $0x60] sm:$0xff]
        %v716 = vld [vmem:[#allocation6 + $0x68] sm:$0xff]
        %v717 = vld [vmem:[#allocation6 + $0x70] sm:$0xff]
        %v718 = vld [vmem:[#allocation6 + $0x78] sm:$0xff]
        %v719 = vld [vmem:[#allocation6 + $0x80] sm:$0xff]
        %v720 = vld [vmem:[#allocation6 + $0x88] sm:$0xff]
        %v721 = vld [vmem:[#allocation6 + $0x90] sm:$0xff]
        %v722 = vld [vmem:[#allocation6 + $0x98] sm:$0xff]
        %v723 = vld [vmem:[#allocation6 + $0xa0] sm:$0xff]
        %v724 = vld [vmem:[#allocation6 + $0xa8] sm:$0xff]
        %v725 = vld [vmem:[#allocation6 + $0xb0] sm:$0xff]
        %v726 = vld [vmem:[#allocation6 + $0xb8] sm:$0xff]
        %v727 = vld [vmem:[#allocation6 + $0xc0] sm:$0xff]
        %v728 = vld [vmem:[#allocation6 + $0xc8] sm:$0xff]
        %v729 = vld [vmem:[#allocation6 + $0xd0] sm:$0xff]
        %v730 = vld [vmem:[#allocation6 + $0xd8] sm:$0xff]
        %v731 = vld [vmem:[#allocation6 + $0xe0] sm:$0xff]
        %v732 = vld [vmem:[#allocation6 + $0xe8] sm:$0xff]
        %v733 = vld [vmem:[#allocation6 + $0xf0] sm:$0xff]
        %v734 = vld [vmem:[#allocation6 + $0xf8] sm:$0xff]
        %v735 = vld [vmem:[#allocation6 + $0x100] sm:$0xff]
        %v736 = vld [vmem:[#allocation6 + $0x108] sm:$0xff]
        %v737 = vld [vmem:[#allocation6 + $0x110] sm:$0xff]
        %v738 = vld [vmem:[#allocation6 + $0x118] sm:$0xff]
        %v739 = vld [vmem:[%s4] sm:$0x1]
        %v740 = vld [vmem:[%s5] sm:$0xff]
        %v741 = vld [vmem:[%s5 + $0x8] sm:$0xff]
        %v742 = vld [vmem:[%s5 + $0x10] sm:$0xff]
        %v743 = vld [vmem:[%s5 + $0x18] sm:$0xff]
        %v744 = vld [vmem:[%s6] sm:$0x1]
        %v746 = vlaneseq
        %v747 = vshrl.u32 %v746, 7
        %v748 = vsub.s32 0, %v747
        %v749 = vrot.slane %v739, %v748
        %v751 = vld [vmem:[#allocation2] sm:$0xff]
        %v752 = vld [vmem:[#allocation2 + $0x8] sm:$0xff]
        %v753 = vld [vmem:[#allocation2 + $0x18] sm:$0xff]
        %v754 = vld [vmem:[#allocation2 + $0x20] sm:$0xff]
        %v755 = vld [vmem:[#allocation2 + $0x30] sm:$0xff]
        %v756 = vld [vmem:[#allocation2 + $0x38] sm:$0xff]
        %v757 = vld [vmem:[#allocation2 + $0x48] sm:$0xff]
        %v758 = vld [vmem:[#allocation2 + $0x50] sm:$0xff]
        %v759 = vld [vmem:[#allocation2 + $0x60] sm:$0xff]
        %v760 = vld [vmem:[#allocation2 + $0x68] sm:$0xff]
        %v761 = vld [vmem:[#allocation2 + $0x78] sm:$0xff]
        %v762 = vld [vmem:[#allocation2 + $0x80] sm:$0xff]
        %v763 = vld [vmem:[#allocation2 + $0x90] sm:$0xff]
        %v764 = vld [vmem:[#allocation2 + $0x98] sm:$0xff]
        %v765 = vld [vmem:[#allocation2 + $0xa8] sm:$0xff]
        %v766 = vld [vmem:[#allocation2 + $0xb0] sm:$0xff]
        %v767 = vld [vmem:[#allocation2 + $0xc0] sm:$0xff]
        %v768 = vld [vmem:[#allocation2 + $0xc8] sm:$0xff]
        %v769 = vld [vmem:[#allocation2 + $0xd8] sm:$0xff]
        %v770 = vld [vmem:[#allocation2 + $0xe0] sm:$0xff]
        %v771 = vld [vmem:[#allocation2 + $0xf0] sm:$0xff]
        %v772 = vld [vmem:[#allocation2 + $0xf8] sm:$0xff]
        %v773 = vld [vmem:[#allocation2 + $0x108] sm:$0xff]
        %v774 = vld [vmem:[#allocation2 + $0x110] sm:$0xff]
        %v775 = vld [vmem:[#allocation2 + $0x120] sm:$0xff]
        %v776 = vld [vmem:[#allocation2 + $0x128] sm:$0xff]
        %v777 = vld [vmem:[#allocation2 + $0x138] sm:$0xff]
        %v778 = vld [vmem:[#allocation2 + $0x140] sm:$0xff]
        %v779 = vld [vmem:[#allocation2 + $0x150] sm:$0xff]
        %v780 = vld [vmem:[#allocation2 + $0x158] sm:$0xff]
        %v781 = vld [vmem:[#allocation2 + $0x168] sm:$0xff]
        %v782 = vld [vmem:[#allocation2 + $0x170] sm:$0xff]
        %v784 = vsel %vm312, %v751, 0
        %v787 = vsel %vm312, %v752, 0
        %v790 = vsel %vm312, %v753, 0
        %v793 = vsel %vm312, %v754, 0
        %v796 = vsel %vm312, %v755, 0
        %v799 = vsel %vm312, %v756, 0
        %v802 = vsel %vm312, %v757, 0
        %v805 = vsel %vm312, %v758, 0
        %v808 = vsel %vm312, %v759, 0
        %v811 = vsel %vm312, %v760, 0
        %v814 = vsel %vm312, %v761, 0
        %v817 = vsel %vm312, %v762, 0
        %v820 = vsel %vm312, %v763, 0
        %v823 = vsel %vm312, %v764, 0
        %v826 = vsel %vm312, %v765, 0
        %v829 = vsel %vm312, %v766, 0
        %v832 = vsel %vm312, %v767, 0
        %v835 = vsel %vm312, %v768, 0
        %v838 = vsel %vm312, %v769, 0
        %v841 = vsel %vm312, %v770, 0
        %v844 = vsel %vm312, %v771, 0
        %v847 = vsel %vm312, %v772, 0
        %v850 = vsel %vm312, %v773, 0
        %v853 = vsel %vm312, %v774, 0
        %v856 = vsel %vm312, %v775, 0
        %v859 = vsel %vm312, %v776, 0
        %v862 = vsel %vm312, %v777, 0
        %v865 = vsel %vm312, %v778, 0
        %v868 = vsel %vm312, %v779, 0
        %v871 = vsel %vm312, %v780, 0
        %v874 = vsel %vm312, %v781, 0
        %v877 = vsel %vm312, %v782, 0
        %879 = vmatprep.subr.mxu0 0.0
        %880 = vmatpush1.msra.mxu0 0.0
        %881 = vmatprep.subr.mxu0 0.0
        %882 = vmatpush1.msra.mxu0 0.0
        %883 = vmatprep.subr.mxu0 0.0
        %884 = vmatpush1.msra.mxu0 0.0
        %885 = vmatprep.subr.mxu0 0.0
        %886 = vmatpush1.msra.mxu0 0.0
        %887 = vmatprep.subr.mxu0 0.0
        %888 = vmatpush1.msra.mxu0 0.0
        %889 = vmatprep.subr.mxu0 0.0
        %890 = vmatpush1.msra.mxu0 0.0
        %891 = vmatprep.subr.mxu0 0.0
        %892 = vmatpush1.msra.mxu0 0.0
        %893 = vmatprep.subr.mxu0 0.0
        %894 = vmatpush1.msra.mxu0 0.0
        %895 = vmatprep.subr.mxu0 0.0
        %896 = vmatpush1.msra.mxu0 0.0
        %897 = vmatprep.subr.mxu0 0.0
        %898 = vmatpush1.msra.mxu0 0.0
        %899 = vmatprep.subr.mxu0 0.0
        %900 = vmatpush1.msra.mxu0 0.0
        %901 = vmatprep.subr.mxu0 0.0
        %902 = vmatpush1.msra.mxu0 0.0
        %903 = vmatprep.subr.mxu0 0.0
        %904 = vmatpush1.msra.mxu0 %v706
        %905 = vmatprep.subr.mxu0 0.0
        %906 = vmatpush1.msra.mxu0 %v705
        %907 = vmatprep.subr.mxu0 0.0
        %908 = vmatpush1.msra.mxu0 %v704
        %909 = vmatprep.subr.mxu0 0.0
        %910 = vmatpush1.msra.mxu0 %v703
        %911 = vmatprep.subr.mxu0 0.0
        %912 = vmatpush2.msra.mxu0 0.0
        %913 = vmatprep.subr.mxu0 0.0
        %914 = vmatpush2.msra.mxu0 0.0
        %915 = vmatprep.subr.mxu0 0.0
        %916 = vmatpush2.msra.mxu0 0.0
        %917 = vmatprep.subr.mxu0 0.0
        %918 = vmatpush2.msra.mxu0 0.0
        %919 = vmatprep.subr.mxu0 0.0
        %920 = vmatpush2.msra.mxu0 0.0
        %921 = vmatprep.subr.mxu0 0.0
        %922 = vmatpush2.msra.mxu0 0.0
        %923 = vmatprep.subr.mxu0 0.0
        %924 = vmatpush2.msra.mxu0 0.0
        %925 = vmatprep.subr.mxu0 0.0
        %926 = vmatpush2.msra.mxu0 0.0
        %927 = vmatprep.subr.mxu0 0.0
        %928 = vmatpush2.msra.mxu0 0.0
        %929 = vmatprep.subr.mxu0 0.0
        %930 = vmatpush2.msra.mxu0 0.0
        %931 = vmatprep.subr.mxu0 0.0
        %932 = vmatpush2.msra.mxu0 0.0
        %933 = vmatprep.subr.mxu0 0.0
        %934 = vmatpush2.msra.mxu0 0.0
        %935 = vmatprep.subr.mxu0 0.0
        %936 = vmatpush2.msra.mxu0 0.0
        %937 = vmatprep.subr.mxu0 0.0
        %938 = vmatpush2.msra.mxu0 0.0
        %939 = vmatprep.subr.mxu0 0.0
        %940 = vmatpush2.msra.mxu0 0.0
        %941 = vmatprep.subr.mxu0 0.0
        %942 = vmatpush2.msra.mxu0 0.0
        %943 = vmatprep.mubr.f32.mxu0 0.0
        %944 = vmatmul.mubr.f32.gmra.mxu0 %v784
        %v945 = vpop.f32.mrf.mxu0
        %v946 = vadd.f32 0.0, %v945
        %v947 = vpop.f32.mrf.mxu0
        %948 = vmatprep.mubr.f32.mxu0 0.0
        %949 = vmatmul.mubr.f32.gmra.mxu0 %v787
        %v950 = vpop.f32.mrf.mxu0
        %v951 = vadd.f32 0.0, %v950
        %v952 = vpop.f32.mrf.mxu0
        %953 = vmatprep.mubr.f32.mxu0 0.0
        %954 = vmatmul.mubr.f32.gmra.mxu0 %v790
        %v955 = vpop.f32.mrf.mxu0
        %v956 = vadd.f32 0.0, %v955
        %v957 = vpop.f32.mrf.mxu0
        %958 = vmatprep.mubr.f32.mxu0 0.0
        %959 = vmatmul.mubr.f32.gmra.mxu0 %v793
        %v960 = vpop.f32.mrf.mxu0
        %v961 = vadd.f32 0.0, %v960
        %v962 = vpop.f32.mrf.mxu0
        %963 = vmatprep.mubr.f32.mxu0 0.0
        %964 = vmatmul.mubr.f32.gmra.mxu0 %v796
        %v965 = vpop.f32.mrf.mxu0
        %v966 = vadd.f32 0.0, %v965
        %v967 = vpop.f32.mrf.mxu0
        %968 = vmatprep.mubr.f32.mxu0 0.0
        %969 = vmatmul.mubr.f32.gmra.mxu0 %v799
        %v970 = vpop.f32.mrf.mxu0
        %v971 = vadd.f32 0.0, %v970
        %v972 = vpop.f32.mrf.mxu0
        %973 = vmatprep.mubr.f32.mxu0 0.0
        %974 = vmatmul.mubr.f32.gmra.mxu0 %v802
        %v975 = vpop.f32.mrf.mxu0
        %v976 = vadd.f32 0.0, %v975
        %v977 = vpop.f32.mrf.mxu0
        %978 = vmatprep.mubr.f32.mxu0 0.0
        %979 = vmatmul.mubr.f32.gmra.mxu0 %v805
        %v980 = vpop.f32.mrf.mxu0
        %v981 = vadd.f32 0.0, %v980
        %v982 = vpop.f32.mrf.mxu0
        %983 = vmatprep.mubr.f32.mxu0 0.0
        %984 = vmatmul.mubr.f32.gmra.mxu0 %v808
        %v985 = vpop.f32.mrf.mxu0
        %v986 = vadd.f32 0.0, %v985
        %v987 = vpop.f32.mrf.mxu0
        %988 = vmatprep.mubr.f32.mxu0 0.0
        %989 = vmatmul.mubr.f32.gmra.mxu0 %v811
        %v990 = vpop.f32.mrf.mxu0
        %v991 = vadd.f32 0.0, %v990
        %v992 = vpop.f32.mrf.mxu0
        %993 = vmatprep.mubr.f32.mxu0 0.0
        %994 = vmatmul.mubr.f32.gmra.mxu0 %v814
        %v995 = vpop.f32.mrf.mxu0
        %v996 = vadd.f32 0.0, %v995
        %v997 = vpop.f32.mrf.mxu0
        %998 = vmatprep.mubr.f32.mxu0 0.0
        %999 = vmatmul.mubr.f32.gmra.mxu0 %v817
        %v1000 = vpop.f32.mrf.mxu0
        %v1001 = vadd.f32 0.0, %v1000
        %v1002 = vpop.f32.mrf.mxu0
        %1003 = vmatprep.mubr.f32.mxu0 0.0
        %1004 = vmatmul.mubr.f32.gmra.mxu0 %v820
        %v1005 = vpop.f32.mrf.mxu0
        %v1006 = vadd.f32 0.0, %v1005
        %v1007 = vpop.f32.mrf.mxu0
        %1008 = vmatprep.mubr.f32.mxu0 0.0
        %1009 = vmatmul.mubr.f32.gmra.mxu0 %v823
        %v1010 = vpop.f32.mrf.mxu0
        %v1011 = vadd.f32 0.0, %v1010
        %v1012 = vpop.f32.mrf.mxu0
        %1013 = vmatprep.mubr.f32.mxu0 0.0
        %1014 = vmatmul.mubr.f32.gmra.mxu0 %v826
        %v1015 = vpop.f32.mrf.mxu0
        %v1016 = vadd.f32 0.0, %v1015
        %v1017 = vpop.f32.mrf.mxu0
        %1018 = vmatprep.mubr.f32.mxu0 0.0
        %1019 = vmatmul.mubr.f32.gmra.mxu0 %v829
        %v1020 = vpop.f32.mrf.mxu0
        %v1021 = vadd.f32 0.0, %v1020
        %v1022 = vpop.f32.mrf.mxu0
        %1023 = vmatprep.mubr.f32.mxu0 0.0
        %1024 = vmatmul.mubr.f32.gmra.mxu0 %v832
        %v1025 = vpop.f32.mrf.mxu0
        %v1026 = vadd.f32 0.0, %v1025
        %v1027 = vpop.f32.mrf.mxu0
        %1028 = vmatprep.mubr.f32.mxu0 0.0
        %1029 = vmatmul.mubr.f32.gmra.mxu0 %v835
        %v1030 = vpop.f32.mrf.mxu0
        %v1031 = vadd.f32 0.0, %v1030
        %v1032 = vpop.f32.mrf.mxu0
        %1033 = vmatprep.mubr.f32.mxu0 0.0
        %1034 = vmatmul.mubr.f32.gmra.mxu0 %v838
        %v1035 = vpop.f32.mrf.mxu0
        %v1036 = vadd.f32 0.0, %v1035
        %v1037 = vpop.f32.mrf.mxu0
        %1038 = vmatprep.mubr.f32.mxu0 0.0
        %1039 = vmatmul.mubr.f32.gmra.mxu0 %v841
        %v1040 = vpop.f32.mrf.mxu0
        %v1041 = vadd.f32 0.0, %v1040
        %v1042 = vpop.f32.mrf.mxu0
        %1043 = vmatprep.mubr.f32.mxu0 0.0
        %1044 = vmatmul.mubr.f32.gmra.mxu0 %v844
        %v1045 = vpop.f32.mrf.mxu0
        %v1046 = vadd.f32 0.0, %v1045
        %v1047 = vpop.f32.mrf.mxu0
        %1048 = vmatprep.mubr.f32.mxu0 0.0
        %1049 = vmatmul.mubr.f32.gmra.mxu0 %v847
        %v1050 = vpop.f32.mrf.mxu0
        %v1051 = vadd.f32 0.0, %v1050
        %v1052 = vpop.f32.mrf.mxu0
        %1053 = vmatprep.mubr.f32.mxu0 0.0
        %1054 = vmatmul.mubr.f32.gmra.mxu0 %v850
        %v1055 = vpop.f32.mrf.mxu0
        %v1056 = vadd.f32 0.0, %v1055
        %v1057 = vpop.f32.mrf.mxu0
        %1058 = vmatprep.mubr.f32.mxu0 0.0
        %1059 = vmatmul.mubr.f32.gmra.mxu0 %v853
        %v1060 = vpop.f32.mrf.mxu0
        %v1061 = vadd.f32 0.0, %v1060
        %v1062 = vpop.f32.mrf.mxu0
        %1063 = vmatprep.mubr.f32.mxu0 0.0
        %1064 = vmatmul.mubr.f32.gmra.mxu0 %v856
        %v1065 = vpop.f32.mrf.mxu0
        %v1066 = vadd.f32 0.0, %v1065
        %v1067 = vpop.f32.mrf.mxu0
        %1068 = vmatprep.mubr.f32.mxu0 0.0
        %1069 = vmatmul.mubr.f32.gmra.mxu0 %v859
        %v1070 = vpop.f32.mrf.mxu0
        %v1071 = vadd.f32 0.0, %v1070
        %v1072 = vpop.f32.mrf.mxu0
        %1073 = vmatprep.mubr.f32.mxu0 0.0
        %1074 = vmatmul.mubr.f32.gmra.mxu0 %v862
        %v1075 = vpop.f32.mrf.mxu0
        %v1076 = vadd.f32 0.0, %v1075
        %v1077 = vpop.f32.mrf.mxu0
        %1078 = vmatprep.mubr.f32.mxu0 0.0
        %1079 = vmatmul.mubr.f32.gmra.mxu0 %v865
        %v1080 = vpop.f32.mrf.mxu0
        %v1081 = vadd.f32 0.0, %v1080
        %v1082 = vpop.f32.mrf.mxu0
        %1083 = vmatprep.mubr.f32.mxu0 0.0
        %1084 = vmatmul.mubr.f32.gmra.mxu0 %v868
        %v1085 = vpop.f32.mrf.mxu0
        %v1086 = vadd.f32 0.0, %v1085
        %v1087 = vpop.f32.mrf.mxu0
        %1088 = vmatprep.mubr.f32.mxu0 0.0
        %1089 = vmatmul.mubr.f32.gmra.mxu0 %v871
        %v1090 = vpop.f32.mrf.mxu0
        %v1091 = vadd.f32 0.0, %v1090
        %v1092 = vpop.f32.mrf.mxu0
        %1093 = vmatprep.mubr.f32.mxu0 0.0
        %1094 = vmatmul.mubr.f32.gmra.mxu0 %v874
        %v1095 = vpop.f32.mrf.mxu0
        %v1096 = vadd.f32 0.0, %v1095
        %v1097 = vpop.f32.mrf.mxu0
        %1098 = vmatprep.mubr.f32.mxu0 0.0
        %1099 = vmatmul.mubr.f32.gmra.mxu0 %v877
        %v1100 = vpop.f32.mrf.mxu0
        %v1101 = vadd.f32 0.0, %v1100
        %v1102 = vpop.f32.mrf.mxu0
        %1103 = vdwg.mxu0
        %v1104 = vadd.f32 %v749, %v946
        %v1105 = vadd.f32 %v749, %v951
        %v1106 = vadd.f32 %v749, %v956
        %v1107 = vadd.f32 %v749, %v961
        %v1108 = vadd.f32 %v749, %v966
        %v1109 = vadd.f32 %v749, %v971
        %v1110 = vadd.f32 %v749, %v976
        %v1111 = vadd.f32 %v749, %v981
        %v1112 = vadd.f32 %v749, %v986
        %v1113 = vadd.f32 %v749, %v991
        %v1114 = vadd.f32 %v749, %v996
        %v1115 = vadd.f32 %v749, %v1001
        %v1116 = vadd.f32 %v749, %v1006
        %v1117 = vadd.f32 %v749, %v1011
        %v1118 = vadd.f32 %v749, %v1016
        %v1119 = vadd.f32 %v749, %v1021
        %v1120 = vadd.f32 %v749, %v1026
        %v1121 = vadd.f32 %v749, %v1031
        %v1122 = vadd.f32 %v749, %v1036
        %v1123 = vadd.f32 %v749, %v1041
        %v1124 = vadd.f32 %v749, %v1046
        %v1125 = vadd.f32 %v749, %v1051
        %v1126 = vadd.f32 %v749, %v1056
        %v1127 = vadd.f32 %v749, %v1061
        %v1128 = vadd.f32 %v749, %v1066
        %v1129 = vadd.f32 %v749, %v1071
        %v1130 = vadd.f32 %v749, %v1076
        %v1131 = vadd.f32 %v749, %v1081
        %v1132 = vadd.f32 %v749, %v1086
        %v1133 = vadd.f32 %v749, %v1091
        %v1134 = vadd.f32 %v749, %v1096
        %v1135 = vadd.f32 %v749, %v1101
        %v1136 = vld [vmem:[#allocation2 + $0x1] sm:$0xff]
        %v1137 = vld [vmem:[#allocation2 + $0x9] sm:$0xff]
        %v1138 = vld [vmem:[#allocation2 + $0x19] sm:$0xff]
        %v1139 = vld [vmem:[#allocation2 + $0x21] sm:$0xff]
        %v1140 = vld [vmem:[#allocation2 + $0x31] sm:$0xff]
        %v1141 = vld [vmem:[#allocation2 + $0x39] sm:$0xff]
        %v1142 = vld [vmem:[#allocation2 + $0x49] sm:$0xff]
        %v1143 = vld [vmem:[#allocation2 + $0x51] sm:$0xff]
        %v1144 = vld [vmem:[#allocation2 + $0x61] sm:$0xff]
        %v1145 = vld [vmem:[#allocation2 + $0x69] sm:$0xff]
        %v1146 = vld [vmem:[#allocation2 + $0x79] sm:$0xff]
        %v1147 = vld [vmem:[#allocation2 + $0x81] sm:$0xff]
        %v1148 = vld [vmem:[#allocation2 + $0x91] sm:$0xff]
        %v1149 = vld [vmem:[#allocation2 + $0x99] sm:$0xff]
        %v1150 = vld [vmem:[#allocation2 + $0xa9] sm:$0xff]
        %v1151 = vld [vmem:[#allocation2 + $0xb1] sm:$0xff]
        %v1152 = vld [vmem:[#allocation2 + $0xc1] sm:$0xff]
        %v1153 = vld [vmem:[#allocation2 + $0xc9] sm:$0xff]
        %v1154 = vld [vmem:[#allocation2 + $0xd9] sm:$0xff]
        %v1155 = vld [vmem:[#allocation2 + $0xe1] sm:$0xff]
        %v1156 = vld [vmem:[#allocation2 + $0xf1] sm:$0xff]
        %v1157 = vld [vmem:[#allocation2 + $0xf9] sm:$0xff]
        %v1158 = vld [vmem:[#allocation2 + $0x109] sm:$0xff]
        %v1159 = vld [vmem:[#allocation2 + $0x111] sm:$0xff]
        %v1160 = vld [vmem:[#allocation2 + $0x121] sm:$0xff]
        %v1161 = vld [vmem:[#allocation2 + $0x129] sm:$0xff]
        %v1162 = vld [vmem:[#allocation2 + $0x139] sm:$0xff]
        %v1163 = vld [vmem:[#allocation2 + $0x141] sm:$0xff]
        %v1164 = vld [vmem:[#allocation2 + $0x151] sm:$0xff]
        %v1165 = vld [vmem:[#allocation2 + $0x159] sm:$0xff]
        %v1166 = vld [vmem:[#allocation2 + $0x169] sm:$0xff]
        %v1167 = vld [vmem:[#allocation2 + $0x171] sm:$0xff]
        %v1169 = vsel %vm312, %v1136, 0
        %v1172 = vsel %vm312, %v1137, 0
        %v1175 = vsel %vm312, %v1138, 0
        %v1178 = vsel %vm312, %v1139, 0
        %v1181 = vsel %vm312, %v1140, 0
        %v1184 = vsel %vm312, %v1141, 0
        %v1187 = vsel %vm312, %v1142, 0
        %v1190 = vsel %vm312, %v1143, 0
        %v1193 = vsel %vm312, %v1144, 0
        %v1196 = vsel %vm312, %v1145, 0
        %v1199 = vsel %vm312, %v1146, 0
        %v1202 = vsel %vm312, %v1147, 0
        %v1205 = vsel %vm312, %v1148, 0
        %v1208 = vsel %vm312, %v1149, 0
        %v1211 = vsel %vm312, %v1150, 0
        %v1214 = vsel %vm312, %v1151, 0
        %v1217 = vsel %vm312, %v1152, 0
        %v1220 = vsel %vm312, %v1153, 0
        %v1223 = vsel %vm312, %v1154, 0
        %v1226 = vsel %vm312, %v1155, 0
        %v1229 = vsel %vm312, %v1156, 0
        %v1232 = vsel %vm312, %v1157, 0
        %v1235 = vsel %vm312, %v1158, 0
        %v1238 = vsel %vm312, %v1159, 0
        %v1241 = vsel %vm312, %v1160, 0
        %v1244 = vsel %vm312, %v1161, 0
        %v1247 = vsel %vm312, %v1162, 0
        %v1250 = vsel %vm312, %v1163, 0
        %v1253 = vsel %vm312, %v1164, 0
        %v1256 = vsel %vm312, %v1165, 0
        %v1259 = vsel %vm312, %v1166, 0
        %v1262 = vsel %vm312, %v1167, 0
        %1264 = vmatprep.subr.mxu0 0.0
        %1265 = vmatpush1.msra.mxu0 0.0
        %1266 = vmatprep.subr.mxu0 0.0
        %1267 = vmatpush1.msra.mxu0 0.0
        %1268 = vmatprep.subr.mxu0 0.0
        %1269 = vmatpush1.msra.mxu0 0.0
        %1270 = vmatprep.subr.mxu0 0.0
        %1271 = vmatpush1.msra.mxu0 0.0
        %1272 = vmatprep.subr.mxu0 0.0
        %1273 = vmatpush1.msra.mxu0 0.0
        %1274 = vmatprep.subr.mxu0 0.0
        %1275 = vmatpush1.msra.mxu0 0.0
        %1276 = vmatprep.subr.mxu0 0.0
        %1277 = vmatpush1.msra.mxu0 0.0
        %1278 = vmatprep.subr.mxu0 0.0
        %1279 = vmatpush1.msra.mxu0 0.0
        %1280 = vmatprep.subr.mxu0 0.0
        %1281 = vmatpush1.msra.mxu0 0.0
        %1282 = vmatprep.subr.mxu0 0.0
        %1283 = vmatpush1.msra.mxu0 0.0
        %1284 = vmatprep.subr.mxu0 0.0
        %1285 = vmatpush1.msra.mxu0 0.0
        %1286 = vmatprep.subr.mxu0 0.0
        %1287 = vmatpush1.msra.mxu0 0.0
        %1288 = vmatprep.subr.mxu0 0.0
        %1289 = vmatpush1.msra.mxu0 %v710
        %1290 = vmatprep.subr.mxu0 0.0
        %1291 = vmatpush1.msra.mxu0 %v709
        %1292 = vmatprep.subr.mxu0 0.0
        %1293 = vmatpush1.msra.mxu0 %v708
        %1294 = vmatprep.subr.mxu0 0.0
        %1295 = vmatpush1.msra.mxu0 %v707
        %1296 = vmatprep.subr.mxu0 0.0
        %1297 = vmatpush2.msra.mxu0 0.0
        %1298 = vmatprep.subr.mxu0 0.0
        %1299 = vmatpush2.msra.mxu0 0.0
        %1300 = vmatprep.subr.mxu0 0.0
        %1301 = vmatpush2.msra.mxu0 0.0
        %1302 = vmatprep.subr.mxu0 0.0
        %1303 = vmatpush2.msra.mxu0 0.0
        %1304 = vmatprep.subr.mxu0 0.0
        %1305 = vmatpush2.msra.mxu0 0.0
        %1306 = vmatprep.subr.mxu0 0.0
        %1307 = vmatpush2.msra.mxu0 0.0
        %1308 = vmatprep.subr.mxu0 0.0
        %1309 = vmatpush2.msra.mxu0 0.0
        %1310 = vmatprep.subr.mxu0 0.0
        %1311 = vmatpush2.msra.mxu0 0.0
        %1312 = vmatprep.subr.mxu0 0.0
        %1313 = vmatpush2.msra.mxu0 0.0
        %1314 = vmatprep.subr.mxu0 0.0
        %1315 = vmatpush2.msra.mxu0 0.0
        %1316 = vmatprep.subr.mxu0 0.0
        %1317 = vmatpush2.msra.mxu0 0.0
        %1318 = vmatprep.subr.mxu0 0.0
        %1319 = vmatpush2.msra.mxu0 0.0
        %1320 = vmatprep.subr.mxu0 0.0
        %1321 = vmatpush2.msra.mxu0 0.0
        %1322 = vmatprep.subr.mxu0 0.0
        %1323 = vmatpush2.msra.mxu0 0.0
        %1324 = vmatprep.subr.mxu0 0.0
        %1325 = vmatpush2.msra.mxu0 0.0
        %1326 = vmatprep.subr.mxu0 0.0
        %1327 = vmatpush2.msra.mxu0 0.0
        %1328 = vmatprep.mubr.f32.mxu0 0.0
        %1329 = vmatmul.mubr.f32.gmra.mxu0 %v1169
        %v1330 = vpop.f32.mrf.mxu0
        %v1331 = vadd.f32 0.0, %v1330
        %v1332 = vpop.f32.mrf.mxu0
        %1333 = vmatprep.mubr.f32.mxu0 0.0
        %1334 = vmatmul.mubr.f32.gmra.mxu0 %v1172
        %v1335 = vpop.f32.mrf.mxu0
        %v1336 = vadd.f32 0.0, %v1335
        %v1337 = vpop.f32.mrf.mxu0
        %1338 = vmatprep.mubr.f32.mxu0 0.0
        %1339 = vmatmul.mubr.f32.gmra.mxu0 %v1175
        %v1340 = vpop.f32.mrf.mxu0
        %v1341 = vadd.f32 0.0, %v1340
        %v1342 = vpop.f32.mrf.mxu0
        %1343 = vmatprep.mubr.f32.mxu0 0.0
        %1344 = vmatmul.mubr.f32.gmra.mxu0 %v1178
        %v1345 = vpop.f32.mrf.mxu0
        %v1346 = vadd.f32 0.0, %v1345
        %v1347 = vpop.f32.mrf.mxu0
        %1348 = vmatprep.mubr.f32.mxu0 0.0
        %1349 = vmatmul.mubr.f32.gmra.mxu0 %v1181
        %v1350 = vpop.f32.mrf.mxu0
        %v1351 = vadd.f32 0.0, %v1350
        %v1352 = vpop.f32.mrf.mxu0
        %1353 = vmatprep.mubr.f32.mxu0 0.0
        %1354 = vmatmul.mubr.f32.gmra.mxu0 %v1184
        %v1355 = vpop.f32.mrf.mxu0
        %v1356 = vadd.f32 0.0, %v1355
        %v1357 = vpop.f32.mrf.mxu0
        %1358 = vmatprep.mubr.f32.mxu0 0.0
        %1359 = vmatmul.mubr.f32.gmra.mxu0 %v1187
        %v1360 = vpop.f32.mrf.mxu0
        %v1361 = vadd.f32 0.0, %v1360
        %v1362 = vpop.f32.mrf.mxu0
        %1363 = vmatprep.mubr.f32.mxu0 0.0
        %1364 = vmatmul.mubr.f32.gmra.mxu0 %v1190
        %v1365 = vpop.f32.mrf.mxu0
        %v1366 = vadd.f32 0.0, %v1365
        %v1367 = vpop.f32.mrf.mxu0
        %1368 = vmatprep.mubr.f32.mxu0 0.0
        %1369 = vmatmul.mubr.f32.gmra.mxu0 %v1193
        %v1370 = vpop.f32.mrf.mxu0
        %v1371 = vadd.f32 0.0, %v1370
        %v1372 = vpop.f32.mrf.mxu0
        %1373 = vmatprep.mubr.f32.mxu0 0.0
        %1374 = vmatmul.mubr.f32.gmra.mxu0 %v1196
        %v1375 = vpop.f32.mrf.mxu0
        %v1376 = vadd.f32 0.0, %v1375
        %v1377 = vpop.f32.mrf.mxu0
        %1378 = vmatprep.mubr.f32.mxu0 0.0
        %1379 = vmatmul.mubr.f32.gmra.mxu0 %v1199
        %v1380 = vpop.f32.mrf.mxu0
        %v1381 = vadd.f32 0.0, %v1380
        %v1382 = vpop.f32.mrf.mxu0
        %1383 = vmatprep.mubr.f32.mxu0 0.0
        %1384 = vmatmul.mubr.f32.gmra.mxu0 %v1202
        %v1385 = vpop.f32.mrf.mxu0
        %v1386 = vadd.f32 0.0, %v1385
        %v1387 = vpop.f32.mrf.mxu0
        %1388 = vmatprep.mubr.f32.mxu0 0.0
        %1389 = vmatmul.mubr.f32.gmra.mxu0 %v1205
        %v1390 = vpop.f32.mrf.mxu0
        %v1391 = vadd.f32 0.0, %v1390
        %v1392 = vpop.f32.mrf.mxu0
        %1393 = vmatprep.mubr.f32.mxu0 0.0
        %1394 = vmatmul.mubr.f32.gmra.mxu0 %v1208
        %v1395 = vpop.f32.mrf.mxu0
        %v1396 = vadd.f32 0.0, %v1395
        %v1397 = vpop.f32.mrf.mxu0
        %1398 = vmatprep.mubr.f32.mxu0 0.0
        %1399 = vmatmul.mubr.f32.gmra.mxu0 %v1211
        %v1400 = vpop.f32.mrf.mxu0
        %v1401 = vadd.f32 0.0, %v1400
        %v1402 = vpop.f32.mrf.mxu0
        %1403 = vmatprep.mubr.f32.mxu0 0.0
        %1404 = vmatmul.mubr.f32.gmra.mxu0 %v1214
        %v1405 = vpop.f32.mrf.mxu0
        %v1406 = vadd.f32 0.0, %v1405
        %v1407 = vpop.f32.mrf.mxu0
        %1408 = vmatprep.mubr.f32.mxu0 0.0
        %1409 = vmatmul.mubr.f32.gmra.mxu0 %v1217
        %v1410 = vpop.f32.mrf.mxu0
        %v1411 = vadd.f32 0.0, %v1410
        %v1412 = vpop.f32.mrf.mxu0
        %1413 = vmatprep.mubr.f32.mxu0 0.0
        %1414 = vmatmul.mubr.f32.gmra.mxu0 %v1220
        %v1415 = vpop.f32.mrf.mxu0
        %v1416 = vadd.f32 0.0, %v1415
        %v1417 = vpop.f32.mrf.mxu0
        %1418 = vmatprep.mubr.f32.mxu0 0.0
        %1419 = vmatmul.mubr.f32.gmra.mxu0 %v1223
        %v1420 = vpop.f32.mrf.mxu0
        %v1421 = vadd.f32 0.0, %v1420
        %v1422 = vpop.f32.mrf.mxu0
        %1423 = vmatprep.mubr.f32.mxu0 0.0
        %1424 = vmatmul.mubr.f32.gmra.mxu0 %v1226
        %v1425 = vpop.f32.mrf.mxu0
        %v1426 = vadd.f32 0.0, %v1425
        %v1427 = vpop.f32.mrf.mxu0
        %1428 = vmatprep.mubr.f32.mxu0 0.0
        %1429 = vmatmul.mubr.f32.gmra.mxu0 %v1229
        %v1430 = vpop.f32.mrf.mxu0
        %v1431 = vadd.f32 0.0, %v1430
        %v1432 = vpop.f32.mrf.mxu0
        %1433 = vmatprep.mubr.f32.mxu0 0.0
        %1434 = vmatmul.mubr.f32.gmra.mxu0 %v1232
        %v1435 = vpop.f32.mrf.mxu0
        %v1436 = vadd.f32 0.0, %v1435
        %v1437 = vpop.f32.mrf.mxu0
        %1438 = vmatprep.mubr.f32.mxu0 0.0
        %1439 = vmatmul.mubr.f32.gmra.mxu0 %v1235
        %v1440 = vpop.f32.mrf.mxu0
        %v1441 = vadd.f32 0.0, %v1440
        %v1442 = vpop.f32.mrf.mxu0
        %1443 = vmatprep.mubr.f32.mxu0 0.0
        %1444 = vmatmul.mubr.f32.gmra.mxu0 %v1238
        %v1445 = vpop.f32.mrf.mxu0
        %v1446 = vadd.f32 0.0, %v1445
        %v1447 = vpop.f32.mrf.mxu0
        %1448 = vmatprep.mubr.f32.mxu0 0.0
        %1449 = vmatmul.mubr.f32.gmra.mxu0 %v1241
        %v1450 = vpop.f32.mrf.mxu0
        %v1451 = vadd.f32 0.0, %v1450
        %v1452 = vpop.f32.mrf.mxu0
        %1453 = vmatprep.mubr.f32.mxu0 0.0
        %1454 = vmatmul.mubr.f32.gmra.mxu0 %v1244
        %v1455 = vpop.f32.mrf.mxu0
        %v1456 = vadd.f32 0.0, %v1455
        %v1457 = vpop.f32.mrf.mxu0
        %1458 = vmatprep.mubr.f32.mxu0 0.0
        %1459 = vmatmul.mubr.f32.gmra.mxu0 %v1247
        %v1460 = vpop.f32.mrf.mxu0
        %v1461 = vadd.f32 0.0, %v1460
        %v1462 = vpop.f32.mrf.mxu0
        %1463 = vmatprep.mubr.f32.mxu0 0.0
        %1464 = vmatmul.mubr.f32.gmra.mxu0 %v1250
        %v1465 = vpop.f32.mrf.mxu0
        %v1466 = vadd.f32 0.0, %v1465
        %v1467 = vpop.f32.mrf.mxu0
        %1468 = vmatprep.mubr.f32.mxu0 0.0
        %1469 = vmatmul.mubr.f32.gmra.mxu0 %v1253
        %v1470 = vpop.f32.mrf.mxu0
        %v1471 = vadd.f32 0.0, %v1470
        %v1472 = vpop.f32.mrf.mxu0
        %1473 = vmatprep.mubr.f32.mxu0 0.0
        %1474 = vmatmul.mubr.f32.gmra.mxu0 %v1256
        %v1475 = vpop.f32.mrf.mxu0
        %v1476 = vadd.f32 0.0, %v1475
        %v1477 = vpop.f32.mrf.mxu0
        %1478 = vmatprep.mubr.f32.mxu0 0.0
        %1479 = vmatmul.mubr.f32.gmra.mxu0 %v1259
        %v1480 = vpop.f32.mrf.mxu0
        %v1481 = vadd.f32 0.0, %v1480
        %v1482 = vpop.f32.mrf.mxu0
        %1483 = vmatprep.mubr.f32.mxu0 0.0
        %1484 = vmatmul.mubr.f32.gmra.mxu0 %v1262
        %v1485 = vpop.f32.mrf.mxu0
        %v1486 = vadd.f32 0.0, %v1485
        %v1487 = vpop.f32.mrf.mxu0
        %1488 = vdwg.mxu0
        %v1489 = vadd.f32 %v1104, %v1331
        %v1490 = vadd.f32 %v1105, %v1336
        %v1491 = vadd.f32 %v1106, %v1341
        %v1492 = vadd.f32 %v1107, %v1346
        %v1493 = vadd.f32 %v1108, %v1351
        %v1494 = vadd.f32 %v1109, %v1356
        %v1495 = vadd.f32 %v1110, %v1361
        %v1496 = vadd.f32 %v1111, %v1366
        %v1497 = vadd.f32 %v1112, %v1371
        %v1498 = vadd.f32 %v1113, %v1376
        %v1499 = vadd.f32 %v1114, %v1381
        %v1500 = vadd.f32 %v1115, %v1386
        %v1501 = vadd.f32 %v1116, %v1391
        %v1502 = vadd.f32 %v1117, %v1396
        %v1503 = vadd.f32 %v1118, %v1401
        %v1504 = vadd.f32 %v1119, %v1406
        %v1505 = vadd.f32 %v1120, %v1411
        %v1506 = vadd.f32 %v1121, %v1416
        %v1507 = vadd.f32 %v1122, %v1421
        %v1508 = vadd.f32 %v1123, %v1426
        %v1509 = vadd.f32 %v1124, %v1431
        %v1510 = vadd.f32 %v1125, %v1436
        %v1511 = vadd.f32 %v1126, %v1441
        %v1512 = vadd.f32 %v1127, %v1446
        %v1513 = vadd.f32 %v1128, %v1451
        %v1514 = vadd.f32 %v1129, %v1456
        %v1515 = vadd.f32 %v1130, %v1461
        %v1516 = vadd.f32 %v1131, %v1466
        %v1517 = vadd.f32 %v1132, %v1471
        %v1518 = vadd.f32 %v1133, %v1476
        %v1519 = vadd.f32 %v1134, %v1481
        %v1520 = vadd.f32 %v1135, %v1486
        %v1521 = vld [vmem:[#allocation2 + $0x2] sm:$0xff]
        %v1522 = vld [vmem:[#allocation2 + $0xa] sm:$0xff]
        %v1523 = vld [vmem:[#allocation2 + $0x1a] sm:$0xff]
        %v1524 = vld [vmem:[#allocation2 + $0x22] sm:$0xff]
        %v1525 = vld [vmem:[#allocation2 + $0x32] sm:$0xff]
        %v1526 = vld [vmem:[#allocation2 + $0x3a] sm:$0xff]
        %v1527 = vld [vmem:[#allocation2 + $0x4a] sm:$0xff]
        %v1528 = vld [vmem:[#allocation2 + $0x52] sm:$0xff]
        %v1529 = vld [vmem:[#allocation2 + $0x62] sm:$0xff]
        %v1530 = vld [vmem:[#allocation2 + $0x6a] sm:$0xff]
        %v1531 = vld [vmem:[#allocation2 + $0x7a] sm:$0xff]
        %v1532 = vld [vmem:[#allocation2 + $0x82] sm:$0xff]
        %v1533 = vld [vmem:[#allocation2 + $0x92] sm:$0xff]
        %v1534 = vld [vmem:[#allocation2 + $0x9a] sm:$0xff]
        %v1535 = vld [vmem:[#allocation2 + $0xaa] sm:$0xff]
        %v1536 = vld [vmem:[#allocation2 + $0xb2] sm:$0xff]
        %v1537 = vld [vmem:[#allocation2 + $0xc2] sm:$0xff]
        %v1538 = vld [vmem:[#allocation2 + $0xca] sm:$0xff]
        %v1539 = vld [vmem:[#allocation2 + $0xda] sm:$0xff]
        %v1540 = vld [vmem:[#allocation2 + $0xe2] sm:$0xff]
        %v1541 = vld [vmem:[#allocation2 + $0xf2] sm:$0xff]
        %v1542 = vld [vmem:[#allocation2 + $0xfa] sm:$0xff]
        %v1543 = vld [vmem:[#allocation2 + $0x10a] sm:$0xff]
        %v1544 = vld [vmem:[#allocation2 + $0x112] sm:$0xff]
        %v1545 = vld [vmem:[#allocation2 + $0x122] sm:$0xff]
        %v1546 = vld [vmem:[#allocation2 + $0x12a] sm:$0xff]
        %v1547 = vld [vmem:[#allocation2 + $0x13a] sm:$0xff]
        %v1548 = vld [vmem:[#allocation2 + $0x142] sm:$0xff]
        %v1549 = vld [vmem:[#allocation2 + $0x152] sm:$0xff]
        %v1550 = vld [vmem:[#allocation2 + $0x15a] sm:$0xff]
        %v1551 = vld [vmem:[#allocation2 + $0x16a] sm:$0xff]
        %v1552 = vld [vmem:[#allocation2 + $0x172] sm:$0xff]
        %v1554 = vsel %vm312, %v1521, 0
        %v1557 = vsel %vm312, %v1522, 0
        %v1560 = vsel %vm312, %v1523, 0
        %v1563 = vsel %vm312, %v1524, 0
        %v1566 = vsel %vm312, %v1525, 0
        %v1569 = vsel %vm312, %v1526, 0
        %v1572 = vsel %vm312, %v1527, 0
        %v1575 = vsel %vm312, %v1528, 0
        %v1578 = vsel %vm312, %v1529, 0
        %v1581 = vsel %vm312, %v1530, 0
        %v1584 = vsel %vm312, %v1531, 0
        %v1587 = vsel %vm312, %v1532, 0
        %v1590 = vsel %vm312, %v1533, 0
        %v1593 = vsel %vm312, %v1534, 0
        %v1596 = vsel %vm312, %v1535, 0
        %v1599 = vsel %vm312, %v1536, 0
        %v1602 = vsel %vm312, %v1537, 0
        %v1605 = vsel %vm312, %v1538, 0
        %v1608 = vsel %vm312, %v1539, 0
        %v1611 = vsel %vm312, %v1540, 0
        %v1614 = vsel %vm312, %v1541, 0
        %v1617 = vsel %vm312, %v1542, 0
        %v1620 = vsel %vm312, %v1543, 0
        %v1623 = vsel %vm312, %v1544, 0
        %v1626 = vsel %vm312, %v1545, 0
        %v1629 = vsel %vm312, %v1546, 0
        %v1632 = vsel %vm312, %v1547, 0
        %v1635 = vsel %vm312, %v1548, 0
        %v1638 = vsel %vm312, %v1549, 0
        %v1641 = vsel %vm312, %v1550, 0
        %v1644 = vsel %vm312, %v1551, 0
        %v1647 = vsel %vm312, %v1552, 0
        %1649 = vmatprep.subr.mxu0 0.0
        %1650 = vmatpush1.msra.mxu0 0.0
        %1651 = vmatprep.subr.mxu0 0.0
        %1652 = vmatpush1.msra.mxu0 0.0
        %1653 = vmatprep.subr.mxu0 0.0
        %1654 = vmatpush1.msra.mxu0 0.0
        %1655 = vmatprep.subr.mxu0 0.0
        %1656 = vmatpush1.msra.mxu0 0.0
        %1657 = vmatprep.subr.mxu0 0.0
        %1658 = vmatpush1.msra.mxu0 0.0
        %1659 = vmatprep.subr.mxu0 0.0
        %1660 = vmatpush1.msra.mxu0 0.0
        %1661 = vmatprep.subr.mxu0 0.0
        %1662 = vmatpush1.msra.mxu0 0.0
        %1663 = vmatprep.subr.mxu0 0.0
        %1664 = vmatpush1.msra.mxu0 0.0
        %1665 = vmatprep.subr.mxu0 0.0
        %1666 = vmatpush1.msra.mxu0 0.0
        %1667 = vmatprep.subr.mxu0 0.0
        %1668 = vmatpush1.msra.mxu0 0.0
        %1669 = vmatprep.subr.mxu0 0.0
        %1670 = vmatpush1.msra.mxu0 0.0
        %1671 = vmatprep.subr.mxu0 0.0
        %1672 = vmatpush1.msra.mxu0 0.0
        %1673 = vmatprep.subr.mxu0 0.0
        %1674 = vmatpush1.msra.mxu0 %v714
        %1675 = vmatprep.subr.mxu0 0.0
        %1676 = vmatpush1.msra.mxu0 %v713
        %1677 = vmatprep.subr.mxu0 0.0
        %1678 = vmatpush1.msra.mxu0 %v712
        %1679 = vmatprep.subr.mxu0 0.0
        %1680 = vmatpush1.msra.mxu0 %v711
        %1681 = vmatprep.subr.mxu0 0.0
        %1682 = vmatpush2.msra.mxu0 0.0
        %1683 = vmatprep.subr.mxu0 0.0
        %1684 = vmatpush2.msra.mxu0 0.0
        %1685 = vmatprep.subr.mxu0 0.0
        %1686 = vmatpush2.msra.mxu0 0.0
        %1687 = vmatprep.subr.mxu0 0.0
        %1688 = vmatpush2.msra.mxu0 0.0
        %1689 = vmatprep.subr.mxu0 0.0
        %1690 = vmatpush2.msra.mxu0 0.0
        %1691 = vmatprep.subr.mxu0 0.0
        %1692 = vmatpush2.msra.mxu0 0.0
        %1693 = vmatprep.subr.mxu0 0.0
        %1694 = vmatpush2.msra.mxu0 0.0
        %1695 = vmatprep.subr.mxu0 0.0
        %1696 = vmatpush2.msra.mxu0 0.0
        %1697 = vmatprep.subr.mxu0 0.0
        %1698 = vmatpush2.msra.mxu0 0.0
        %1699 = vmatprep.subr.mxu0 0.0
        %1700 = vmatpush2.msra.mxu0 0.0
        %1701 = vmatprep.subr.mxu0 0.0
        %1702 = vmatpush2.msra.mxu0 0.0
        %1703 = vmatprep.subr.mxu0 0.0
        %1704 = vmatpush2.msra.mxu0 0.0
        %1705 = vmatprep.subr.mxu0 0.0
        %1706 = vmatpush2.msra.mxu0 0.0
        %1707 = vmatprep.subr.mxu0 0.0
        %1708 = vmatpush2.msra.mxu0 0.0
        %1709 = vmatprep.subr.mxu0 0.0
        %1710 = vmatpush2.msra.mxu0 0.0
        %1711 = vmatprep.subr.mxu0 0.0
        %1712 = vmatpush2.msra.mxu0 0.0
        %1713 = vmatprep.mubr.f32.mxu0 0.0
        %1714 = vmatmul.mubr.f32.gmra.mxu0 %v1554
        %v1715 = vpop.f32.mrf.mxu0
        %v1716 = vadd.f32 0.0, %v1715
        %v1717 = vpop.f32.mrf.mxu0
        %1718 = vmatprep.mubr.f32.mxu0 0.0
        %1719 = vmatmul.mubr.f32.gmra.mxu0 %v1557
        %v1720 = vpop.f32.mrf.mxu0
        %v1721 = vadd.f32 0.0, %v1720
        %v1722 = vpop.f32.mrf.mxu0
        %1723 = vmatprep.mubr.f32.mxu0 0.0
        %1724 = vmatmul.mubr.f32.gmra.mxu0 %v1560
        %v1725 = vpop.f32.mrf.mxu0
        %v1726 = vadd.f32 0.0, %v1725
        %v1727 = vpop.f32.mrf.mxu0
        %1728 = vmatprep.mubr.f32.mxu0 0.0
        %1729 = vmatmul.mubr.f32.gmra.mxu0 %v1563
        %v1730 = vpop.f32.mrf.mxu0
        %v1731 = vadd.f32 0.0, %v1730
        %v1732 = vpop.f32.mrf.mxu0
        %1733 = vmatprep.mubr.f32.mxu0 0.0
        %1734 = vmatmul.mubr.f32.gmra.mxu0 %v1566
        %v1735 = vpop.f32.mrf.mxu0
        %v1736 = vadd.f32 0.0, %v1735
        %v1737 = vpop.f32.mrf.mxu0
        %1738 = vmatprep.mubr.f32.mxu0 0.0
        %1739 = vmatmul.mubr.f32.gmra.mxu0 %v1569
        %v1740 = vpop.f32.mrf.mxu0
        %v1741 = vadd.f32 0.0, %v1740
        %v1742 = vpop.f32.mrf.mxu0
        %1743 = vmatprep.mubr.f32.mxu0 0.0
        %1744 = vmatmul.mubr.f32.gmra.mxu0 %v1572
        %v1745 = vpop.f32.mrf.mxu0
        %v1746 = vadd.f32 0.0, %v1745
        %v1747 = vpop.f32.mrf.mxu0
        %1748 = vmatprep.mubr.f32.mxu0 0.0
        %1749 = vmatmul.mubr.f32.gmra.mxu0 %v1575
        %v1750 = vpop.f32.mrf.mxu0
        %v1751 = vadd.f32 0.0, %v1750
        %v1752 = vpop.f32.mrf.mxu0
        %1753 = vmatprep.mubr.f32.mxu0 0.0
        %1754 = vmatmul.mubr.f32.gmra.mxu0 %v1578
        %v1755 = vpop.f32.mrf.mxu0
        %v1756 = vadd.f32 0.0, %v1755
        %v1757 = vpop.f32.mrf.mxu0
        %1758 = vmatprep.mubr.f32.mxu0 0.0
        %1759 = vmatmul.mubr.f32.gmra.mxu0 %v1581
        %v1760 = vpop.f32.mrf.mxu0
        %v1761 = vadd.f32 0.0, %v1760
        %v1762 = vpop.f32.mrf.mxu0
        %1763 = vmatprep.mubr.f32.mxu0 0.0
        %1764 = vmatmul.mubr.f32.gmra.mxu0 %v1584
        %v1765 = vpop.f32.mrf.mxu0
        %v1766 = vadd.f32 0.0, %v1765
        %v1767 = vpop.f32.mrf.mxu0
        %1768 = vmatprep.mubr.f32.mxu0 0.0
        %1769 = vmatmul.mubr.f32.gmra.mxu0 %v1587
        %v1770 = vpop.f32.mrf.mxu0
        %v1771 = vadd.f32 0.0, %v1770
        %v1772 = vpop.f32.mrf.mxu0
        %1773 = vmatprep.mubr.f32.mxu0 0.0
        %1774 = vmatmul.mubr.f32.gmra.mxu0 %v1590
        %v1775 = vpop.f32.mrf.mxu0
        %v1776 = vadd.f32 0.0, %v1775
        %v1777 = vpop.f32.mrf.mxu0
        %1778 = vmatprep.mubr.f32.mxu0 0.0
        %1779 = vmatmul.mubr.f32.gmra.mxu0 %v1593
        %v1780 = vpop.f32.mrf.mxu0
        %v1781 = vadd.f32 0.0, %v1780
        %v1782 = vpop.f32.mrf.mxu0
        %1783 = vmatprep.mubr.f32.mxu0 0.0
        %1784 = vmatmul.mubr.f32.gmra.mxu0 %v1596
        %v1785 = vpop.f32.mrf.mxu0
        %v1786 = vadd.f32 0.0, %v1785
        %v1787 = vpop.f32.mrf.mxu0
        %1788 = vmatprep.mubr.f32.mxu0 0.0
        %1789 = vmatmul.mubr.f32.gmra.mxu0 %v1599
        %v1790 = vpop.f32.mrf.mxu0
        %v1791 = vadd.f32 0.0, %v1790
        %v1792 = vpop.f32.mrf.mxu0
        %1793 = vmatprep.mubr.f32.mxu0 0.0
        %1794 = vmatmul.mubr.f32.gmra.mxu0 %v1602
        %v1795 = vpop.f32.mrf.mxu0
        %v1796 = vadd.f32 0.0, %v1795
        %v1797 = vpop.f32.mrf.mxu0
        %1798 = vmatprep.mubr.f32.mxu0 0.0
        %1799 = vmatmul.mubr.f32.gmra.mxu0 %v1605
        %v1800 = vpop.f32.mrf.mxu0
        %v1801 = vadd.f32 0.0, %v1800
        %v1802 = vpop.f32.mrf.mxu0
        %1803 = vmatprep.mubr.f32.mxu0 0.0
        %1804 = vmatmul.mubr.f32.gmra.mxu0 %v1608
        %v1805 = vpop.f32.mrf.mxu0
        %v1806 = vadd.f32 0.0, %v1805
        %v1807 = vpop.f32.mrf.mxu0
        %1808 = vmatprep.mubr.f32.mxu0 0.0
        %1809 = vmatmul.mubr.f32.gmra.mxu0 %v1611
        %v1810 = vpop.f32.mrf.mxu0
        %v1811 = vadd.f32 0.0, %v1810
        %v1812 = vpop.f32.mrf.mxu0
        %1813 = vmatprep.mubr.f32.mxu0 0.0
        %1814 = vmatmul.mubr.f32.gmra.mxu0 %v1614
        %v1815 = vpop.f32.mrf.mxu0
        %v1816 = vadd.f32 0.0, %v1815
        %v1817 = vpop.f32.mrf.mxu0
        %1818 = vmatprep.mubr.f32.mxu0 0.0
        %1819 = vmatmul.mubr.f32.gmra.mxu0 %v1617
        %v1820 = vpop.f32.mrf.mxu0
        %v1821 = vadd.f32 0.0, %v1820
        %v1822 = vpop.f32.mrf.mxu0
        %1823 = vmatprep.mubr.f32.mxu0 0.0
        %1824 = vmatmul.mubr.f32.gmra.mxu0 %v1620
        %v1825 = vpop.f32.mrf.mxu0
        %v1826 = vadd.f32 0.0, %v1825
        %v1827 = vpop.f32.mrf.mxu0
        %1828 = vmatprep.mubr.f32.mxu0 0.0
        %1829 = vmatmul.mubr.f32.gmra.mxu0 %v1623
        %v1830 = vpop.f32.mrf.mxu0
        %v1831 = vadd.f32 0.0, %v1830
        %v1832 = vpop.f32.mrf.mxu0
        %1833 = vmatprep.mubr.f32.mxu0 0.0
        %1834 = vmatmul.mubr.f32.gmra.mxu0 %v1626
        %v1835 = vpop.f32.mrf.mxu0
        %v1836 = vadd.f32 0.0, %v1835
        %v1837 = vpop.f32.mrf.mxu0
        %1838 = vmatprep.mubr.f32.mxu0 0.0
        %1839 = vmatmul.mubr.f32.gmra.mxu0 %v1629
        %v1840 = vpop.f32.mrf.mxu0
        %v1841 = vadd.f32 0.0, %v1840
        %v1842 = vpop.f32.mrf.mxu0
        %1843 = vmatprep.mubr.f32.mxu0 0.0
        %1844 = vmatmul.mubr.f32.gmra.mxu0 %v1632
        %v1845 = vpop.f32.mrf.mxu0
        %v1846 = vadd.f32 0.0, %v1845
        %v1847 = vpop.f32.mrf.mxu0
        %1848 = vmatprep.mubr.f32.mxu0 0.0
        %1849 = vmatmul.mubr.f32.gmra.mxu0 %v1635
        %v1850 = vpop.f32.mrf.mxu0
        %v1851 = vadd.f32 0.0, %v1850
        %v1852 = vpop.f32.mrf.mxu0
        %1853 = vmatprep.mubr.f32.mxu0 0.0
        %1854 = vmatmul.mubr.f32.gmra.mxu0 %v1638
        %v1855 = vpop.f32.mrf.mxu0
        %v1856 = vadd.f32 0.0, %v1855
        %v1857 = vpop.f32.mrf.mxu0
        %1858 = vmatprep.mubr.f32.mxu0 0.0
        %1859 = vmatmul.mubr.f32.gmra.mxu0 %v1641
        %v1860 = vpop.f32.mrf.mxu0
        %v1861 = vadd.f32 0.0, %v1860
        %v1862 = vpop.f32.mrf.mxu0
        %1863 = vmatprep.mubr.f32.mxu0 0.0
        %1864 = vmatmul.mubr.f32.gmra.mxu0 %v1644
        %v1865 = vpop.f32.mrf.mxu0
        %v1866 = vadd.f32 0.0, %v1865
        %v1867 = vpop.f32.mrf.mxu0
        %1868 = vmatprep.mubr.f32.mxu0 0.0
        %1869 = vmatmul.mubr.f32.gmra.mxu0 %v1647
        %v1870 = vpop.f32.mrf.mxu0
        %v1871 = vadd.f32 0.0, %v1870
        %v1872 = vpop.f32.mrf.mxu0
        %1873 = vdwg.mxu0
        %v1874 = vadd.f32 %v1489, %v1716
        %v1875 = vadd.f32 %v1490, %v1721
        %v1876 = vadd.f32 %v1491, %v1726
        %v1877 = vadd.f32 %v1492, %v1731
        %v1878 = vadd.f32 %v1493, %v1736
        %v1879 = vadd.f32 %v1494, %v1741
        %v1880 = vadd.f32 %v1495, %v1746
        %v1881 = vadd.f32 %v1496, %v1751
        %v1882 = vadd.f32 %v1497, %v1756
        %v1883 = vadd.f32 %v1498, %v1761
        %v1884 = vadd.f32 %v1499, %v1766
        %v1885 = vadd.f32 %v1500, %v1771
        %v1886 = vadd.f32 %v1501, %v1776
        %v1887 = vadd.f32 %v1502, %v1781
        %v1888 = vadd.f32 %v1503, %v1786
        %v1889 = vadd.f32 %v1504, %v1791
        %v1890 = vadd.f32 %v1505, %v1796
        %v1891 = vadd.f32 %v1506, %v1801
        %v1892 = vadd.f32 %v1507, %v1806
        %v1893 = vadd.f32 %v1508, %v1811
        %v1894 = vadd.f32 %v1509, %v1816
        %v1895 = vadd.f32 %v1510, %v1821
        %v1896 = vadd.f32 %v1511, %v1826
        %v1897 = vadd.f32 %v1512, %v1831
        %v1898 = vadd.f32 %v1513, %v1836
        %v1899 = vadd.f32 %v1514, %v1841
        %v1900 = vadd.f32 %v1515, %v1846
        %v1901 = vadd.f32 %v1516, %v1851
        %v1902 = vadd.f32 %v1517, %v1856
        %v1903 = vadd.f32 %v1518, %v1861
        %v1904 = vadd.f32 %v1519, %v1866
        %v1905 = vadd.f32 %v1520, %v1871
        %v1906 = vld [vmem:[%s670] sm:$0xff]
        %v1907 = vld [vmem:[%s670 + $0x8] sm:$0xff]
        %v1908 = vld [vmem:[%s670 + $0x18] sm:$0xff]
        %v1909 = vld [vmem:[%s670 + $0x20] sm:$0xff]
        %v1910 = vld [vmem:[%s670 + $0x30] sm:$0xff]
        %v1911 = vld [vmem:[%s670 + $0x38] sm:$0xff]
        %v1912 = vld [vmem:[%s670 + $0x48] sm:$0xff]
        %v1913 = vld [vmem:[%s670 + $0x50] sm:$0xff]
        %v1914 = vld [vmem:[%s670 + $0x60] sm:$0xff]
        %v1915 = vld [vmem:[%s670 + $0x68] sm:$0xff]
        %v1916 = vld [vmem:[%s670 + $0x78] sm:$0xff]
        %v1917 = vld [vmem:[%s670 + $0x80] sm:$0xff]
        %v1918 = vld [vmem:[%s670 + $0x90] sm:$0xff]
        %v1919 = vld [vmem:[%s670 + $0x98] sm:$0xff]
        %v1920 = vld [vmem:[%s670 + $0xa8] sm:$0xff]
        %v1921 = vld [vmem:[%s670 + $0xb0] sm:$0xff]
        %v1922 = vld [vmem:[%s670 + $0xc0] sm:$0xff]
        %v1923 = vld [vmem:[%s670 + $0xc8] sm:$0xff]
        %v1924 = vld [vmem:[%s670 + $0xd8] sm:$0xff]
        %v1925 = vld [vmem:[%s670 + $0xe0] sm:$0xff]
        %v1926 = vld [vmem:[%s670 + $0xf0] sm:$0xff]
        %v1927 = vld [vmem:[%s670 + $0xf8] sm:$0xff]
        %v1928 = vld [vmem:[%s670 + $0x108] sm:$0xff]
        %v1929 = vld [vmem:[%s670 + $0x110] sm:$0xff]
        %v1930 = vld [vmem:[%s670 + $0x120] sm:$0xff]
        %v1931 = vld [vmem:[%s670 + $0x128] sm:$0xff]
        %v1932 = vld [vmem:[%s670 + $0x138] sm:$0xff]
        %v1933 = vld [vmem:[%s670 + $0x140] sm:$0xff]
        %v1934 = vld [vmem:[%s670 + $0x150] sm:$0xff]
        %v1935 = vld [vmem:[%s670 + $0x158] sm:$0xff]
        %v1936 = vld [vmem:[%s670 + $0x168] sm:$0xff]
        %v1937 = vld [vmem:[%s670 + $0x170] sm:$0xff]
        %v1939 = vsel %vm312, %v1906, 0
        %v1942 = vsel %vm312, %v1907, 0
        %v1945 = vsel %vm312, %v1908, 0
        %v1948 = vsel %vm312, %v1909, 0
        %v1951 = vsel %vm312, %v1910, 0
        %v1954 = vsel %vm312, %v1911, 0
        %v1957 = vsel %vm312, %v1912, 0
        %v1960 = vsel %vm312, %v1913, 0
        %v1963 = vsel %vm312, %v1914, 0
        %v1966 = vsel %vm312, %v1915, 0
        %v1969 = vsel %vm312, %v1916, 0
        %v1972 = vsel %vm312, %v1917, 0
        %v1975 = vsel %vm312, %v1918, 0
        %v1978 = vsel %vm312, %v1919, 0
        %v1981 = vsel %vm312, %v1920, 0
        %v1984 = vsel %vm312, %v1921, 0
        %v1987 = vsel %vm312, %v1922, 0
        %v1990 = vsel %vm312, %v1923, 0
        %v1993 = vsel %vm312, %v1924, 0
        %v1996 = vsel %vm312, %v1925, 0
        %v1999 = vsel %vm312, %v1926, 0
        %v2002 = vsel %vm312, %v1927, 0
        %v2005 = vsel %vm312, %v1928, 0
        %v2008 = vsel %vm312, %v1929, 0
        %v2011 = vsel %vm312, %v1930, 0
        %v2014 = vsel %vm312, %v1931, 0
        %v2017 = vsel %vm312, %v1932, 0
        %v2020 = vsel %vm312, %v1933, 0
        %v2023 = vsel %vm312, %v1934, 0
        %v2026 = vsel %vm312, %v1935, 0
        %v2029 = vsel %vm312, %v1936, 0
        %v2032 = vsel %vm312, %v1937, 0
        %2034 = vmatprep.subr.mxu0 0.0
        %2035 = vmatpush1.msra.mxu0 0.0
        %2036 = vmatprep.subr.mxu0 0.0
        %2037 = vmatpush1.msra.mxu0 0.0
        %2038 = vmatprep.subr.mxu0 0.0
        %2039 = vmatpush1.msra.mxu0 0.0
        %2040 = vmatprep.subr.mxu0 0.0
        %2041 = vmatpush1.msra.mxu0 0.0
        %2042 = vmatprep.subr.mxu0 0.0
        %2043 = vmatpush1.msra.mxu0 0.0
        %2044 = vmatprep.subr.mxu0 0.0
        %2045 = vmatpush1.msra.mxu0 0.0
        %2046 = vmatprep.subr.mxu0 0.0
        %2047 = vmatpush1.msra.mxu0 0.0
        %2048 = vmatprep.subr.mxu0 0.0
        %2049 = vmatpush1.msra.mxu0 0.0
        %2050 = vmatprep.subr.mxu0 0.0
        %2051 = vmatpush1.msra.mxu0 0.0
        %2052 = vmatprep.subr.mxu0 0.0
        %2053 = vmatpush1.msra.mxu0 0.0
        %2054 = vmatprep.subr.mxu0 0.0
        %2055 = vmatpush1.msra.mxu0 0.0
        %2056 = vmatprep.subr.mxu0 0.0
        %2057 = vmatpush1.msra.mxu0 0.0
        %2058 = vmatprep.subr.mxu0 0.0
        %2059 = vmatpush1.msra.mxu0 %v718
        %2060 = vmatprep.subr.mxu0 0.0
        %2061 = vmatpush1.msra.mxu0 %v717
        %2062 = vmatprep.subr.mxu0 0.0
        %2063 = vmatpush1.msra.mxu0 %v716
        %2064 = vmatprep.subr.mxu0 0.0
        %2065 = vmatpush1.msra.mxu0 %v715
        %2066 = vmatprep.subr.mxu0 0.0
        %2067 = vmatpush2.msra.mxu0 0.0
        %2068 = vmatprep.subr.mxu0 0.0
        %2069 = vmatpush2.msra.mxu0 0.0
        %2070 = vmatprep.subr.mxu0 0.0
        %2071 = vmatpush2.msra.mxu0 0.0
        %2072 = vmatprep.subr.mxu0 0.0
        %2073 = vmatpush2.msra.mxu0 0.0
        %2074 = vmatprep.subr.mxu0 0.0
        %2075 = vmatpush2.msra.mxu0 0.0
        %2076 = vmatprep.subr.mxu0 0.0
        %2077 = vmatpush2.msra.mxu0 0.0
        %2078 = vmatprep.subr.mxu0 0.0
        %2079 = vmatpush2.msra.mxu0 0.0
        %2080 = vmatprep.subr.mxu0 0.0
        %2081 = vmatpush2.msra.mxu0 0.0
        %2082 = vmatprep.subr.mxu0 0.0
        %2083 = vmatpush2.msra.mxu0 0.0
        %2084 = vmatprep.subr.mxu0 0.0
        %2085 = vmatpush2.msra.mxu0 0.0
        %2086 = vmatprep.subr.mxu0 0.0
        %2087 = vmatpush2.msra.mxu0 0.0
        %2088 = vmatprep.subr.mxu0 0.0
        %2089 = vmatpush2.msra.mxu0 0.0
        %2090 = vmatprep.subr.mxu0 0.0
        %2091 = vmatpush2.msra.mxu0 0.0
        %2092 = vmatprep.subr.mxu0 0.0
        %2093 = vmatpush2.msra.mxu0 0.0
        %2094 = vmatprep.subr.mxu0 0.0
        %2095 = vmatpush2.msra.mxu0 0.0
        %2096 = vmatprep.subr.mxu0 0.0
        %2097 = vmatpush2.msra.mxu0 0.0
        %2098 = vmatprep.mubr.f32.mxu0 0.0
        %2099 = vmatmul.mubr.f32.gmra.mxu0 %v1939
        %v2100 = vpop.f32.mrf.mxu0
        %v2101 = vadd.f32 0.0, %v2100
        %v2102 = vpop.f32.mrf.mxu0
        %2103 = vmatprep.mubr.f32.mxu0 0.0
        %2104 = vmatmul.mubr.f32.gmra.mxu0 %v1942
        %v2105 = vpop.f32.mrf.mxu0
        %v2106 = vadd.f32 0.0, %v2105
        %v2107 = vpop.f32.mrf.mxu0
        %2108 = vmatprep.mubr.f32.mxu0 0.0
        %2109 = vmatmul.mubr.f32.gmra.mxu0 %v1945
        %v2110 = vpop.f32.mrf.mxu0
        %v2111 = vadd.f32 0.0, %v2110
        %v2112 = vpop.f32.mrf.mxu0
        %2113 = vmatprep.mubr.f32.mxu0 0.0
        %2114 = vmatmul.mubr.f32.gmra.mxu0 %v1948
        %v2115 = vpop.f32.mrf.mxu0
        %v2116 = vadd.f32 0.0, %v2115
        %v2117 = vpop.f32.mrf.mxu0
        %2118 = vmatprep.mubr.f32.mxu0 0.0
        %2119 = vmatmul.mubr.f32.gmra.mxu0 %v1951
        %v2120 = vpop.f32.mrf.mxu0
        %v2121 = vadd.f32 0.0, %v2120
        %v2122 = vpop.f32.mrf.mxu0
        %2123 = vmatprep.mubr.f32.mxu0 0.0
        %2124 = vmatmul.mubr.f32.gmra.mxu0 %v1954
        %v2125 = vpop.f32.mrf.mxu0
        %v2126 = vadd.f32 0.0, %v2125
        %v2127 = vpop.f32.mrf.mxu0
        %2128 = vmatprep.mubr.f32.mxu0 0.0
        %2129 = vmatmul.mubr.f32.gmra.mxu0 %v1957
        %v2130 = vpop.f32.mrf.mxu0
        %v2131 = vadd.f32 0.0, %v2130
        %v2132 = vpop.f32.mrf.mxu0
        %2133 = vmatprep.mubr.f32.mxu0 0.0
        %2134 = vmatmul.mubr.f32.gmra.mxu0 %v1960
        %v2135 = vpop.f32.mrf.mxu0
        %v2136 = vadd.f32 0.0, %v2135
        %v2137 = vpop.f32.mrf.mxu0
        %2138 = vmatprep.mubr.f32.mxu0 0.0
        %2139 = vmatmul.mubr.f32.gmra.mxu0 %v1963
        %v2140 = vpop.f32.mrf.mxu0
        %v2141 = vadd.f32 0.0, %v2140
        %v2142 = vpop.f32.mrf.mxu0
        %2143 = vmatprep.mubr.f32.mxu0 0.0
        %2144 = vmatmul.mubr.f32.gmra.mxu0 %v1966
        %v2145 = vpop.f32.mrf.mxu0
        %v2146 = vadd.f32 0.0, %v2145
        %v2147 = vpop.f32.mrf.mxu0
        %2148 = vmatprep.mubr.f32.mxu0 0.0
        %2149 = vmatmul.mubr.f32.gmra.mxu0 %v1969
        %v2150 = vpop.f32.mrf.mxu0
        %v2151 = vadd.f32 0.0, %v2150
        %v2152 = vpop.f32.mrf.mxu0
        %2153 = vmatprep.mubr.f32.mxu0 0.0
        %2154 = vmatmul.mubr.f32.gmra.mxu0 %v1972
        %v2155 = vpop.f32.mrf.mxu0
        %v2156 = vadd.f32 0.0, %v2155
        %v2157 = vpop.f32.mrf.mxu0
        %2158 = vmatprep.mubr.f32.mxu0 0.0
        %2159 = vmatmul.mubr.f32.gmra.mxu0 %v1975
        %v2160 = vpop.f32.mrf.mxu0
        %v2161 = vadd.f32 0.0, %v2160
        %v2162 = vpop.f32.mrf.mxu0
        %2163 = vmatprep.mubr.f32.mxu0 0.0
        %2164 = vmatmul.mubr.f32.gmra.mxu0 %v1978
        %v2165 = vpop.f32.mrf.mxu0
        %v2166 = vadd.f32 0.0, %v2165
        %v2167 = vpop.f32.mrf.mxu0
        %2168 = vmatprep.mubr.f32.mxu0 0.0
        %2169 = vmatmul.mubr.f32.gmra.mxu0 %v1981
        %v2170 = vpop.f32.mrf.mxu0
        %v2171 = vadd.f32 0.0, %v2170
        %v2172 = vpop.f32.mrf.mxu0
        %2173 = vmatprep.mubr.f32.mxu0 0.0
        %2174 = vmatmul.mubr.f32.gmra.mxu0 %v1984
        %v2175 = vpop.f32.mrf.mxu0
        %v2176 = vadd.f32 0.0, %v2175
        %v2177 = vpop.f32.mrf.mxu0
        %2178 = vmatprep.mubr.f32.mxu0 0.0
        %2179 = vmatmul.mubr.f32.gmra.mxu0 %v1987
        %v2180 = vpop.f32.mrf.mxu0
        %v2181 = vadd.f32 0.0, %v2180
        %v2182 = vpop.f32.mrf.mxu0
        %2183 = vmatprep.mubr.f32.mxu0 0.0
        %2184 = vmatmul.mubr.f32.gmra.mxu0 %v1990
        %v2185 = vpop.f32.mrf.mxu0
        %v2186 = vadd.f32 0.0, %v2185
        %v2187 = vpop.f32.mrf.mxu0
        %2188 = vmatprep.mubr.f32.mxu0 0.0
        %2189 = vmatmul.mubr.f32.gmra.mxu0 %v1993
        %v2190 = vpop.f32.mrf.mxu0
        %v2191 = vadd.f32 0.0, %v2190
        %v2192 = vpop.f32.mrf.mxu0
        %2193 = vmatprep.mubr.f32.mxu0 0.0
        %2194 = vmatmul.mubr.f32.gmra.mxu0 %v1996
        %v2195 = vpop.f32.mrf.mxu0
        %v2196 = vadd.f32 0.0, %v2195
        %v2197 = vpop.f32.mrf.mxu0
        %2198 = vmatprep.mubr.f32.mxu0 0.0
        %2199 = vmatmul.mubr.f32.gmra.mxu0 %v1999
        %v2200 = vpop.f32.mrf.mxu0
        %v2201 = vadd.f32 0.0, %v2200
        %v2202 = vpop.f32.mrf.mxu0
        %2203 = vmatprep.mubr.f32.mxu0 0.0
        %2204 = vmatmul.mubr.f32.gmra.mxu0 %v2002
        %v2205 = vpop.f32.mrf.mxu0
        %v2206 = vadd.f32 0.0, %v2205
        %v2207 = vpop.f32.mrf.mxu0
        %2208 = vmatprep.mubr.f32.mxu0 0.0
        %2209 = vmatmul.mubr.f32.gmra.mxu0 %v2005
        %v2210 = vpop.f32.mrf.mxu0
        %v2211 = vadd.f32 0.0, %v2210
        %v2212 = vpop.f32.mrf.mxu0
        %2213 = vmatprep.mubr.f32.mxu0 0.0
        %2214 = vmatmul.mubr.f32.gmra.mxu0 %v2008
        %v2215 = vpop.f32.mrf.mxu0
        %v2216 = vadd.f32 0.0, %v2215
        %v2217 = vpop.f32.mrf.mxu0
        %2218 = vmatprep.mubr.f32.mxu0 0.0
        %2219 = vmatmul.mubr.f32.gmra.mxu0 %v2011
        %v2220 = vpop.f32.mrf.mxu0
        %v2221 = vadd.f32 0.0, %v2220
        %v2222 = vpop.f32.mrf.mxu0
        %2223 = vmatprep.mubr.f32.mxu0 0.0
        %2224 = vmatmul.mubr.f32.gmra.mxu0 %v2014
        %v2225 = vpop.f32.mrf.mxu0
        %v2226 = vadd.f32 0.0, %v2225
        %v2227 = vpop.f32.mrf.mxu0
        %2228 = vmatprep.mubr.f32.mxu0 0.0
        %2229 = vmatmul.mubr.f32.gmra.mxu0 %v2017
        %v2230 = vpop.f32.mrf.mxu0
        %v2231 = vadd.f32 0.0, %v2230
        %v2232 = vpop.f32.mrf.mxu0
        %2233 = vmatprep.mubr.f32.mxu0 0.0
        %2234 = vmatmul.mubr.f32.gmra.mxu0 %v2020
        %v2235 = vpop.f32.mrf.mxu0
        %v2236 = vadd.f32 0.0, %v2235
        %v2237 = vpop.f32.mrf.mxu0
        %2238 = vmatprep.mubr.f32.mxu0 0.0
        %2239 = vmatmul.mubr.f32.gmra.mxu0 %v2023
        %v2240 = vpop.f32.mrf.mxu0
        %v2241 = vadd.f32 0.0, %v2240
        %v2242 = vpop.f32.mrf.mxu0
        %2243 = vmatprep.mubr.f32.mxu0 0.0
        %2244 = vmatmul.mubr.f32.gmra.mxu0 %v2026
        %v2245 = vpop.f32.mrf.mxu0
        %v2246 = vadd.f32 0.0, %v2245
        %v2247 = vpop.f32.mrf.mxu0
        %2248 = vmatprep.mubr.f32.mxu0 0.0
        %2249 = vmatmul.mubr.f32.gmra.mxu0 %v2029
        %v2250 = vpop.f32.mrf.mxu0
        %v2251 = vadd.f32 0.0, %v2250
        %v2252 = vpop.f32.mrf.mxu0
        %2253 = vmatprep.mubr.f32.mxu0 0.0
        %2254 = vmatmul.mubr.f32.gmra.mxu0 %v2032
        %v2255 = vpop.f32.mrf.mxu0
        %v2256 = vadd.f32 0.0, %v2255
        %v2257 = vpop.f32.mrf.mxu0
        %2258 = vdwg.mxu0
        %v2259 = vadd.f32 %v1874, %v2101
        %v2260 = vadd.f32 %v1875, %v2106
        %v2261 = vadd.f32 %v1876, %v2111
        %v2262 = vadd.f32 %v1877, %v2116
        %v2263 = vadd.f32 %v1878, %v2121
        %v2264 = vadd.f32 %v1879, %v2126
        %v2265 = vadd.f32 %v1880, %v2131
        %v2266 = vadd.f32 %v1881, %v2136
        %v2267 = vadd.f32 %v1882, %v2141
        %v2268 = vadd.f32 %v1883, %v2146
        %v2269 = vadd.f32 %v1884, %v2151
        %v2270 = vadd.f32 %v1885, %v2156
        %v2271 = vadd.f32 %v1886, %v2161
        %v2272 = vadd.f32 %v1887, %v2166
        %v2273 = vadd.f32 %v1888, %v2171
        %v2274 = vadd.f32 %v1889, %v2176
        %v2275 = vadd.f32 %v1890, %v2181
        %v2276 = vadd.f32 %v1891, %v2186
        %v2277 = vadd.f32 %v1892, %v2191
        %v2278 = vadd.f32 %v1893, %v2196
        %v2279 = vadd.f32 %v1894, %v2201
        %v2280 = vadd.f32 %v1895, %v2206
        %v2281 = vadd.f32 %v1896, %v2211
        %v2282 = vadd.f32 %v1897, %v2216
        %v2283 = vadd.f32 %v1898, %v2221
        %v2284 = vadd.f32 %v1899, %v2226
        %v2285 = vadd.f32 %v1900, %v2231
        %v2286 = vadd.f32 %v1901, %v2236
        %v2287 = vadd.f32 %v1902, %v2241
        %v2288 = vadd.f32 %v1903, %v2246
        %v2289 = vadd.f32 %v1904, %v2251
        %v2290 = vadd.f32 %v1905, %v2256
        %v2291 = vld [vmem:[%s670 + $0x1] sm:$0xff]
        %v2292 = vld [vmem:[%s670 + $0x9] sm:$0xff]
        %v2293 = vld [vmem:[%s670 + $0x19] sm:$0xff]
        %v2294 = vld [vmem:[%s670 + $0x21] sm:$0xff]
        %v2295 = vld [vmem:[%s670 + $0x31] sm:$0xff]
        %v2296 = vld [vmem:[%s670 + $0x39] sm:$0xff]
        %v2297 = vld [vmem:[%s670 + $0x49] sm:$0xff]
        %v2298 = vld [vmem:[%s670 + $0x51] sm:$0xff]
        %v2299 = vld [vmem:[%s670 + $0x61] sm:$0xff]
        %v2300 = vld [vmem:[%s670 + $0x69] sm:$0xff]
        %v2301 = vld [vmem:[%s670 + $0x79] sm:$0xff]
        %v2302 = vld [vmem:[%s670 + $0x81] sm:$0xff]
        %v2303 = vld [vmem:[%s670 + $0x91] sm:$0xff]
        %v2304 = vld [vmem:[%s670 + $0x99] sm:$0xff]
        %v2305 = vld [vmem:[%s670 + $0xa9] sm:$0xff]
        %v2306 = vld [vmem:[%s670 + $0xb1] sm:$0xff]
        %v2307 = vld [vmem:[%s670 + $0xc1] sm:$0xff]
        %v2308 = vld [vmem:[%s670 + $0xc9] sm:$0xff]
        %v2309 = vld [vmem:[%s670 + $0xd9] sm:$0xff]
        %v2310 = vld [vmem:[%s670 + $0xe1] sm:$0xff]
        %v2311 = vld [vmem:[%s670 + $0xf1] sm:$0xff]
        %v2312 = vld [vmem:[%s670 + $0xf9] sm:$0xff]
        %v2313 = vld [vmem:[%s670 + $0x109] sm:$0xff]
        %v2314 = vld [vmem:[%s670 + $0x111] sm:$0xff]
        %v2315 = vld [vmem:[%s670 + $0x121] sm:$0xff]
        %v2316 = vld [vmem:[%s670 + $0x129] sm:$0xff]
        %v2317 = vld [vmem:[%s670 + $0x139] sm:$0xff]
        %v2318 = vld [vmem:[%s670 + $0x141] sm:$0xff]
        %v2319 = vld [vmem:[%s670 + $0x151] sm:$0xff]
        %v2320 = vld [vmem:[%s670 + $0x159] sm:$0xff]
        %v2321 = vld [vmem:[%s670 + $0x169] sm:$0xff]
        %v2322 = vld [vmem:[%s670 + $0x171] sm:$0xff]
        %v2324 = vsel %vm312, %v2291, 0
        %v2327 = vsel %vm312, %v2292, 0
        %v2330 = vsel %vm312, %v2293, 0
        %v2333 = vsel %vm312, %v2294, 0
        %v2336 = vsel %vm312, %v2295, 0
        %v2339 = vsel %vm312, %v2296, 0
        %v2342 = vsel %vm312, %v2297, 0
        %v2345 = vsel %vm312, %v2298, 0
        %v2348 = vsel %vm312, %v2299, 0
        %v2351 = vsel %vm312, %v2300, 0
        %v2354 = vsel %vm312, %v2301, 0
        %v2357 = vsel %vm312, %v2302, 0
        %v2360 = vsel %vm312, %v2303, 0
        %v2363 = vsel %vm312, %v2304, 0
        %v2366 = vsel %vm312, %v2305, 0
        %v2369 = vsel %vm312, %v2306, 0
        %v2372 = vsel %vm312, %v2307, 0
        %v2375 = vsel %vm312, %v2308, 0
        %v2378 = vsel %vm312, %v2309, 0
        %v2381 = vsel %vm312, %v2310, 0
        %v2384 = vsel %vm312, %v2311, 0
        %v2387 = vsel %vm312, %v2312, 0
        %v2390 = vsel %vm312, %v2313, 0
        %v2393 = vsel %vm312, %v2314, 0
        %v2396 = vsel %vm312, %v2315, 0
        %v2399 = vsel %vm312, %v2316, 0
        %v2402 = vsel %vm312, %v2317, 0
        %v2405 = vsel %vm312, %v2318, 0
        %v2408 = vsel %vm312, %v2319, 0
        %v2411 = vsel %vm312, %v2320, 0
        %v2414 = vsel %vm312, %v2321, 0
        %v2417 = vsel %vm312, %v2322, 0
        %2419 = vmatprep.subr.mxu0 0.0
        %2420 = vmatpush1.msra.mxu0 0.0
        %2421 = vmatprep.subr.mxu0 0.0
        %2422 = vmatpush1.msra.mxu0 0.0
        %2423 = vmatprep.subr.mxu0 0.0
        %2424 = vmatpush1.msra.mxu0 0.0
        %2425 = vmatprep.subr.mxu0 0.0
        %2426 = vmatpush1.msra.mxu0 0.0
        %2427 = vmatprep.subr.mxu0 0.0
        %2428 = vmatpush1.msra.mxu0 0.0
        %2429 = vmatprep.subr.mxu0 0.0
        %2430 = vmatpush1.msra.mxu0 0.0
        %2431 = vmatprep.subr.mxu0 0.0
        %2432 = vmatpush1.msra.mxu0 0.0
        %2433 = vmatprep.subr.mxu0 0.0
        %2434 = vmatpush1.msra.mxu0 0.0
        %2435 = vmatprep.subr.mxu0 0.0
        %2436 = vmatpush1.msra.mxu0 0.0
        %2437 = vmatprep.subr.mxu0 0.0
        %2438 = vmatpush1.msra.mxu0 0.0
        %2439 = vmatprep.subr.mxu0 0.0
        %2440 = vmatpush1.msra.mxu0 0.0
        %2441 = vmatprep.subr.mxu0 0.0
        %2442 = vmatpush1.msra.mxu0 0.0
        %2443 = vmatprep.subr.mxu0 0.0
        %2444 = vmatpush1.msra.mxu0 %v722
        %2445 = vmatprep.subr.mxu0 0.0
        %2446 = vmatpush1.msra.mxu0 %v721
        %2447 = vmatprep.subr.mxu0 0.0
        %2448 = vmatpush1.msra.mxu0 %v720
        %2449 = vmatprep.subr.mxu0 0.0
        %2450 = vmatpush1.msra.mxu0 %v719
        %2451 = vmatprep.subr.mxu0 0.0
        %2452 = vmatpush2.msra.mxu0 0.0
        %2453 = vmatprep.subr.mxu0 0.0
        %2454 = vmatpush2.msra.mxu0 0.0
        %2455 = vmatprep.subr.mxu0 0.0
        %2456 = vmatpush2.msra.mxu0 0.0
        %2457 = vmatprep.subr.mxu0 0.0
        %2458 = vmatpush2.msra.mxu0 0.0
        %2459 = vmatprep.subr.mxu0 0.0
        %2460 = vmatpush2.msra.mxu0 0.0
        %2461 = vmatprep.subr.mxu0 0.0
        %2462 = vmatpush2.msra.mxu0 0.0
        %2463 = vmatprep.subr.mxu0 0.0
        %2464 = vmatpush2.msra.mxu0 0.0
        %2465 = vmatprep.subr.mxu0 0.0
        %2466 = vmatpush2.msra.mxu0 0.0
        %2467 = vmatprep.subr.mxu0 0.0
        %2468 = vmatpush2.msra.mxu0 0.0
        %2469 = vmatprep.subr.mxu0 0.0
        %2470 = vmatpush2.msra.mxu0 0.0
        %2471 = vmatprep.subr.mxu0 0.0
        %2472 = vmatpush2.msra.mxu0 0.0
        %2473 = vmatprep.subr.mxu0 0.0
        %2474 = vmatpush2.msra.mxu0 0.0
        %2475 = vmatprep.subr.mxu0 0.0
        %2476 = vmatpush2.msra.mxu0 0.0
        %2477 = vmatprep.subr.mxu0 0.0
        %2478 = vmatpush2.msra.mxu0 0.0
        %2479 = vmatprep.subr.mxu0 0.0
        %2480 = vmatpush2.msra.mxu0 0.0
        %2481 = vmatprep.subr.mxu0 0.0
        %2482 = vmatpush2.msra.mxu0 0.0
        %2483 = vmatprep.mubr.f32.mxu0 0.0
        %2484 = vmatmul.mubr.f32.gmra.mxu0 %v2324
        %v2485 = vpop.f32.mrf.mxu0
        %v2486 = vadd.f32 0.0, %v2485
        %v2487 = vpop.f32.mrf.mxu0
        %2488 = vmatprep.mubr.f32.mxu0 0.0
        %2489 = vmatmul.mubr.f32.gmra.mxu0 %v2327
        %v2490 = vpop.f32.mrf.mxu0
        %v2491 = vadd.f32 0.0, %v2490
        %v2492 = vpop.f32.mrf.mxu0
        %2493 = vmatprep.mubr.f32.mxu0 0.0
        %2494 = vmatmul.mubr.f32.gmra.mxu0 %v2330
        %v2495 = vpop.f32.mrf.mxu0
        %v2496 = vadd.f32 0.0, %v2495
        %v2497 = vpop.f32.mrf.mxu0
        %2498 = vmatprep.mubr.f32.mxu0 0.0
        %2499 = vmatmul.mubr.f32.gmra.mxu0 %v2333
        %v2500 = vpop.f32.mrf.mxu0
        %v2501 = vadd.f32 0.0, %v2500
        %v2502 = vpop.f32.mrf.mxu0
        %2503 = vmatprep.mubr.f32.mxu0 0.0
        %2504 = vmatmul.mubr.f32.gmra.mxu0 %v2336
        %v2505 = vpop.f32.mrf.mxu0
        %v2506 = vadd.f32 0.0, %v2505
        %v2507 = vpop.f32.mrf.mxu0
        %2508 = vmatprep.mubr.f32.mxu0 0.0
        %2509 = vmatmul.mubr.f32.gmra.mxu0 %v2339
        %v2510 = vpop.f32.mrf.mxu0
        %v2511 = vadd.f32 0.0, %v2510
        %v2512 = vpop.f32.mrf.mxu0
        %2513 = vmatprep.mubr.f32.mxu0 0.0
        %2514 = vmatmul.mubr.f32.gmra.mxu0 %v2342
        %v2515 = vpop.f32.mrf.mxu0
        %v2516 = vadd.f32 0.0, %v2515
        %v2517 = vpop.f32.mrf.mxu0
        %2518 = vmatprep.mubr.f32.mxu0 0.0
        %2519 = vmatmul.mubr.f32.gmra.mxu0 %v2345
        %v2520 = vpop.f32.mrf.mxu0
        %v2521 = vadd.f32 0.0, %v2520
        %v2522 = vpop.f32.mrf.mxu0
        %2523 = vmatprep.mubr.f32.mxu0 0.0
        %2524 = vmatmul.mubr.f32.gmra.mxu0 %v2348
        %v2525 = vpop.f32.mrf.mxu0
        %v2526 = vadd.f32 0.0, %v2525
        %v2527 = vpop.f32.mrf.mxu0
        %2528 = vmatprep.mubr.f32.mxu0 0.0
        %2529 = vmatmul.mubr.f32.gmra.mxu0 %v2351
        %v2530 = vpop.f32.mrf.mxu0
        %v2531 = vadd.f32 0.0, %v2530
        %v2532 = vpop.f32.mrf.mxu0
        %2533 = vmatprep.mubr.f32.mxu0 0.0
        %2534 = vmatmul.mubr.f32.gmra.mxu0 %v2354
        %v2535 = vpop.f32.mrf.mxu0
        %v2536 = vadd.f32 0.0, %v2535
        %v2537 = vpop.f32.mrf.mxu0
        %2538 = vmatprep.mubr.f32.mxu0 0.0
        %2539 = vmatmul.mubr.f32.gmra.mxu0 %v2357
        %v2540 = vpop.f32.mrf.mxu0
        %v2541 = vadd.f32 0.0, %v2540
        %v2542 = vpop.f32.mrf.mxu0
        %2543 = vmatprep.mubr.f32.mxu0 0.0
        %2544 = vmatmul.mubr.f32.gmra.mxu0 %v2360
        %v2545 = vpop.f32.mrf.mxu0
        %v2546 = vadd.f32 0.0, %v2545
        %v2547 = vpop.f32.mrf.mxu0
        %2548 = vmatprep.mubr.f32.mxu0 0.0
        %2549 = vmatmul.mubr.f32.gmra.mxu0 %v2363
        %v2550 = vpop.f32.mrf.mxu0
        %v2551 = vadd.f32 0.0, %v2550
        %v2552 = vpop.f32.mrf.mxu0
        %2553 = vmatprep.mubr.f32.mxu0 0.0
        %2554 = vmatmul.mubr.f32.gmra.mxu0 %v2366
        %v2555 = vpop.f32.mrf.mxu0
        %v2556 = vadd.f32 0.0, %v2555
        %v2557 = vpop.f32.mrf.mxu0
        %2558 = vmatprep.mubr.f32.mxu0 0.0
        %2559 = vmatmul.mubr.f32.gmra.mxu0 %v2369
        %v2560 = vpop.f32.mrf.mxu0
        %v2561 = vadd.f32 0.0, %v2560
        %v2562 = vpop.f32.mrf.mxu0
        %2563 = vmatprep.mubr.f32.mxu0 0.0
        %2564 = vmatmul.mubr.f32.gmra.mxu0 %v2372
        %v2565 = vpop.f32.mrf.mxu0
        %v2566 = vadd.f32 0.0, %v2565
        %v2567 = vpop.f32.mrf.mxu0
        %2568 = vmatprep.mubr.f32.mxu0 0.0
        %2569 = vmatmul.mubr.f32.gmra.mxu0 %v2375
        %v2570 = vpop.f32.mrf.mxu0
        %v2571 = vadd.f32 0.0, %v2570
        %v2572 = vpop.f32.mrf.mxu0
        %2573 = vmatprep.mubr.f32.mxu0 0.0
        %2574 = vmatmul.mubr.f32.gmra.mxu0 %v2378
        %v2575 = vpop.f32.mrf.mxu0
        %v2576 = vadd.f32 0.0, %v2575
        %v2577 = vpop.f32.mrf.mxu0
        %2578 = vmatprep.mubr.f32.mxu0 0.0
        %2579 = vmatmul.mubr.f32.gmra.mxu0 %v2381
        %v2580 = vpop.f32.mrf.mxu0
        %v2581 = vadd.f32 0.0, %v2580
        %v2582 = vpop.f32.mrf.mxu0
        %2583 = vmatprep.mubr.f32.mxu0 0.0
        %2584 = vmatmul.mubr.f32.gmra.mxu0 %v2384
        %v2585 = vpop.f32.mrf.mxu0
        %v2586 = vadd.f32 0.0, %v2585
        %v2587 = vpop.f32.mrf.mxu0
        %2588 = vmatprep.mubr.f32.mxu0 0.0
        %2589 = vmatmul.mubr.f32.gmra.mxu0 %v2387
        %v2590 = vpop.f32.mrf.mxu0
        %v2591 = vadd.f32 0.0, %v2590
        %v2592 = vpop.f32.mrf.mxu0
        %2593 = vmatprep.mubr.f32.mxu0 0.0
        %2594 = vmatmul.mubr.f32.gmra.mxu0 %v2390
        %v2595 = vpop.f32.mrf.mxu0
        %v2596 = vadd.f32 0.0, %v2595
        %v2597 = vpop.f32.mrf.mxu0
        %2598 = vmatprep.mubr.f32.mxu0 0.0
        %2599 = vmatmul.mubr.f32.gmra.mxu0 %v2393
        %v2600 = vpop.f32.mrf.mxu0
        %v2601 = vadd.f32 0.0, %v2600
        %v2602 = vpop.f32.mrf.mxu0
        %2603 = vmatprep.mubr.f32.mxu0 0.0
        %2604 = vmatmul.mubr.f32.gmra.mxu0 %v2396
        %v2605 = vpop.f32.mrf.mxu0
        %v2606 = vadd.f32 0.0, %v2605
        %v2607 = vpop.f32.mrf.mxu0
        %2608 = vmatprep.mubr.f32.mxu0 0.0
        %2609 = vmatmul.mubr.f32.gmra.mxu0 %v2399
        %v2610 = vpop.f32.mrf.mxu0
        %v2611 = vadd.f32 0.0, %v2610
        %v2612 = vpop.f32.mrf.mxu0
        %2613 = vmatprep.mubr.f32.mxu0 0.0
        %2614 = vmatmul.mubr.f32.gmra.mxu0 %v2402
        %v2615 = vpop.f32.mrf.mxu0
        %v2616 = vadd.f32 0.0, %v2615
        %v2617 = vpop.f32.mrf.mxu0
        %2618 = vmatprep.mubr.f32.mxu0 0.0
        %2619 = vmatmul.mubr.f32.gmra.mxu0 %v2405
        %v2620 = vpop.f32.mrf.mxu0
        %v2621 = vadd.f32 0.0, %v2620
        %v2622 = vpop.f32.mrf.mxu0
        %2623 = vmatprep.mubr.f32.mxu0 0.0
        %2624 = vmatmul.mubr.f32.gmra.mxu0 %v2408
        %v2625 = vpop.f32.mrf.mxu0
        %v2626 = vadd.f32 0.0, %v2625
        %v2627 = vpop.f32.mrf.mxu0
        %2628 = vmatprep.mubr.f32.mxu0 0.0
        %2629 = vmatmul.mubr.f32.gmra.mxu0 %v2411
        %v2630 = vpop.f32.mrf.mxu0
        %v2631 = vadd.f32 0.0, %v2630
        %v2632 = vpop.f32.mrf.mxu0
        %2633 = vmatprep.mubr.f32.mxu0 0.0
        %2634 = vmatmul.mubr.f32.gmra.mxu0 %v2414
        %v2635 = vpop.f32.mrf.mxu0
        %v2636 = vadd.f32 0.0, %v2635
        %v2637 = vpop.f32.mrf.mxu0
        %2638 = vmatprep.mubr.f32.mxu0 0.0
        %2639 = vmatmul.mubr.f32.gmra.mxu0 %v2417
        %v2640 = vpop.f32.mrf.mxu0
        %v2641 = vadd.f32 0.0, %v2640
        %v2642 = vpop.f32.mrf.mxu0
        %2643 = vdwg.mxu0
        %v2644 = vadd.f32 %v2259, %v2486
        %v2645 = vadd.f32 %v2260, %v2491
        %v2646 = vadd.f32 %v2261, %v2496
        %v2647 = vadd.f32 %v2262, %v2501
        %v2648 = vadd.f32 %v2263, %v2506
        %v2649 = vadd.f32 %v2264, %v2511
        %v2650 = vadd.f32 %v2265, %v2516
        %v2651 = vadd.f32 %v2266, %v2521
        %v2652 = vadd.f32 %v2267, %v2526
        %v2653 = vadd.f32 %v2268, %v2531
        %v2654 = vadd.f32 %v2269, %v2536
        %v2655 = vadd.f32 %v2270, %v2541
        %v2656 = vadd.f32 %v2271, %v2546
        %v2657 = vadd.f32 %v2272, %v2551
        %v2658 = vadd.f32 %v2273, %v2556
        %v2659 = vadd.f32 %v2274, %v2561
        %v2660 = vadd.f32 %v2275, %v2566
        %v2661 = vadd.f32 %v2276, %v2571
        %v2662 = vadd.f32 %v2277, %v2576
        %v2663 = vadd.f32 %v2278, %v2581
        %v2664 = vadd.f32 %v2279, %v2586
        %v2665 = vadd.f32 %v2280, %v2591
        %v2666 = vadd.f32 %v2281, %v2596
        %v2667 = vadd.f32 %v2282, %v2601
        %v2668 = vadd.f32 %v2283, %v2606
        %v2669 = vadd.f32 %v2284, %v2611
        %v2670 = vadd.f32 %v2285, %v2616
        %v2671 = vadd.f32 %v2286, %v2621
        %v2672 = vadd.f32 %v2287, %v2626
        %v2673 = vadd.f32 %v2288, %v2631
        %v2674 = vadd.f32 %v2289, %v2636
        %v2675 = vadd.f32 %v2290, %v2641
        %v2676 = vld [vmem:[%s670 + $0x2] sm:$0xff]
        %v2677 = vld [vmem:[%s670 + $0xa] sm:$0xff]
        %v2678 = vld [vmem:[%s670 + $0x1a] sm:$0xff]
        %v2679 = vld [vmem:[%s670 + $0x22] sm:$0xff]
        %v2680 = vld [vmem:[%s670 + $0x32] sm:$0xff]
        %v2681 = vld [vmem:[%s670 + $0x3a] sm:$0xff]
        %v2682 = vld [vmem:[%s670 + $0x4a] sm:$0xff]
        %v2683 = vld [vmem:[%s670 + $0x52] sm:$0xff]
        %v2684 = vld [vmem:[%s670 + $0x62] sm:$0xff]
        %v2685 = vld [vmem:[%s670 + $0x6a] sm:$0xff]
        %v2686 = vld [vmem:[%s670 + $0x7a] sm:$0xff]
        %v2687 = vld [vmem:[%s670 + $0x82] sm:$0xff]
        %v2688 = vld [vmem:[%s670 + $0x92] sm:$0xff]
        %v2689 = vld [vmem:[%s670 + $0x9a] sm:$0xff]
        %v2690 = vld [vmem:[%s670 + $0xaa] sm:$0xff]
        %v2691 = vld [vmem:[%s670 + $0xb2] sm:$0xff]
        %v2692 = vld [vmem:[%s670 + $0xc2] sm:$0xff]
        %v2693 = vld [vmem:[%s670 + $0xca] sm:$0xff]
        %v2694 = vld [vmem:[%s670 + $0xda] sm:$0xff]
        %v2695 = vld [vmem:[%s670 + $0xe2] sm:$0xff]
        %v2696 = vld [vmem:[%s670 + $0xf2] sm:$0xff]
        %v2697 = vld [vmem:[%s670 + $0xfa] sm:$0xff]
        %v2698 = vld [vmem:[%s670 + $0x10a] sm:$0xff]
        %v2699 = vld [vmem:[%s670 + $0x112] sm:$0xff]
        %v2700 = vld [vmem:[%s670 + $0x122] sm:$0xff]
        %v2701 = vld [vmem:[%s670 + $0x12a] sm:$0xff]
        %v2702 = vld [vmem:[%s670 + $0x13a] sm:$0xff]
        %v2703 = vld [vmem:[%s670 + $0x142] sm:$0xff]
        %v2704 = vld [vmem:[%s670 + $0x152] sm:$0xff]
        %v2705 = vld [vmem:[%s670 + $0x15a] sm:$0xff]
        %v2706 = vld [vmem:[%s670 + $0x16a] sm:$0xff]
        %v2707 = vld [vmem:[%s670 + $0x172] sm:$0xff]
        %v2709 = vsel %vm312, %v2676, 0
        %v2712 = vsel %vm312, %v2677, 0
        %v2715 = vsel %vm312, %v2678, 0
        %v2718 = vsel %vm312, %v2679, 0
        %v2721 = vsel %vm312, %v2680, 0
        %v2724 = vsel %vm312, %v2681, 0
        %v2727 = vsel %vm312, %v2682, 0
        %v2730 = vsel %vm312, %v2683, 0
        %v2733 = vsel %vm312, %v2684, 0
        %v2736 = vsel %vm312, %v2685, 0
        %v2739 = vsel %vm312, %v2686, 0
        %v2742 = vsel %vm312, %v2687, 0
        %v2745 = vsel %vm312, %v2688, 0
        %v2748 = vsel %vm312, %v2689, 0
        %v2751 = vsel %vm312, %v2690, 0
        %v2754 = vsel %vm312, %v2691, 0
        %v2757 = vsel %vm312, %v2692, 0
        %v2760 = vsel %vm312, %v2693, 0
        %v2763 = vsel %vm312, %v2694, 0
        %v2766 = vsel %vm312, %v2695, 0
        %v2769 = vsel %vm312, %v2696, 0
        %v2772 = vsel %vm312, %v2697, 0
        %v2775 = vsel %vm312, %v2698, 0
        %v2778 = vsel %vm312, %v2699, 0
        %v2781 = vsel %vm312, %v2700, 0
        %v2784 = vsel %vm312, %v2701, 0
        %v2787 = vsel %vm312, %v2702, 0
        %v2790 = vsel %vm312, %v2703, 0
        %v2793 = vsel %vm312, %v2704, 0
        %v2796 = vsel %vm312, %v2705, 0
        %v2799 = vsel %vm312, %v2706, 0
        %v2802 = vsel %vm312, %v2707, 0
        %2804 = vmatprep.subr.mxu0 0.0
        %2805 = vmatpush1.msra.mxu0 0.0
        %2806 = vmatprep.subr.mxu0 0.0
        %2807 = vmatpush1.msra.mxu0 0.0
        %2808 = vmatprep.subr.mxu0 0.0
        %2809 = vmatpush1.msra.mxu0 0.0
        %2810 = vmatprep.subr.mxu0 0.0
        %2811 = vmatpush1.msra.mxu0 0.0
        %2812 = vmatprep.subr.mxu0 0.0
        %2813 = vmatpush1.msra.mxu0 0.0
        %2814 = vmatprep.subr.mxu0 0.0
        %2815 = vmatpush1.msra.mxu0 0.0
        %2816 = vmatprep.subr.mxu0 0.0
        %2817 = vmatpush1.msra.mxu0 0.0
        %2818 = vmatprep.subr.mxu0 0.0
        %2819 = vmatpush1.msra.mxu0 0.0
        %2820 = vmatprep.subr.mxu0 0.0
        %2821 = vmatpush1.msra.mxu0 0.0
        %2822 = vmatprep.subr.mxu0 0.0
        %2823 = vmatpush1.msra.mxu0 0.0
        %2824 = vmatprep.subr.mxu0 0.0
        %2825 = vmatpush1.msra.mxu0 0.0
        %2826 = vmatprep.subr.mxu0 0.0
        %2827 = vmatpush1.msra.mxu0 0.0
        %2828 = vmatprep.subr.mxu0 0.0
        %2829 = vmatpush1.msra.mxu0 %v726
        %2830 = vmatprep.subr.mxu0 0.0
        %2831 = vmatpush1.msra.mxu0 %v725
        %2832 = vmatprep.subr.mxu0 0.0
        %2833 = vmatpush1.msra.mxu0 %v724
        %2834 = vmatprep.subr.mxu0 0.0
        %2835 = vmatpush1.msra.mxu0 %v723
        %2836 = vmatprep.subr.mxu0 0.0
        %2837 = vmatpush2.msra.mxu0 0.0
        %2838 = vmatprep.subr.mxu0 0.0
        %2839 = vmatpush2.msra.mxu0 0.0
        %2840 = vmatprep.subr.mxu0 0.0
        %2841 = vmatpush2.msra.mxu0 0.0
        %2842 = vmatprep.subr.mxu0 0.0
        %2843 = vmatpush2.msra.mxu0 0.0
        %2844 = vmatprep.subr.mxu0 0.0
        %2845 = vmatpush2.msra.mxu0 0.0
        %2846 = vmatprep.subr.mxu0 0.0
        %2847 = vmatpush2.msra.mxu0 0.0
        %2848 = vmatprep.subr.mxu0 0.0
        %2849 = vmatpush2.msra.mxu0 0.0
        %2850 = vmatprep.subr.mxu0 0.0
        %2851 = vmatpush2.msra.mxu0 0.0
        %2852 = vmatprep.subr.mxu0 0.0
        %2853 = vmatpush2.msra.mxu0 0.0
        %2854 = vmatprep.subr.mxu0 0.0
        %2855 = vmatpush2.msra.mxu0 0.0
        %2856 = vmatprep.subr.mxu0 0.0
        %2857 = vmatpush2.msra.mxu0 0.0
        %2858 = vmatprep.subr.mxu0 0.0
        %2859 = vmatpush2.msra.mxu0 0.0
        %2860 = vmatprep.subr.mxu0 0.0
        %2861 = vmatpush2.msra.mxu0 0.0
        %2862 = vmatprep.subr.mxu0 0.0
        %2863 = vmatpush2.msra.mxu0 0.0
        %2864 = vmatprep.subr.mxu0 0.0
        %2865 = vmatpush2.msra.mxu0 0.0
        %2866 = vmatprep.subr.mxu0 0.0
        %2867 = vmatpush2.msra.mxu0 0.0
        %2868 = vmatprep.mubr.f32.mxu0 0.0
        %2869 = vmatmul.mubr.f32.gmra.mxu0 %v2709
        %v2870 = vpop.f32.mrf.mxu0
        %v2871 = vadd.f32 0.0, %v2870
        %v2872 = vpop.f32.mrf.mxu0
        %2873 = vmatprep.mubr.f32.mxu0 0.0
        %2874 = vmatmul.mubr.f32.gmra.mxu0 %v2712
        %v2875 = vpop.f32.mrf.mxu0
        %v2876 = vadd.f32 0.0, %v2875
        %v2877 = vpop.f32.mrf.mxu0
        %2878 = vmatprep.mubr.f32.mxu0 0.0
        %2879 = vmatmul.mubr.f32.gmra.mxu0 %v2715
        %v2880 = vpop.f32.mrf.mxu0
        %v2881 = vadd.f32 0.0, %v2880
        %v2882 = vpop.f32.mrf.mxu0
        %2883 = vmatprep.mubr.f32.mxu0 0.0
        %2884 = vmatmul.mubr.f32.gmra.mxu0 %v2718
        %v2885 = vpop.f32.mrf.mxu0
        %v2886 = vadd.f32 0.0, %v2885
        %v2887 = vpop.f32.mrf.mxu0
        %2888 = vmatprep.mubr.f32.mxu0 0.0
        %2889 = vmatmul.mubr.f32.gmra.mxu0 %v2721
        %v2890 = vpop.f32.mrf.mxu0
        %v2891 = vadd.f32 0.0, %v2890
        %v2892 = vpop.f32.mrf.mxu0
        %2893 = vmatprep.mubr.f32.mxu0 0.0
        %2894 = vmatmul.mubr.f32.gmra.mxu0 %v2724
        %v2895 = vpop.f32.mrf.mxu0
        %v2896 = vadd.f32 0.0, %v2895
        %v2897 = vpop.f32.mrf.mxu0
        %2898 = vmatprep.mubr.f32.mxu0 0.0
        %2899 = vmatmul.mubr.f32.gmra.mxu0 %v2727
        %v2900 = vpop.f32.mrf.mxu0
        %v2901 = vadd.f32 0.0, %v2900
        %v2902 = vpop.f32.mrf.mxu0
        %2903 = vmatprep.mubr.f32.mxu0 0.0
        %2904 = vmatmul.mubr.f32.gmra.mxu0 %v2730
        %v2905 = vpop.f32.mrf.mxu0
        %v2906 = vadd.f32 0.0, %v2905
        %v2907 = vpop.f32.mrf.mxu0
        %2908 = vmatprep.mubr.f32.mxu0 0.0
        %2909 = vmatmul.mubr.f32.gmra.mxu0 %v2733
        %v2910 = vpop.f32.mrf.mxu0
        %v2911 = vadd.f32 0.0, %v2910
        %v2912 = vpop.f32.mrf.mxu0
        %2913 = vmatprep.mubr.f32.mxu0 0.0
        %2914 = vmatmul.mubr.f32.gmra.mxu0 %v2736
        %v2915 = vpop.f32.mrf.mxu0
        %v2916 = vadd.f32 0.0, %v2915
        %v2917 = vpop.f32.mrf.mxu0
        %2918 = vmatprep.mubr.f32.mxu0 0.0
        %2919 = vmatmul.mubr.f32.gmra.mxu0 %v2739
        %v2920 = vpop.f32.mrf.mxu0
        %v2921 = vadd.f32 0.0, %v2920
        %v2922 = vpop.f32.mrf.mxu0
        %2923 = vmatprep.mubr.f32.mxu0 0.0
        %2924 = vmatmul.mubr.f32.gmra.mxu0 %v2742
        %v2925 = vpop.f32.mrf.mxu0
        %v2926 = vadd.f32 0.0, %v2925
        %v2927 = vpop.f32.mrf.mxu0
        %2928 = vmatprep.mubr.f32.mxu0 0.0
        %2929 = vmatmul.mubr.f32.gmra.mxu0 %v2745
        %v2930 = vpop.f32.mrf.mxu0
        %v2931 = vadd.f32 0.0, %v2930
        %v2932 = vpop.f32.mrf.mxu0
        %2933 = vmatprep.mubr.f32.mxu0 0.0
        %2934 = vmatmul.mubr.f32.gmra.mxu0 %v2748
        %v2935 = vpop.f32.mrf.mxu0
        %v2936 = vadd.f32 0.0, %v2935
        %v2937 = vpop.f32.mrf.mxu0
        %2938 = vmatprep.mubr.f32.mxu0 0.0
        %2939 = vmatmul.mubr.f32.gmra.mxu0 %v2751
        %v2940 = vpop.f32.mrf.mxu0
        %v2941 = vadd.f32 0.0, %v2940
        %v2942 = vpop.f32.mrf.mxu0
        %2943 = vmatprep.mubr.f32.mxu0 0.0
        %2944 = vmatmul.mubr.f32.gmra.mxu0 %v2754
        %v2945 = vpop.f32.mrf.mxu0
        %v2946 = vadd.f32 0.0, %v2945
        %v2947 = vpop.f32.mrf.mxu0
        %2948 = vmatprep.mubr.f32.mxu0 0.0
        %2949 = vmatmul.mubr.f32.gmra.mxu0 %v2757
        %v2950 = vpop.f32.mrf.mxu0
        %v2951 = vadd.f32 0.0, %v2950
        %v2952 = vpop.f32.mrf.mxu0
        %2953 = vmatprep.mubr.f32.mxu0 0.0
        %2954 = vmatmul.mubr.f32.gmra.mxu0 %v2760
        %v2955 = vpop.f32.mrf.mxu0
        %v2956 = vadd.f32 0.0, %v2955
        %v2957 = vpop.f32.mrf.mxu0
        %2958 = vmatprep.mubr.f32.mxu0 0.0
        %2959 = vmatmul.mubr.f32.gmra.mxu0 %v2763
        %v2960 = vpop.f32.mrf.mxu0
        %v2961 = vadd.f32 0.0, %v2960
        %v2962 = vpop.f32.mrf.mxu0
        %2963 = vmatprep.mubr.f32.mxu0 0.0
        %2964 = vmatmul.mubr.f32.gmra.mxu0 %v2766
        %v2965 = vpop.f32.mrf.mxu0
        %v2966 = vadd.f32 0.0, %v2965
        %v2967 = vpop.f32.mrf.mxu0
        %2968 = vmatprep.mubr.f32.mxu0 0.0
        %2969 = vmatmul.mubr.f32.gmra.mxu0 %v2769
        %v2970 = vpop.f32.mrf.mxu0
        %v2971 = vadd.f32 0.0, %v2970
        %v2972 = vpop.f32.mrf.mxu0
        %2973 = vmatprep.mubr.f32.mxu0 0.0
        %2974 = vmatmul.mubr.f32.gmra.mxu0 %v2772
        %v2975 = vpop.f32.mrf.mxu0
        %v2976 = vadd.f32 0.0, %v2975
        %v2977 = vpop.f32.mrf.mxu0
        %2978 = vmatprep.mubr.f32.mxu0 0.0
        %2979 = vmatmul.mubr.f32.gmra.mxu0 %v2775
        %v2980 = vpop.f32.mrf.mxu0
        %v2981 = vadd.f32 0.0, %v2980
        %v2982 = vpop.f32.mrf.mxu0
        %2983 = vmatprep.mubr.f32.mxu0 0.0
        %2984 = vmatmul.mubr.f32.gmra.mxu0 %v2778
        %v2985 = vpop.f32.mrf.mxu0
        %v2986 = vadd.f32 0.0, %v2985
        %v2987 = vpop.f32.mrf.mxu0
        %2988 = vmatprep.mubr.f32.mxu0 0.0
        %2989 = vmatmul.mubr.f32.gmra.mxu0 %v2781
        %v2990 = vpop.f32.mrf.mxu0
        %v2991 = vadd.f32 0.0, %v2990
        %v2992 = vpop.f32.mrf.mxu0
        %2993 = vmatprep.mubr.f32.mxu0 0.0
        %2994 = vmatmul.mubr.f32.gmra.mxu0 %v2784
        %v2995 = vpop.f32.mrf.mxu0
        %v2996 = vadd.f32 0.0, %v2995
        %v2997 = vpop.f32.mrf.mxu0
        %2998 = vmatprep.mubr.f32.mxu0 0.0
        %2999 = vmatmul.mubr.f32.gmra.mxu0 %v2787
        %v3000 = vpop.f32.mrf.mxu0
        %v3001 = vadd.f32 0.0, %v3000
        %v3002 = vpop.f32.mrf.mxu0
        %3003 = vmatprep.mubr.f32.mxu0 0.0
        %3004 = vmatmul.mubr.f32.gmra.mxu0 %v2790
        %v3005 = vpop.f32.mrf.mxu0
        %v3006 = vadd.f32 0.0, %v3005
        %v3007 = vpop.f32.mrf.mxu0
        %3008 = vmatprep.mubr.f32.mxu0 0.0
        %3009 = vmatmul.mubr.f32.gmra.mxu0 %v2793
        %v3010 = vpop.f32.mrf.mxu0
        %v3011 = vadd.f32 0.0, %v3010
        %v3012 = vpop.f32.mrf.mxu0
        %3013 = vmatprep.mubr.f32.mxu0 0.0
        %3014 = vmatmul.mubr.f32.gmra.mxu0 %v2796
        %v3015 = vpop.f32.mrf.mxu0
        %v3016 = vadd.f32 0.0, %v3015
        %v3017 = vpop.f32.mrf.mxu0
        %3018 = vmatprep.mubr.f32.mxu0 0.0
        %3019 = vmatmul.mubr.f32.gmra.mxu0 %v2799
        %v3020 = vpop.f32.mrf.mxu0
        %v3021 = vadd.f32 0.0, %v3020
        %v3022 = vpop.f32.mrf.mxu0
        %3023 = vmatprep.mubr.f32.mxu0 0.0
        %3024 = vmatmul.mubr.f32.gmra.mxu0 %v2802
        %v3025 = vpop.f32.mrf.mxu0
        %v3026 = vadd.f32 0.0, %v3025
        %v3027 = vpop.f32.mrf.mxu0
        %3028 = vdwg.mxu0
        %v3029 = vadd.f32 %v2644, %v2871
        %v3030 = vadd.f32 %v2645, %v2876
        %v3031 = vadd.f32 %v2646, %v2881
        %v3032 = vadd.f32 %v2647, %v2886
        %v3033 = vadd.f32 %v2648, %v2891
        %v3034 = vadd.f32 %v2649, %v2896
        %v3035 = vadd.f32 %v2650, %v2901
        %v3036 = vadd.f32 %v2651, %v2906
        %v3037 = vadd.f32 %v2652, %v2911
        %v3038 = vadd.f32 %v2653, %v2916
        %v3039 = vadd.f32 %v2654, %v2921
        %v3040 = vadd.f32 %v2655, %v2926
        %v3041 = vadd.f32 %v2656, %v2931
        %v3042 = vadd.f32 %v2657, %v2936
        %v3043 = vadd.f32 %v2658, %v2941
        %v3044 = vadd.f32 %v2659, %v2946
        %v3045 = vadd.f32 %v2660, %v2951
        %v3046 = vadd.f32 %v2661, %v2956
        %v3047 = vadd.f32 %v2662, %v2961
        %v3048 = vadd.f32 %v2663, %v2966
        %v3049 = vadd.f32 %v2664, %v2971
        %v3050 = vadd.f32 %v2665, %v2976
        %v3051 = vadd.f32 %v2666, %v2981
        %v3052 = vadd.f32 %v2667, %v2986
        %v3053 = vadd.f32 %v2668, %v2991
        %v3054 = vadd.f32 %v2669, %v2996
        %v3055 = vadd.f32 %v2670, %v3001
        %v3056 = vadd.f32 %v2671, %v3006
        %v3057 = vadd.f32 %v2672, %v3011
        %v3058 = vadd.f32 %v2673, %v3016
        %v3059 = vadd.f32 %v2674, %v3021
        %v3060 = vadd.f32 %v2675, %v3026
        %s3061 = scalar_lea.vmem [#allocation2], 48
        %v3062 = vld [vmem:[%s3061] sm:$0xff]
        %v3063 = vld [vmem:[%s3061 + $0x8] sm:$0xff]
        %v3064 = vld [vmem:[%s3061 + $0x18] sm:$0xff]
        %v3065 = vld [vmem:[%s3061 + $0x20] sm:$0xff]
        %v3066 = vld [vmem:[%s3061 + $0x30] sm:$0xff]
        %v3067 = vld [vmem:[%s3061 + $0x38] sm:$0xff]
        %v3068 = vld [vmem:[%s3061 + $0x48] sm:$0xff]
        %v3069 = vld [vmem:[%s3061 + $0x50] sm:$0xff]
        %v3070 = vld [vmem:[%s3061 + $0x60] sm:$0xff]
        %v3071 = vld [vmem:[%s3061 + $0x68] sm:$0xff]
        %v3072 = vld [vmem:[%s3061 + $0x78] sm:$0xff]
        %v3073 = vld [vmem:[%s3061 + $0x80] sm:$0xff]
        %v3074 = vld [vmem:[%s3061 + $0x90] sm:$0xff]
        %v3075 = vld [vmem:[%s3061 + $0x98] sm:$0xff]
        %v3076 = vld [vmem:[%s3061 + $0xa8] sm:$0xff]
        %v3077 = vld [vmem:[%s3061 + $0xb0] sm:$0xff]
        %v3078 = vld [vmem:[%s3061 + $0xc0] sm:$0xff]
        %v3079 = vld [vmem:[%s3061 + $0xc8] sm:$0xff]
        %v3080 = vld [vmem:[%s3061 + $0xd8] sm:$0xff]
        %v3081 = vld [vmem:[%s3061 + $0xe0] sm:$0xff]
        %v3082 = vld [vmem:[%s3061 + $0xf0] sm:$0xff]
        %v3083 = vld [vmem:[%s3061 + $0xf8] sm:$0xff]
        %v3084 = vld [vmem:[%s3061 + $0x108] sm:$0xff]
        %v3085 = vld [vmem:[%s3061 + $0x110] sm:$0xff]
        %v3086 = vld [vmem:[%s3061 + $0x120] sm:$0xff]
        %v3087 = vld [vmem:[%s3061 + $0x128] sm:$0xff]
        %v3088 = vld [vmem:[%s3061 + $0x138] sm:$0xff]
        %v3089 = vld [vmem:[%s3061 + $0x140] sm:$0xff]
        %v3090 = vld [vmem:[%s3061 + $0x150] sm:$0xff]
        %v3091 = vld [vmem:[%s3061 + $0x158] sm:$0xff]
        %v3092 = vld [vmem:[%s3061 + $0x168] sm:$0xff]
        %v3093 = vld [vmem:[%s3061 + $0x170] sm:$0xff]
        %v3095 = vsel %vm312, %v3062, 0
        %v3098 = vsel %vm312, %v3063, 0
        %v3101 = vsel %vm312, %v3064, 0
        %v3104 = vsel %vm312, %v3065, 0
        %v3107 = vsel %vm312, %v3066, 0
        %v3110 = vsel %vm312, %v3067, 0
        %v3113 = vsel %vm312, %v3068, 0
        %v3116 = vsel %vm312, %v3069, 0
        %v3119 = vsel %vm312, %v3070, 0
        %v3122 = vsel %vm312, %v3071, 0
        %v3125 = vsel %vm312, %v3072, 0
        %v3128 = vsel %vm312, %v3073, 0
        %v3131 = vsel %vm312, %v3074, 0
        %v3134 = vsel %vm312, %v3075, 0
        %v3137 = vsel %vm312, %v3076, 0
        %v3140 = vsel %vm312, %v3077, 0
        %v3143 = vsel %vm312, %v3078, 0
        %v3146 = vsel %vm312, %v3079, 0
        %v3149 = vsel %vm312, %v3080, 0
        %v3152 = vsel %vm312, %v3081, 0
        %v3155 = vsel %vm312, %v3082, 0
        %v3158 = vsel %vm312, %v3083, 0
        %v3161 = vsel %vm312, %v3084, 0
        %v3164 = vsel %vm312, %v3085, 0
        %v3167 = vsel %vm312, %v3086, 0
        %v3170 = vsel %vm312, %v3087, 0
        %v3173 = vsel %vm312, %v3088, 0
        %v3176 = vsel %vm312, %v3089, 0
        %v3179 = vsel %vm312, %v3090, 0
        %v3182 = vsel %vm312, %v3091, 0
        %v3185 = vsel %vm312, %v3092, 0
        %v3188 = vsel %vm312, %v3093, 0
        %3190 = vmatprep.subr.mxu0 0.0
        %3191 = vmatpush1.msra.mxu0 0.0
        %3192 = vmatprep.subr.mxu0 0.0
        %3193 = vmatpush1.msra.mxu0 0.0
        %3194 = vmatprep.subr.mxu0 0.0
        %3195 = vmatpush1.msra.mxu0 0.0
        %3196 = vmatprep.subr.mxu0 0.0
        %3197 = vmatpush1.msra.mxu0 0.0
        %3198 = vmatprep.subr.mxu0 0.0
        %3199 = vmatpush1.msra.mxu0 0.0
        %3200 = vmatprep.subr.mxu0 0.0
        %3201 = vmatpush1.msra.mxu0 0.0
        %3202 = vmatprep.subr.mxu0 0.0
        %3203 = vmatpush1.msra.mxu0 0.0
        %3204 = vmatprep.subr.mxu0 0.0
        %3205 = vmatpush1.msra.mxu0 0.0
        %3206 = vmatprep.subr.mxu0 0.0
        %3207 = vmatpush1.msra.mxu0 0.0
        %3208 = vmatprep.subr.mxu0 0.0
        %3209 = vmatpush1.msra.mxu0 0.0
        %3210 = vmatprep.subr.mxu0 0.0
        %3211 = vmatpush1.msra.mxu0 0.0
        %3212 = vmatprep.subr.mxu0 0.0
        %3213 = vmatpush1.msra.mxu0 0.0
        %3214 = vmatprep.subr.mxu0 0.0
        %3215 = vmatpush1.msra.mxu0 %v730
        %3216 = vmatprep.subr.mxu0 0.0
        %3217 = vmatpush1.msra.mxu0 %v729
        %3218 = vmatprep.subr.mxu0 0.0
        %3219 = vmatpush1.msra.mxu0 %v728
        %3220 = vmatprep.subr.mxu0 0.0
        %3221 = vmatpush1.msra.mxu0 %v727
        %3222 = vmatprep.subr.mxu0 0.0
        %3223 = vmatpush2.msra.mxu0 0.0
        %3224 = vmatprep.subr.mxu0 0.0
        %3225 = vmatpush2.msra.mxu0 0.0
        %3226 = vmatprep.subr.mxu0 0.0
        %3227 = vmatpush2.msra.mxu0 0.0
        %3228 = vmatprep.subr.mxu0 0.0
        %3229 = vmatpush2.msra.mxu0 0.0
        %3230 = vmatprep.subr.mxu0 0.0
        %3231 = vmatpush2.msra.mxu0 0.0
        %3232 = vmatprep.subr.mxu0 0.0
        %3233 = vmatpush2.msra.mxu0 0.0
        %3234 = vmatprep.subr.mxu0 0.0
        %3235 = vmatpush2.msra.mxu0 0.0
        %3236 = vmatprep.subr.mxu0 0.0
        %3237 = vmatpush2.msra.mxu0 0.0
        %3238 = vmatprep.subr.mxu0 0.0
        %3239 = vmatpush2.msra.mxu0 0.0
        %3240 = vmatprep.subr.mxu0 0.0
        %3241 = vmatpush2.msra.mxu0 0.0
        %3242 = vmatprep.subr.mxu0 0.0
        %3243 = vmatpush2.msra.mxu0 0.0
        %3244 = vmatprep.subr.mxu0 0.0
        %3245 = vmatpush2.msra.mxu0 0.0
        %3246 = vmatprep.subr.mxu0 0.0
        %3247 = vmatpush2.msra.mxu0 0.0
        %3248 = vmatprep.subr.mxu0 0.0
        %3249 = vmatpush2.msra.mxu0 0.0
        %3250 = vmatprep.subr.mxu0 0.0
        %3251 = vmatpush2.msra.mxu0 0.0
        %3252 = vmatprep.subr.mxu0 0.0
        %3253 = vmatpush2.msra.mxu0 0.0
        %3254 = vmatprep.mubr.f32.mxu0 0.0
        %3255 = vmatmul.mubr.f32.gmra.mxu0 %v3095
        %v3256 = vpop.f32.mrf.mxu0
        %v3257 = vadd.f32 0.0, %v3256
        %v3258 = vpop.f32.mrf.mxu0
        %3259 = vmatprep.mubr.f32.mxu0 0.0
        %3260 = vmatmul.mubr.f32.gmra.mxu0 %v3098
        %v3261 = vpop.f32.mrf.mxu0
        %v3262 = vadd.f32 0.0, %v3261
        %v3263 = vpop.f32.mrf.mxu0
        %3264 = vmatprep.mubr.f32.mxu0 0.0
        %3265 = vmatmul.mubr.f32.gmra.mxu0 %v3101
        %v3266 = vpop.f32.mrf.mxu0
        %v3267 = vadd.f32 0.0, %v3266
        %v3268 = vpop.f32.mrf.mxu0
        %3269 = vmatprep.mubr.f32.mxu0 0.0
        %3270 = vmatmul.mubr.f32.gmra.mxu0 %v3104
        %v3271 = vpop.f32.mrf.mxu0
        %v3272 = vadd.f32 0.0, %v3271
        %v3273 = vpop.f32.mrf.mxu0
        %3274 = vmatprep.mubr.f32.mxu0 0.0
        %3275 = vmatmul.mubr.f32.gmra.mxu0 %v3107
        %v3276 = vpop.f32.mrf.mxu0
        %v3277 = vadd.f32 0.0, %v3276
        %v3278 = vpop.f32.mrf.mxu0
        %3279 = vmatprep.mubr.f32.mxu0 0.0
        %3280 = vmatmul.mubr.f32.gmra.mxu0 %v3110
        %v3281 = vpop.f32.mrf.mxu0
        %v3282 = vadd.f32 0.0, %v3281
        %v3283 = vpop.f32.mrf.mxu0
        %3284 = vmatprep.mubr.f32.mxu0 0.0
        %3285 = vmatmul.mubr.f32.gmra.mxu0 %v3113
        %v3286 = vpop.f32.mrf.mxu0
        %v3287 = vadd.f32 0.0, %v3286
        %v3288 = vpop.f32.mrf.mxu0
        %3289 = vmatprep.mubr.f32.mxu0 0.0
        %3290 = vmatmul.mubr.f32.gmra.mxu0 %v3116
        %v3291 = vpop.f32.mrf.mxu0
        %v3292 = vadd.f32 0.0, %v3291
        %v3293 = vpop.f32.mrf.mxu0
        %3294 = vmatprep.mubr.f32.mxu0 0.0
        %3295 = vmatmul.mubr.f32.gmra.mxu0 %v3119
        %v3296 = vpop.f32.mrf.mxu0
        %v3297 = vadd.f32 0.0, %v3296
        %v3298 = vpop.f32.mrf.mxu0
        %3299 = vmatprep.mubr.f32.mxu0 0.0
        %3300 = vmatmul.mubr.f32.gmra.mxu0 %v3122
        %v3301 = vpop.f32.mrf.mxu0
        %v3302 = vadd.f32 0.0, %v3301
        %v3303 = vpop.f32.mrf.mxu0
        %3304 = vmatprep.mubr.f32.mxu0 0.0
        %3305 = vmatmul.mubr.f32.gmra.mxu0 %v3125
        %v3306 = vpop.f32.mrf.mxu0
        %v3307 = vadd.f32 0.0, %v3306
        %v3308 = vpop.f32.mrf.mxu0
        %3309 = vmatprep.mubr.f32.mxu0 0.0
        %3310 = vmatmul.mubr.f32.gmra.mxu0 %v3128
        %v3311 = vpop.f32.mrf.mxu0
        %v3312 = vadd.f32 0.0, %v3311
        %v3313 = vpop.f32.mrf.mxu0
        %3314 = vmatprep.mubr.f32.mxu0 0.0
        %3315 = vmatmul.mubr.f32.gmra.mxu0 %v3131
        %v3316 = vpop.f32.mrf.mxu0
        %v3317 = vadd.f32 0.0, %v3316
        %v3318 = vpop.f32.mrf.mxu0
        %3319 = vmatprep.mubr.f32.mxu0 0.0
        %3320 = vmatmul.mubr.f32.gmra.mxu0 %v3134
        %v3321 = vpop.f32.mrf.mxu0
        %v3322 = vadd.f32 0.0, %v3321
        %v3323 = vpop.f32.mrf.mxu0
        %3324 = vmatprep.mubr.f32.mxu0 0.0
        %3325 = vmatmul.mubr.f32.gmra.mxu0 %v3137
        %v3326 = vpop.f32.mrf.mxu0
        %v3327 = vadd.f32 0.0, %v3326
        %v3328 = vpop.f32.mrf.mxu0
        %3329 = vmatprep.mubr.f32.mxu0 0.0
        %3330 = vmatmul.mubr.f32.gmra.mxu0 %v3140
        %v3331 = vpop.f32.mrf.mxu0
        %v3332 = vadd.f32 0.0, %v3331
        %v3333 = vpop.f32.mrf.mxu0
        %3334 = vmatprep.mubr.f32.mxu0 0.0
        %3335 = vmatmul.mubr.f32.gmra.mxu0 %v3143
        %v3336 = vpop.f32.mrf.mxu0
        %v3337 = vadd.f32 0.0, %v3336
        %v3338 = vpop.f32.mrf.mxu0
        %3339 = vmatprep.mubr.f32.mxu0 0.0
        %3340 = vmatmul.mubr.f32.gmra.mxu0 %v3146
        %v3341 = vpop.f32.mrf.mxu0
        %v3342 = vadd.f32 0.0, %v3341
        %v3343 = vpop.f32.mrf.mxu0
        %3344 = vmatprep.mubr.f32.mxu0 0.0
        %3345 = vmatmul.mubr.f32.gmra.mxu0 %v3149
        %v3346 = vpop.f32.mrf.mxu0
        %v3347 = vadd.f32 0.0, %v3346
        %v3348 = vpop.f32.mrf.mxu0
        %3349 = vmatprep.mubr.f32.mxu0 0.0
        %3350 = vmatmul.mubr.f32.gmra.mxu0 %v3152
        %v3351 = vpop.f32.mrf.mxu0
        %v3352 = vadd.f32 0.0, %v3351
        %v3353 = vpop.f32.mrf.mxu0
        %3354 = vmatprep.mubr.f32.mxu0 0.0
        %3355 = vmatmul.mubr.f32.gmra.mxu0 %v3155
        %v3356 = vpop.f32.mrf.mxu0
        %v3357 = vadd.f32 0.0, %v3356
        %v3358 = vpop.f32.mrf.mxu0
        %3359 = vmatprep.mubr.f32.mxu0 0.0
        %3360 = vmatmul.mubr.f32.gmra.mxu0 %v3158
        %v3361 = vpop.f32.mrf.mxu0
        %v3362 = vadd.f32 0.0, %v3361
        %v3363 = vpop.f32.mrf.mxu0
        %3364 = vmatprep.mubr.f32.mxu0 0.0
        %3365 = vmatmul.mubr.f32.gmra.mxu0 %v3161
        %v3366 = vpop.f32.mrf.mxu0
        %v3367 = vadd.f32 0.0, %v3366
        %v3368 = vpop.f32.mrf.mxu0
        %3369 = vmatprep.mubr.f32.mxu0 0.0
        %3370 = vmatmul.mubr.f32.gmra.mxu0 %v3164
        %v3371 = vpop.f32.mrf.mxu0
        %v3372 = vadd.f32 0.0, %v3371
        %v3373 = vpop.f32.mrf.mxu0
        %3374 = vmatprep.mubr.f32.mxu0 0.0
        %3375 = vmatmul.mubr.f32.gmra.mxu0 %v3167
        %v3376 = vpop.f32.mrf.mxu0
        %v3377 = vadd.f32 0.0, %v3376
        %v3378 = vpop.f32.mrf.mxu0
        %3379 = vmatprep.mubr.f32.mxu0 0.0
        %3380 = vmatmul.mubr.f32.gmra.mxu0 %v3170
        %v3381 = vpop.f32.mrf.mxu0
        %v3382 = vadd.f32 0.0, %v3381
        %v3383 = vpop.f32.mrf.mxu0
        %3384 = vmatprep.mubr.f32.mxu0 0.0
        %3385 = vmatmul.mubr.f32.gmra.mxu0 %v3173
        %v3386 = vpop.f32.mrf.mxu0
        %v3387 = vadd.f32 0.0, %v3386
        %v3388 = vpop.f32.mrf.mxu0
        %3389 = vmatprep.mubr.f32.mxu0 0.0
        %3390 = vmatmul.mubr.f32.gmra.mxu0 %v3176
        %v3391 = vpop.f32.mrf.mxu0
        %v3392 = vadd.f32 0.0, %v3391
        %v3393 = vpop.f32.mrf.mxu0
        %3394 = vmatprep.mubr.f32.mxu0 0.0
        %3395 = vmatmul.mubr.f32.gmra.mxu0 %v3179
        %v3396 = vpop.f32.mrf.mxu0
        %v3397 = vadd.f32 0.0, %v3396
        %v3398 = vpop.f32.mrf.mxu0
        %3399 = vmatprep.mubr.f32.mxu0 0.0
        %3400 = vmatmul.mubr.f32.gmra.mxu0 %v3182
        %v3401 = vpop.f32.mrf.mxu0
        %v3402 = vadd.f32 0.0, %v3401
        %v3403 = vpop.f32.mrf.mxu0
        %3404 = vmatprep.mubr.f32.mxu0 0.0
        %3405 = vmatmul.mubr.f32.gmra.mxu0 %v3185
        %v3406 = vpop.f32.mrf.mxu0
        %v3407 = vadd.f32 0.0, %v3406
        %v3408 = vpop.f32.mrf.mxu0
        %3409 = vmatprep.mubr.f32.mxu0 0.0
        %3410 = vmatmul.mubr.f32.gmra.mxu0 %v3188
        %v3411 = vpop.f32.mrf.mxu0
        %v3412 = vadd.f32 0.0, %v3411
        %v3413 = vpop.f32.mrf.mxu0
        %3414 = vdwg.mxu0
        %v3415 = vadd.f32 %v3029, %v3257
        %v3416 = vadd.f32 %v3030, %v3262
        %v3417 = vadd.f32 %v3031, %v3267
        %v3418 = vadd.f32 %v3032, %v3272
        %v3419 = vadd.f32 %v3033, %v3277
        %v3420 = vadd.f32 %v3034, %v3282
        %v3421 = vadd.f32 %v3035, %v3287
        %v3422 = vadd.f32 %v3036, %v3292
        %v3423 = vadd.f32 %v3037, %v3297
        %v3424 = vadd.f32 %v3038, %v3302
        %v3425 = vadd.f32 %v3039, %v3307
        %v3426 = vadd.f32 %v3040, %v3312
        %v3427 = vadd.f32 %v3041, %v3317
        %v3428 = vadd.f32 %v3042, %v3322
        %v3429 = vadd.f32 %v3043, %v3327
        %v3430 = vadd.f32 %v3044, %v3332
        %v3431 = vadd.f32 %v3045, %v3337
        %v3432 = vadd.f32 %v3046, %v3342
        %v3433 = vadd.f32 %v3047, %v3347
        %v3434 = vadd.f32 %v3048, %v3352
        %v3435 = vadd.f32 %v3049, %v3357
        %v3436 = vadd.f32 %v3050, %v3362
        %v3437 = vadd.f32 %v3051, %v3367
        %v3438 = vadd.f32 %v3052, %v3372
        %v3439 = vadd.f32 %v3053, %v3377
        %v3440 = vadd.f32 %v3054, %v3382
        %v3441 = vadd.f32 %v3055, %v3387
        %v3442 = vadd.f32 %v3056, %v3392
        %v3443 = vadd.f32 %v3057, %v3397
        %v3444 = vadd.f32 %v3058, %v3402
        %v3445 = vadd.f32 %v3059, %v3407
        %v3446 = vadd.f32 %v3060, %v3412
        %v3447 = vld [vmem:[%s3061 + $0x1] sm:$0xff]
        %v3448 = vld [vmem:[%s3061 + $0x9] sm:$0xff]
        %v3449 = vld [vmem:[%s3061 + $0x19] sm:$0xff]
        %v3450 = vld [vmem:[%s3061 + $0x21] sm:$0xff]
        %v3451 = vld [vmem:[%s3061 + $0x31] sm:$0xff]
        %v3452 = vld [vmem:[%s3061 + $0x39] sm:$0xff]
        %v3453 = vld [vmem:[%s3061 + $0x49] sm:$0xff]
        %v3454 = vld [vmem:[%s3061 + $0x51] sm:$0xff]
        %v3455 = vld [vmem:[%s3061 + $0x61] sm:$0xff]
        %v3456 = vld [vmem:[%s3061 + $0x69] sm:$0xff]
        %v3457 = vld [vmem:[%s3061 + $0x79] sm:$0xff]
        %v3458 = vld [vmem:[%s3061 + $0x81] sm:$0xff]
        %v3459 = vld [vmem:[%s3061 + $0x91] sm:$0xff]
        %v3460 = vld [vmem:[%s3061 + $0x99] sm:$0xff]
        %v3461 = vld [vmem:[%s3061 + $0xa9] sm:$0xff]
        %v3462 = vld [vmem:[%s3061 + $0xb1] sm:$0xff]
        %v3463 = vld [vmem:[%s3061 + $0xc1] sm:$0xff]
        %v3464 = vld [vmem:[%s3061 + $0xc9] sm:$0xff]
        %v3465 = vld [vmem:[%s3061 + $0xd9] sm:$0xff]
        %v3466 = vld [vmem:[%s3061 + $0xe1] sm:$0xff]
        %v3467 = vld [vmem:[%s3061 + $0xf1] sm:$0xff]
        %v3468 = vld [vmem:[%s3061 + $0xf9] sm:$0xff]
        %v3469 = vld [vmem:[%s3061 + $0x109] sm:$0xff]
        %v3470 = vld [vmem:[%s3061 + $0x111] sm:$0xff]
        %v3471 = vld [vmem:[%s3061 + $0x121] sm:$0xff]
        %v3472 = vld [vmem:[%s3061 + $0x129] sm:$0xff]
        %v3473 = vld [vmem:[%s3061 + $0x139] sm:$0xff]
        %v3474 = vld [vmem:[%s3061 + $0x141] sm:$0xff]
        %v3475 = vld [vmem:[%s3061 + $0x151] sm:$0xff]
        %v3476 = vld [vmem:[%s3061 + $0x159] sm:$0xff]
        %v3477 = vld [vmem:[%s3061 + $0x169] sm:$0xff]
        %v3478 = vld [vmem:[%s3061 + $0x171] sm:$0xff]
        %v3480 = vsel %vm312, %v3447, 0
        %v3483 = vsel %vm312, %v3448, 0
        %v3486 = vsel %vm312, %v3449, 0
        %v3489 = vsel %vm312, %v3450, 0
        %v3492 = vsel %vm312, %v3451, 0
        %v3495 = vsel %vm312, %v3452, 0
        %v3498 = vsel %vm312, %v3453, 0
        %v3501 = vsel %vm312, %v3454, 0
        %v3504 = vsel %vm312, %v3455, 0
        %v3507 = vsel %vm312, %v3456, 0
        %v3510 = vsel %vm312, %v3457, 0
        %v3513 = vsel %vm312, %v3458, 0
        %v3516 = vsel %vm312, %v3459, 0
        %v3519 = vsel %vm312, %v3460, 0
        %v3522 = vsel %vm312, %v3461, 0
        %v3525 = vsel %vm312, %v3462, 0
        %v3528 = vsel %vm312, %v3463, 0
        %v3531 = vsel %vm312, %v3464, 0
        %v3534 = vsel %vm312, %v3465, 0
        %v3537 = vsel %vm312, %v3466, 0
        %v3540 = vsel %vm312, %v3467, 0
        %v3543 = vsel %vm312, %v3468, 0
        %v3546 = vsel %vm312, %v3469, 0
        %v3549 = vsel %vm312, %v3470, 0
        %v3552 = vsel %vm312, %v3471, 0
        %v3555 = vsel %vm312, %v3472, 0
        %v3558 = vsel %vm312, %v3473, 0
        %v3561 = vsel %vm312, %v3474, 0
        %v3564 = vsel %vm312, %v3475, 0
        %v3567 = vsel %vm312, %v3476, 0
        %v3570 = vsel %vm312, %v3477, 0
        %v3573 = vsel %vm312, %v3478, 0
        %3575 = vmatprep.subr.mxu0 0.0
        %3576 = vmatpush1.msra.mxu0 0.0
        %3577 = vmatprep.subr.mxu0 0.0
        %3578 = vmatpush1.msra.mxu0 0.0
        %3579 = vmatprep.subr.mxu0 0.0
        %3580 = vmatpush1.msra.mxu0 0.0
        %3581 = vmatprep.subr.mxu0 0.0
        %3582 = vmatpush1.msra.mxu0 0.0
        %3583 = vmatprep.subr.mxu0 0.0
        %3584 = vmatpush1.msra.mxu0 0.0
        %3585 = vmatprep.subr.mxu0 0.0
        %3586 = vmatpush1.msra.mxu0 0.0
        %3587 = vmatprep.subr.mxu0 0.0
        %3588 = vmatpush1.msra.mxu0 0.0
        %3589 = vmatprep.subr.mxu0 0.0
        %3590 = vmatpush1.msra.mxu0 0.0
        %3591 = vmatprep.subr.mxu0 0.0
        %3592 = vmatpush1.msra.mxu0 0.0
        %3593 = vmatprep.subr.mxu0 0.0
        %3594 = vmatpush1.msra.mxu0 0.0
        %3595 = vmatprep.subr.mxu0 0.0
        %3596 = vmatpush1.msra.mxu0 0.0
        %3597 = vmatprep.subr.mxu0 0.0
        %3598 = vmatpush1.msra.mxu0 0.0
        %3599 = vmatprep.subr.mxu0 0.0
        %3600 = vmatpush1.msra.mxu0 %v734
        %3601 = vmatprep.subr.mxu0 0.0
        %3602 = vmatpush1.msra.mxu0 %v733
        %3603 = vmatprep.subr.mxu0 0.0
        %3604 = vmatpush1.msra.mxu0 %v732
        %3605 = vmatprep.subr.mxu0 0.0
        %3606 = vmatpush1.msra.mxu0 %v731
        %3607 = vmatprep.subr.mxu0 0.0
        %3608 = vmatpush2.msra.mxu0 0.0
        %3609 = vmatprep.subr.mxu0 0.0
        %3610 = vmatpush2.msra.mxu0 0.0
        %3611 = vmatprep.subr.mxu0 0.0
        %3612 = vmatpush2.msra.mxu0 0.0
        %3613 = vmatprep.subr.mxu0 0.0
        %3614 = vmatpush2.msra.mxu0 0.0
        %3615 = vmatprep.subr.mxu0 0.0
        %3616 = vmatpush2.msra.mxu0 0.0
        %3617 = vmatprep.subr.mxu0 0.0
        %3618 = vmatpush2.msra.mxu0 0.0
        %3619 = vmatprep.subr.mxu0 0.0
        %3620 = vmatpush2.msra.mxu0 0.0
        %3621 = vmatprep.subr.mxu0 0.0
        %3622 = vmatpush2.msra.mxu0 0.0
        %3623 = vmatprep.subr.mxu0 0.0
        %3624 = vmatpush2.msra.mxu0 0.0
        %3625 = vmatprep.subr.mxu0 0.0
        %3626 = vmatpush2.msra.mxu0 0.0
        %3627 = vmatprep.subr.mxu0 0.0
        %3628 = vmatpush2.msra.mxu0 0.0
        %3629 = vmatprep.subr.mxu0 0.0
        %3630 = vmatpush2.msra.mxu0 0.0
        %3631 = vmatprep.subr.mxu0 0.0
        %3632 = vmatpush2.msra.mxu0 0.0
        %3633 = vmatprep.subr.mxu0 0.0
        %3634 = vmatpush2.msra.mxu0 0.0
        %3635 = vmatprep.subr.mxu0 0.0
        %3636 = vmatpush2.msra.mxu0 0.0
        %3637 = vmatprep.subr.mxu0 0.0
        %3638 = vmatpush2.msra.mxu0 0.0
        %3639 = vmatprep.mubr.f32.mxu0 0.0
        %3640 = vmatmul.mubr.f32.gmra.mxu0 %v3480
        %v3641 = vpop.f32.mrf.mxu0
        %v3642 = vadd.f32 0.0, %v3641
        %v3643 = vpop.f32.mrf.mxu0
        %3644 = vmatprep.mubr.f32.mxu0 0.0
        %3645 = vmatmul.mubr.f32.gmra.mxu0 %v3483
        %v3646 = vpop.f32.mrf.mxu0
        %v3647 = vadd.f32 0.0, %v3646
        %v3648 = vpop.f32.mrf.mxu0
        %3649 = vmatprep.mubr.f32.mxu0 0.0
        %3650 = vmatmul.mubr.f32.gmra.mxu0 %v3486
        %v3651 = vpop.f32.mrf.mxu0
        %v3652 = vadd.f32 0.0, %v3651
        %v3653 = vpop.f32.mrf.mxu0
        %3654 = vmatprep.mubr.f32.mxu0 0.0
        %3655 = vmatmul.mubr.f32.gmra.mxu0 %v3489
        %v3656 = vpop.f32.mrf.mxu0
        %v3657 = vadd.f32 0.0, %v3656
        %v3658 = vpop.f32.mrf.mxu0
        %3659 = vmatprep.mubr.f32.mxu0 0.0
        %3660 = vmatmul.mubr.f32.gmra.mxu0 %v3492
        %v3661 = vpop.f32.mrf.mxu0
        %v3662 = vadd.f32 0.0, %v3661
        %v3663 = vpop.f32.mrf.mxu0
        %3664 = vmatprep.mubr.f32.mxu0 0.0
        %3665 = vmatmul.mubr.f32.gmra.mxu0 %v3495
        %v3666 = vpop.f32.mrf.mxu0
        %v3667 = vadd.f32 0.0, %v3666
        %v3668 = vpop.f32.mrf.mxu0
        %3669 = vmatprep.mubr.f32.mxu0 0.0
        %3670 = vmatmul.mubr.f32.gmra.mxu0 %v3498
        %v3671 = vpop.f32.mrf.mxu0
        %v3672 = vadd.f32 0.0, %v3671
        %v3673 = vpop.f32.mrf.mxu0
        %3674 = vmatprep.mubr.f32.mxu0 0.0
        %3675 = vmatmul.mubr.f32.gmra.mxu0 %v3501
        %v3676 = vpop.f32.mrf.mxu0
        %v3677 = vadd.f32 0.0, %v3676
        %v3678 = vpop.f32.mrf.mxu0
        %3679 = vmatprep.mubr.f32.mxu0 0.0
        %3680 = vmatmul.mubr.f32.gmra.mxu0 %v3504
        %v3681 = vpop.f32.mrf.mxu0
        %v3682 = vadd.f32 0.0, %v3681
        %v3683 = vpop.f32.mrf.mxu0
        %3684 = vmatprep.mubr.f32.mxu0 0.0
        %3685 = vmatmul.mubr.f32.gmra.mxu0 %v3507
        %v3686 = vpop.f32.mrf.mxu0
        %v3687 = vadd.f32 0.0, %v3686
        %v3688 = vpop.f32.mrf.mxu0
        %3689 = vmatprep.mubr.f32.mxu0 0.0
        %3690 = vmatmul.mubr.f32.gmra.mxu0 %v3510
        %v3691 = vpop.f32.mrf.mxu0
        %v3692 = vadd.f32 0.0, %v3691
        %v3693 = vpop.f32.mrf.mxu0
        %3694 = vmatprep.mubr.f32.mxu0 0.0
        %3695 = vmatmul.mubr.f32.gmra.mxu0 %v3513
        %v3696 = vpop.f32.mrf.mxu0
        %v3697 = vadd.f32 0.0, %v3696
        %v3698 = vpop.f32.mrf.mxu0
        %3699 = vmatprep.mubr.f32.mxu0 0.0
        %3700 = vmatmul.mubr.f32.gmra.mxu0 %v3516
        %v3701 = vpop.f32.mrf.mxu0
        %v3702 = vadd.f32 0.0, %v3701
        %v3703 = vpop.f32.mrf.mxu0
        %3704 = vmatprep.mubr.f32.mxu0 0.0
        %3705 = vmatmul.mubr.f32.gmra.mxu0 %v3519
        %v3706 = vpop.f32.mrf.mxu0
        %v3707 = vadd.f32 0.0, %v3706
        %v3708 = vpop.f32.mrf.mxu0
        %3709 = vmatprep.mubr.f32.mxu0 0.0
        %3710 = vmatmul.mubr.f32.gmra.mxu0 %v3522
        %v3711 = vpop.f32.mrf.mxu0
        %v3712 = vadd.f32 0.0, %v3711
        %v3713 = vpop.f32.mrf.mxu0
        %3714 = vmatprep.mubr.f32.mxu0 0.0
        %3715 = vmatmul.mubr.f32.gmra.mxu0 %v3525
        %v3716 = vpop.f32.mrf.mxu0
        %v3717 = vadd.f32 0.0, %v3716
        %v3718 = vpop.f32.mrf.mxu0
        %3719 = vmatprep.mubr.f32.mxu0 0.0
        %3720 = vmatmul.mubr.f32.gmra.mxu0 %v3528
        %v3721 = vpop.f32.mrf.mxu0
        %v3722 = vadd.f32 0.0, %v3721
        %v3723 = vpop.f32.mrf.mxu0
        %3724 = vmatprep.mubr.f32.mxu0 0.0
        %3725 = vmatmul.mubr.f32.gmra.mxu0 %v3531
        %v3726 = vpop.f32.mrf.mxu0
        %v3727 = vadd.f32 0.0, %v3726
        %v3728 = vpop.f32.mrf.mxu0
        %3729 = vmatprep.mubr.f32.mxu0 0.0
        %3730 = vmatmul.mubr.f32.gmra.mxu0 %v3534
        %v3731 = vpop.f32.mrf.mxu0
        %v3732 = vadd.f32 0.0, %v3731
        %v3733 = vpop.f32.mrf.mxu0
        %3734 = vmatprep.mubr.f32.mxu0 0.0
        %3735 = vmatmul.mubr.f32.gmra.mxu0 %v3537
        %v3736 = vpop.f32.mrf.mxu0
        %v3737 = vadd.f32 0.0, %v3736
        %v3738 = vpop.f32.mrf.mxu0
        %3739 = vmatprep.mubr.f32.mxu0 0.0
        %3740 = vmatmul.mubr.f32.gmra.mxu0 %v3540
        %v3741 = vpop.f32.mrf.mxu0
        %v3742 = vadd.f32 0.0, %v3741
        %v3743 = vpop.f32.mrf.mxu0
        %3744 = vmatprep.mubr.f32.mxu0 0.0
        %3745 = vmatmul.mubr.f32.gmra.mxu0 %v3543
        %v3746 = vpop.f32.mrf.mxu0
        %v3747 = vadd.f32 0.0, %v3746
        %v3748 = vpop.f32.mrf.mxu0
        %3749 = vmatprep.mubr.f32.mxu0 0.0
        %3750 = vmatmul.mubr.f32.gmra.mxu0 %v3546
        %v3751 = vpop.f32.mrf.mxu0
        %v3752 = vadd.f32 0.0, %v3751
        %v3753 = vpop.f32.mrf.mxu0
        %3754 = vmatprep.mubr.f32.mxu0 0.0
        %3755 = vmatmul.mubr.f32.gmra.mxu0 %v3549
        %v3756 = vpop.f32.mrf.mxu0
        %v3757 = vadd.f32 0.0, %v3756
        %v3758 = vpop.f32.mrf.mxu0
        %3759 = vmatprep.mubr.f32.mxu0 0.0
        %3760 = vmatmul.mubr.f32.gmra.mxu0 %v3552
        %v3761 = vpop.f32.mrf.mxu0
        %v3762 = vadd.f32 0.0, %v3761
        %v3763 = vpop.f32.mrf.mxu0
        %3764 = vmatprep.mubr.f32.mxu0 0.0
        %3765 = vmatmul.mubr.f32.gmra.mxu0 %v3555
        %v3766 = vpop.f32.mrf.mxu0
        %v3767 = vadd.f32 0.0, %v3766
        %v3768 = vpop.f32.mrf.mxu0
        %3769 = vmatprep.mubr.f32.mxu0 0.0
        %3770 = vmatmul.mubr.f32.gmra.mxu0 %v3558
        %v3771 = vpop.f32.mrf.mxu0
        %v3772 = vadd.f32 0.0, %v3771
        %v3773 = vpop.f32.mrf.mxu0
        %3774 = vmatprep.mubr.f32.mxu0 0.0
        %3775 = vmatmul.mubr.f32.gmra.mxu0 %v3561
        %v3776 = vpop.f32.mrf.mxu0
        %v3777 = vadd.f32 0.0, %v3776
        %v3778 = vpop.f32.mrf.mxu0
        %3779 = vmatprep.mubr.f32.mxu0 0.0
        %3780 = vmatmul.mubr.f32.gmra.mxu0 %v3564
        %v3781 = vpop.f32.mrf.mxu0
        %v3782 = vadd.f32 0.0, %v3781
        %v3783 = vpop.f32.mrf.mxu0
        %3784 = vmatprep.mubr.f32.mxu0 0.0
        %3785 = vmatmul.mubr.f32.gmra.mxu0 %v3567
        %v3786 = vpop.f32.mrf.mxu0
        %v3787 = vadd.f32 0.0, %v3786
        %v3788 = vpop.f32.mrf.mxu0
        %3789 = vmatprep.mubr.f32.mxu0 0.0
        %3790 = vmatmul.mubr.f32.gmra.mxu0 %v3570
        %v3791 = vpop.f32.mrf.mxu0
        %v3792 = vadd.f32 0.0, %v3791
        %v3793 = vpop.f32.mrf.mxu0
        %3794 = vmatprep.mubr.f32.mxu0 0.0
        %3795 = vmatmul.mubr.f32.gmra.mxu0 %v3573
        %v3796 = vpop.f32.mrf.mxu0
        %v3797 = vadd.f32 0.0, %v3796
        %v3798 = vpop.f32.mrf.mxu0
        %3799 = vdwg.mxu0
        %v3800 = vadd.f32 %v3415, %v3642
        %v3801 = vadd.f32 %v3416, %v3647
        %v3802 = vadd.f32 %v3417, %v3652
        %v3803 = vadd.f32 %v3418, %v3657
        %v3804 = vadd.f32 %v3419, %v3662
        %v3805 = vadd.f32 %v3420, %v3667
        %v3806 = vadd.f32 %v3421, %v3672
        %v3807 = vadd.f32 %v3422, %v3677
        %v3808 = vadd.f32 %v3423, %v3682
        %v3809 = vadd.f32 %v3424, %v3687
        %v3810 = vadd.f32 %v3425, %v3692
        %v3811 = vadd.f32 %v3426, %v3697
        %v3812 = vadd.f32 %v3427, %v3702
        %v3813 = vadd.f32 %v3428, %v3707
        %v3814 = vadd.f32 %v3429, %v3712
        %v3815 = vadd.f32 %v3430, %v3717
        %v3816 = vadd.f32 %v3431, %v3722
        %v3817 = vadd.f32 %v3432, %v3727
        %v3818 = vadd.f32 %v3433, %v3732
        %v3819 = vadd.f32 %v3434, %v3737
        %v3820 = vadd.f32 %v3435, %v3742
        %v3821 = vadd.f32 %v3436, %v3747
        %v3822 = vadd.f32 %v3437, %v3752
        %v3823 = vadd.f32 %v3438, %v3757
        %v3824 = vadd.f32 %v3439, %v3762
        %v3825 = vadd.f32 %v3440, %v3767
        %v3826 = vadd.f32 %v3441, %v3772
        %v3827 = vadd.f32 %v3442, %v3777
        %v3828 = vadd.f32 %v3443, %v3782
        %v3829 = vadd.f32 %v3444, %v3787
        %v3830 = vadd.f32 %v3445, %v3792
        %v3831 = vadd.f32 %v3446, %v3797
        %v3832 = vld [vmem:[%s3061 + $0x2] sm:$0xff]
        %v3833 = vld [vmem:[%s3061 + $0xa] sm:$0xff]
        %v3834 = vld [vmem:[%s3061 + $0x1a] sm:$0xff]
        %v3835 = vld [vmem:[%s3061 + $0x22] sm:$0xff]
        %v3836 = vld [vmem:[%s3061 + $0x32] sm:$0xff]
        %v3837 = vld [vmem:[%s3061 + $0x3a] sm:$0xff]
        %v3838 = vld [vmem:[%s3061 + $0x4a] sm:$0xff]
        %v3839 = vld [vmem:[%s3061 + $0x52] sm:$0xff]
        %v3840 = vld [vmem:[%s3061 + $0x62] sm:$0xff]
        %v3841 = vld [vmem:[%s3061 + $0x6a] sm:$0xff]
        %v3842 = vld [vmem:[%s3061 + $0x7a] sm:$0xff]
        %v3843 = vld [vmem:[%s3061 + $0x82] sm:$0xff]
        %v3844 = vld [vmem:[%s3061 + $0x92] sm:$0xff]
        %v3845 = vld [vmem:[%s3061 + $0x9a] sm:$0xff]
        %v3846 = vld [vmem:[%s3061 + $0xaa] sm:$0xff]
        %v3847 = vld [vmem:[%s3061 + $0xb2] sm:$0xff]
        %v3848 = vld [vmem:[%s3061 + $0xc2] sm:$0xff]
        %v3849 = vld [vmem:[%s3061 + $0xca] sm:$0xff]
        %v3850 = vld [vmem:[%s3061 + $0xda] sm:$0xff]
        %v3851 = vld [vmem:[%s3061 + $0xe2] sm:$0xff]
        %v3852 = vld [vmem:[%s3061 + $0xf2] sm:$0xff]
        %v3853 = vld [vmem:[%s3061 + $0xfa] sm:$0xff]
        %v3854 = vld [vmem:[%s3061 + $0x10a] sm:$0xff]
        %v3855 = vld [vmem:[%s3061 + $0x112] sm:$0xff]
        %v3856 = vld [vmem:[%s3061 + $0x122] sm:$0xff]
        %v3857 = vld [vmem:[%s3061 + $0x12a] sm:$0xff]
        %v3858 = vld [vmem:[%s3061 + $0x13a] sm:$0xff]
        %v3859 = vld [vmem:[%s3061 + $0x142] sm:$0xff]
        %v3860 = vld [vmem:[%s3061 + $0x152] sm:$0xff]
        %v3861 = vld [vmem:[%s3061 + $0x15a] sm:$0xff]
        %v3862 = vld [vmem:[%s3061 + $0x16a] sm:$0xff]
        %v3863 = vld [vmem:[%s3061 + $0x172] sm:$0xff]
        %v3865 = vsel %vm312, %v3832, 0
        %v3868 = vsel %vm312, %v3833, 0
        %v3871 = vsel %vm312, %v3834, 0
        %v3874 = vsel %vm312, %v3835, 0
        %v3877 = vsel %vm312, %v3836, 0
        %v3880 = vsel %vm312, %v3837, 0
        %v3883 = vsel %vm312, %v3838, 0
        %v3886 = vsel %vm312, %v3839, 0
        %v3889 = vsel %vm312, %v3840, 0
        %v3892 = vsel %vm312, %v3841, 0
        %v3895 = vsel %vm312, %v3842, 0
        %v3898 = vsel %vm312, %v3843, 0
        %v3901 = vsel %vm312, %v3844, 0
        %v3904 = vsel %vm312, %v3845, 0
        %v3907 = vsel %vm312, %v3846, 0
        %v3910 = vsel %vm312, %v3847, 0
        %v3913 = vsel %vm312, %v3848, 0
        %v3916 = vsel %vm312, %v3849, 0
        %v3919 = vsel %vm312, %v3850, 0
        %v3922 = vsel %vm312, %v3851, 0
        %v3925 = vsel %vm312, %v3852, 0
        %v3928 = vsel %vm312, %v3853, 0
        %v3931 = vsel %vm312, %v3854, 0
        %v3934 = vsel %vm312, %v3855, 0
        %v3937 = vsel %vm312, %v3856, 0
        %v3940 = vsel %vm312, %v3857, 0
        %v3943 = vsel %vm312, %v3858, 0
        %v3946 = vsel %vm312, %v3859, 0
        %v3949 = vsel %vm312, %v3860, 0
        %v3952 = vsel %vm312, %v3861, 0
        %v3955 = vsel %vm312, %v3862, 0
        %v3958 = vsel %vm312, %v3863, 0
        %3960 = vmatprep.subr.mxu0 0.0
        %3961 = vmatpush1.msra.mxu0 0.0
        %3962 = vmatprep.subr.mxu0 0.0
        %3963 = vmatpush1.msra.mxu0 0.0
        %3964 = vmatprep.subr.mxu0 0.0
        %3965 = vmatpush1.msra.mxu0 0.0
        %3966 = vmatprep.subr.mxu0 0.0
        %3967 = vmatpush1.msra.mxu0 0.0
        %3968 = vmatprep.subr.mxu0 0.0
        %3969 = vmatpush1.msra.mxu0 0.0
        %3970 = vmatprep.subr.mxu0 0.0
        %3971 = vmatpush1.msra.mxu0 0.0
        %3972 = vmatprep.subr.mxu0 0.0
        %3973 = vmatpush1.msra.mxu0 0.0
        %3974 = vmatprep.subr.mxu0 0.0
        %3975 = vmatpush1.msra.mxu0 0.0
        %3976 = vmatprep.subr.mxu0 0.0
        %3977 = vmatpush1.msra.mxu0 0.0
        %3978 = vmatprep.subr.mxu0 0.0
        %3979 = vmatpush1.msra.mxu0 0.0
        %3980 = vmatprep.subr.mxu0 0.0
        %3981 = vmatpush1.msra.mxu0 0.0
        %3982 = vmatprep.subr.mxu0 0.0
        %3983 = vmatpush1.msra.mxu0 0.0
        %3984 = vmatprep.subr.mxu0 0.0
        %3985 = vmatpush1.msra.mxu0 %v738
        %3986 = vmatprep.subr.mxu0 0.0
        %3987 = vmatpush1.msra.mxu0 %v737
        %3988 = vmatprep.subr.mxu0 0.0
        %3989 = vmatpush1.msra.mxu0 %v736
        %3990 = vmatprep.subr.mxu0 0.0
        %3991 = vmatpush1.msra.mxu0 %v735
        %3992 = vmatprep.subr.mxu0 0.0
        %3993 = vmatpush2.msra.mxu0 0.0
        %3994 = vmatprep.subr.mxu0 0.0
        %3995 = vmatpush2.msra.mxu0 0.0
        %3996 = vmatprep.subr.mxu0 0.0
        %3997 = vmatpush2.msra.mxu0 0.0
        %3998 = vmatprep.subr.mxu0 0.0
        %3999 = vmatpush2.msra.mxu0 0.0
        %4000 = vmatprep.subr.mxu0 0.0
        %4001 = vmatpush2.msra.mxu0 0.0
        %4002 = vmatprep.subr.mxu0 0.0
        %4003 = vmatpush2.msra.mxu0 0.0
        %4004 = vmatprep.subr.mxu0 0.0
        %4005 = vmatpush2.msra.mxu0 0.0
        %4006 = vmatprep.subr.mxu0 0.0
        %4007 = vmatpush2.msra.mxu0 0.0
        %4008 = vmatprep.subr.mxu0 0.0
        %4009 = vmatpush2.msra.mxu0 0.0
        %4010 = vmatprep.subr.mxu0 0.0
        %4011 = vmatpush2.msra.mxu0 0.0
        %4012 = vmatprep.subr.mxu0 0.0
        %4013 = vmatpush2.msra.mxu0 0.0
        %4014 = vmatprep.subr.mxu0 0.0
        %4015 = vmatpush2.msra.mxu0 0.0
        %4016 = vmatprep.subr.mxu0 0.0
        %4017 = vmatpush2.msra.mxu0 0.0
        %4018 = vmatprep.subr.mxu0 0.0
        %4019 = vmatpush2.msra.mxu0 0.0
        %4020 = vmatprep.subr.mxu0 0.0
        %4021 = vmatpush2.msra.mxu0 0.0
        %4022 = vmatprep.subr.mxu0 0.0
        %4023 = vmatpush2.msra.mxu0 0.0
        %4024 = vmatprep.mubr.f32.mxu0 0.0
        %4025 = vmatmul.mubr.f32.gmra.mxu0 %v3865
        %v4026 = vpop.f32.mrf.mxu0
        %v4027 = vadd.f32 0.0, %v4026
        %v4028 = vpop.f32.mrf.mxu0
        %4029 = vmatprep.mubr.f32.mxu0 0.0
        %4030 = vmatmul.mubr.f32.gmra.mxu0 %v3868
        %v4031 = vpop.f32.mrf.mxu0
        %v4032 = vadd.f32 0.0, %v4031
        %v4033 = vpop.f32.mrf.mxu0
        %4034 = vmatprep.mubr.f32.mxu0 0.0
        %4035 = vmatmul.mubr.f32.gmra.mxu0 %v3871
        %v4036 = vpop.f32.mrf.mxu0
        %v4037 = vadd.f32 0.0, %v4036
        %v4038 = vpop.f32.mrf.mxu0
        %4039 = vmatprep.mubr.f32.mxu0 0.0
        %4040 = vmatmul.mubr.f32.gmra.mxu0 %v3874
        %v4041 = vpop.f32.mrf.mxu0
        %v4042 = vadd.f32 0.0, %v4041
        %v4043 = vpop.f32.mrf.mxu0
        %4044 = vmatprep.mubr.f32.mxu0 0.0
        %4045 = vmatmul.mubr.f32.gmra.mxu0 %v3877
        %v4046 = vpop.f32.mrf.mxu0
        %v4047 = vadd.f32 0.0, %v4046
        %v4048 = vpop.f32.mrf.mxu0
        %4049 = vmatprep.mubr.f32.mxu0 0.0
        %4050 = vmatmul.mubr.f32.gmra.mxu0 %v3880
        %v4051 = vpop.f32.mrf.mxu0
        %v4052 = vadd.f32 0.0, %v4051
        %v4053 = vpop.f32.mrf.mxu0
        %4054 = vmatprep.mubr.f32.mxu0 0.0
        %4055 = vmatmul.mubr.f32.gmra.mxu0 %v3883
        %v4056 = vpop.f32.mrf.mxu0
        %v4057 = vadd.f32 0.0, %v4056
        %v4058 = vpop.f32.mrf.mxu0
        %4059 = vmatprep.mubr.f32.mxu0 0.0
        %4060 = vmatmul.mubr.f32.gmra.mxu0 %v3886
        %v4061 = vpop.f32.mrf.mxu0
        %v4062 = vadd.f32 0.0, %v4061
        %v4063 = vpop.f32.mrf.mxu0
        %4064 = vmatprep.mubr.f32.mxu0 0.0
        %4065 = vmatmul.mubr.f32.gmra.mxu0 %v3889
        %v4066 = vpop.f32.mrf.mxu0
        %v4067 = vadd.f32 0.0, %v4066
        %v4068 = vpop.f32.mrf.mxu0
        %4069 = vmatprep.mubr.f32.mxu0 0.0
        %4070 = vmatmul.mubr.f32.gmra.mxu0 %v3892
        %v4071 = vpop.f32.mrf.mxu0
        %v4072 = vadd.f32 0.0, %v4071
        %v4073 = vpop.f32.mrf.mxu0
        %4074 = vmatprep.mubr.f32.mxu0 0.0
        %4075 = vmatmul.mubr.f32.gmra.mxu0 %v3895
        %v4076 = vpop.f32.mrf.mxu0
        %v4077 = vadd.f32 0.0, %v4076
        %v4078 = vpop.f32.mrf.mxu0
        %4079 = vmatprep.mubr.f32.mxu0 0.0
        %4080 = vmatmul.mubr.f32.gmra.mxu0 %v3898
        %v4081 = vpop.f32.mrf.mxu0
        %v4082 = vadd.f32 0.0, %v4081
        %v4083 = vpop.f32.mrf.mxu0
        %4084 = vmatprep.mubr.f32.mxu0 0.0
        %4085 = vmatmul.mubr.f32.gmra.mxu0 %v3901
        %v4086 = vpop.f32.mrf.mxu0
        %v4087 = vadd.f32 0.0, %v4086
        %v4088 = vpop.f32.mrf.mxu0
        %4089 = vmatprep.mubr.f32.mxu0 0.0
        %4090 = vmatmul.mubr.f32.gmra.mxu0 %v3904
        %v4091 = vpop.f32.mrf.mxu0
        %v4092 = vadd.f32 0.0, %v4091
        %v4093 = vpop.f32.mrf.mxu0
        %4094 = vmatprep.mubr.f32.mxu0 0.0
        %4095 = vmatmul.mubr.f32.gmra.mxu0 %v3907
        %v4096 = vpop.f32.mrf.mxu0
        %v4097 = vadd.f32 0.0, %v4096
        %v4098 = vpop.f32.mrf.mxu0
        %4099 = vmatprep.mubr.f32.mxu0 0.0
        %4100 = vmatmul.mubr.f32.gmra.mxu0 %v3910
        %v4101 = vpop.f32.mrf.mxu0
        %v4102 = vadd.f32 0.0, %v4101
        %v4103 = vpop.f32.mrf.mxu0
        %4104 = vmatprep.mubr.f32.mxu0 0.0
        %4105 = vmatmul.mubr.f32.gmra.mxu0 %v3913
        %v4106 = vpop.f32.mrf.mxu0
        %v4107 = vadd.f32 0.0, %v4106
        %v4108 = vpop.f32.mrf.mxu0
        %4109 = vmatprep.mubr.f32.mxu0 0.0
        %4110 = vmatmul.mubr.f32.gmra.mxu0 %v3916
        %v4111 = vpop.f32.mrf.mxu0
        %v4112 = vadd.f32 0.0, %v4111
        %v4113 = vpop.f32.mrf.mxu0
        %4114 = vmatprep.mubr.f32.mxu0 0.0
        %4115 = vmatmul.mubr.f32.gmra.mxu0 %v3919
        %v4116 = vpop.f32.mrf.mxu0
        %v4117 = vadd.f32 0.0, %v4116
        %v4118 = vpop.f32.mrf.mxu0
        %4119 = vmatprep.mubr.f32.mxu0 0.0
        %4120 = vmatmul.mubr.f32.gmra.mxu0 %v3922
        %v4121 = vpop.f32.mrf.mxu0
        %v4122 = vadd.f32 0.0, %v4121
        %v4123 = vpop.f32.mrf.mxu0
        %4124 = vmatprep.mubr.f32.mxu0 0.0
        %4125 = vmatmul.mubr.f32.gmra.mxu0 %v3925
        %v4126 = vpop.f32.mrf.mxu0
        %v4127 = vadd.f32 0.0, %v4126
        %v4128 = vpop.f32.mrf.mxu0
        %4129 = vmatprep.mubr.f32.mxu0 0.0
        %4130 = vmatmul.mubr.f32.gmra.mxu0 %v3928
        %v4131 = vpop.f32.mrf.mxu0
        %v4132 = vadd.f32 0.0, %v4131
        %v4133 = vpop.f32.mrf.mxu0
        %4134 = vmatprep.mubr.f32.mxu0 0.0
        %4135 = vmatmul.mubr.f32.gmra.mxu0 %v3931
        %v4136 = vpop.f32.mrf.mxu0
        %v4137 = vadd.f32 0.0, %v4136
        %v4138 = vpop.f32.mrf.mxu0
        %4139 = vmatprep.mubr.f32.mxu0 0.0
        %4140 = vmatmul.mubr.f32.gmra.mxu0 %v3934
        %v4141 = vpop.f32.mrf.mxu0
        %v4142 = vadd.f32 0.0, %v4141
        %v4143 = vpop.f32.mrf.mxu0
        %4144 = vmatprep.mubr.f32.mxu0 0.0
        %4145 = vmatmul.mubr.f32.gmra.mxu0 %v3937
        %v4146 = vpop.f32.mrf.mxu0
        %v4147 = vadd.f32 0.0, %v4146
        %v4148 = vpop.f32.mrf.mxu0
        %4149 = vmatprep.mubr.f32.mxu0 0.0
        %4150 = vmatmul.mubr.f32.gmra.mxu0 %v3940
        %v4151 = vpop.f32.mrf.mxu0
        %v4152 = vadd.f32 0.0, %v4151
        %v4153 = vpop.f32.mrf.mxu0
        %4154 = vmatprep.mubr.f32.mxu0 0.0
        %4155 = vmatmul.mubr.f32.gmra.mxu0 %v3943
        %v4156 = vpop.f32.mrf.mxu0
        %v4157 = vadd.f32 0.0, %v4156
        %v4158 = vpop.f32.mrf.mxu0
        %4159 = vmatprep.mubr.f32.mxu0 0.0
        %4160 = vmatmul.mubr.f32.gmra.mxu0 %v3946
        %v4161 = vpop.f32.mrf.mxu0
        %v4162 = vadd.f32 0.0, %v4161
        %v4163 = vpop.f32.mrf.mxu0
        %4164 = vmatprep.mubr.f32.mxu0 0.0
        %4165 = vmatmul.mubr.f32.gmra.mxu0 %v3949
        %v4166 = vpop.f32.mrf.mxu0
        %v4167 = vadd.f32 0.0, %v4166
        %v4168 = vpop.f32.mrf.mxu0
        %4169 = vmatprep.mubr.f32.mxu0 0.0
        %4170 = vmatmul.mubr.f32.gmra.mxu0 %v3952
        %v4171 = vpop.f32.mrf.mxu0
        %v4172 = vadd.f32 0.0, %v4171
        %v4173 = vpop.f32.mrf.mxu0
        %4174 = vmatprep.mubr.f32.mxu0 0.0
        %4175 = vmatmul.mubr.f32.gmra.mxu0 %v3955
        %v4176 = vpop.f32.mrf.mxu0
        %v4177 = vadd.f32 0.0, %v4176
        %v4178 = vpop.f32.mrf.mxu0
        %4179 = vmatprep.mubr.f32.mxu0 0.0
        %4180 = vmatmul.mubr.f32.gmra.mxu0 %v3958
        %v4181 = vpop.f32.mrf.mxu0
        %v4182 = vadd.f32 0.0, %v4181
        %v4183 = vpop.f32.mrf.mxu0
        %4184 = vdwg.mxu0
        %v4185 = vadd.f32 %v3800, %v4027
        %v4186 = vadd.f32 %v3801, %v4032
        %v4187 = vadd.f32 %v3802, %v4037
        %v4188 = vadd.f32 %v3803, %v4042
        %v4189 = vadd.f32 %v3804, %v4047
        %v4190 = vadd.f32 %v3805, %v4052
        %v4191 = vadd.f32 %v3806, %v4057
        %v4192 = vadd.f32 %v3807, %v4062
        %v4193 = vadd.f32 %v3808, %v4067
        %v4194 = vadd.f32 %v3809, %v4072
        %v4195 = vadd.f32 %v3810, %v4077
        %v4196 = vadd.f32 %v3811, %v4082
        %v4197 = vadd.f32 %v3812, %v4087
        %v4198 = vadd.f32 %v3813, %v4092
        %v4199 = vadd.f32 %v3814, %v4097
        %v4200 = vadd.f32 %v3815, %v4102
        %v4201 = vadd.f32 %v3816, %v4107
        %v4202 = vadd.f32 %v3817, %v4112
        %v4203 = vadd.f32 %v3818, %v4117
        %v4204 = vadd.f32 %v3819, %v4122
        %v4205 = vadd.f32 %v3820, %v4127
        %v4206 = vadd.f32 %v3821, %v4132
        %v4207 = vadd.f32 %v3822, %v4137
        %v4208 = vadd.f32 %v3823, %v4142
        %v4209 = vadd.f32 %v3824, %v4147
        %v4210 = vadd.f32 %v3825, %v4152
        %v4211 = vadd.f32 %v3826, %v4157
        %v4212 = vadd.f32 %v3827, %v4162
        %v4213 = vadd.f32 %v3828, %v4167
        %v4214 = vadd.f32 %v3829, %v4172
        %v4215 = vadd.f32 %v3830, %v4177
        %v4216 = vadd.f32 %v3831, %v4182
        %v4217 = vmax.f32 %v4185, 0.0
        %v4218 = vmax.f32 %v4186, 0.0
        %v4219 = vmax.f32 %v4187, 0.0
        %v4220 = vmax.f32 %v4188, 0.0
        %v4221 = vmax.f32 %v4189, 0.0
        %v4222 = vmax.f32 %v4190, 0.0
        %v4223 = vmax.f32 %v4191, 0.0
        %v4224 = vmax.f32 %v4192, 0.0
        %v4225 = vmax.f32 %v4193, 0.0
        %v4226 = vmax.f32 %v4194, 0.0
        %v4227 = vmax.f32 %v4195, 0.0
        %v4228 = vmax.f32 %v4196, 0.0
        %v4229 = vmax.f32 %v4197, 0.0
        %v4230 = vmax.f32 %v4198, 0.0
        %v4231 = vmax.f32 %v4199, 0.0
        %v4232 = vmax.f32 %v4200, 0.0
        %v4233 = vmax.f32 %v4201, 0.0
        %v4234 = vmax.f32 %v4202, 0.0
        %v4235 = vmax.f32 %v4203, 0.0
        %v4236 = vmax.f32 %v4204, 0.0
        %v4237 = vmax.f32 %v4205, 0.0
        %v4238 = vmax.f32 %v4206, 0.0
        %v4239 = vmax.f32 %v4207, 0.0
        %v4240 = vmax.f32 %v4208, 0.0
        %v4241 = vmax.f32 %v4209, 0.0
        %v4242 = vmax.f32 %v4210, 0.0
        %v4243 = vmax.f32 %v4211, 0.0
        %v4244 = vmax.f32 %v4212, 0.0
        %v4245 = vmax.f32 %v4213, 0.0
        %v4246 = vmax.f32 %v4214, 0.0
        %v4247 = vmax.f32 %v4215, 0.0
        %v4248 = vmax.f32 %v4216, 0.0
        %v4250 = vlaneseq
        %v4251 = vshrl.u32 %v4250, 7
        %v4252 = vsub.s32 0, %v4251
        %v4253 = vrot.slane %v744, %v4252
        %v4256 = vsel %vm312, %v4217, 0
        %v4259 = vsel %vm312, %v4218, 0
        %v4262 = vsel %vm312, %v4219, 0
        %v4265 = vsel %vm312, %v4220, 0
        %v4268 = vsel %vm312, %v4221, 0
        %v4271 = vsel %vm312, %v4222, 0
        %v4274 = vsel %vm312, %v4223, 0
        %v4277 = vsel %vm312, %v4224, 0
        %v4280 = vsel %vm312, %v4225, 0
        %v4283 = vsel %vm312, %v4226, 0
        %v4286 = vsel %vm312, %v4227, 0
        %v4289 = vsel %vm312, %v4228, 0
        %v4292 = vsel %vm312, %v4229, 0
        %v4295 = vsel %vm312, %v4230, 0
        %v4298 = vsel %vm312, %v4231, 0
        %v4301 = vsel %vm312, %v4232, 0
        %v4304 = vsel %vm312, %v4233, 0
        %v4307 = vsel %vm312, %v4234, 0
        %v4310 = vsel %vm312, %v4235, 0
        %v4313 = vsel %vm312, %v4236, 0
        %v4316 = vsel %vm312, %v4237, 0
        %v4319 = vsel %vm312, %v4238, 0
        %v4322 = vsel %vm312, %v4239, 0
        %v4325 = vsel %vm312, %v4240, 0
        %v4328 = vsel %vm312, %v4241, 0
        %v4331 = vsel %vm312, %v4242, 0
        %v4334 = vsel %vm312, %v4243, 0
        %v4337 = vsel %vm312, %v4244, 0
        %v4340 = vsel %vm312, %v4245, 0
        %v4343 = vsel %vm312, %v4246, 0
        %v4346 = vsel %vm312, %v4247, 0
        %v4349 = vsel %vm312, %v4248, 0
        %4351 = vmatprep.subr.mxu0 0.0
        %4352 = vmatpush1.msra.mxu0 0.0
        %4353 = vmatprep.subr.mxu0 0.0
        %4354 = vmatpush1.msra.mxu0 0.0
        %4355 = vmatprep.subr.mxu0 0.0
        %4356 = vmatpush1.msra.mxu0 0.0
        %4357 = vmatprep.subr.mxu0 0.0
        %4358 = vmatpush1.msra.mxu0 0.0
        %4359 = vmatprep.subr.mxu0 0.0
        %4360 = vmatpush1.msra.mxu0 0.0
        %4361 = vmatprep.subr.mxu0 0.0
        %4362 = vmatpush1.msra.mxu0 0.0
        %4363 = vmatprep.subr.mxu0 0.0
        %4364 = vmatpush1.msra.mxu0 0.0
        %4365 = vmatprep.subr.mxu0 0.0
        %4366 = vmatpush1.msra.mxu0 0.0
        %4367 = vmatprep.subr.mxu0 0.0
        %4368 = vmatpush1.msra.mxu0 0.0
        %4369 = vmatprep.subr.mxu0 0.0
        %4370 = vmatpush1.msra.mxu0 0.0
        %4371 = vmatprep.subr.mxu0 0.0
        %4372 = vmatpush1.msra.mxu0 0.0
        %4373 = vmatprep.subr.mxu0 0.0
        %4374 = vmatpush1.msra.mxu0 0.0
        %4375 = vmatprep.subr.mxu0 0.0
        %4376 = vmatpush1.msra.mxu0 %v743
        %4377 = vmatprep.subr.mxu0 0.0
        %4378 = vmatpush1.msra.mxu0 %v742
        %4379 = vmatprep.subr.mxu0 0.0
        %4380 = vmatpush1.msra.mxu0 %v741
        %4381 = vmatprep.subr.mxu0 0.0
        %4382 = vmatpush1.msra.mxu0 %v740
        %4383 = vmatprep.subr.mxu0 0.0
        %4384 = vmatpush2.msra.mxu0 0.0
        %4385 = vmatprep.subr.mxu0 0.0
        %4386 = vmatpush2.msra.mxu0 0.0
        %4387 = vmatprep.subr.mxu0 0.0
        %4388 = vmatpush2.msra.mxu0 0.0
        %4389 = vmatprep.subr.mxu0 0.0
        %4390 = vmatpush2.msra.mxu0 0.0
        %4391 = vmatprep.subr.mxu0 0.0
        %4392 = vmatpush2.msra.mxu0 0.0
        %4393 = vmatprep.subr.mxu0 0.0
        %4394 = vmatpush2.msra.mxu0 0.0
        %4395 = vmatprep.subr.mxu0 0.0
        %4396 = vmatpush2.msra.mxu0 0.0
        %4397 = vmatprep.subr.mxu0 0.0
        %4398 = vmatpush2.msra.mxu0 0.0
        %4399 = vmatprep.subr.mxu0 0.0
        %4400 = vmatpush2.msra.mxu0 0.0
        %4401 = vmatprep.subr.mxu0 0.0
        %4402 = vmatpush2.msra.mxu0 0.0
        %4403 = vmatprep.subr.mxu0 0.0
        %4404 = vmatpush2.msra.mxu0 0.0
        %4405 = vmatprep.subr.mxu0 0.0
        %4406 = vmatpush2.msra.mxu0 0.0
        %4407 = vmatprep.subr.mxu0 0.0
        %4408 = vmatpush2.msra.mxu0 0.0
        %4409 = vmatprep.subr.mxu0 0.0
        %4410 = vmatpush2.msra.mxu0 0.0
        %4411 = vmatprep.subr.mxu0 0.0
        %4412 = vmatpush2.msra.mxu0 0.0
        %4413 = vmatprep.subr.mxu0 0.0
        %4414 = vmatpush2.msra.mxu0 0.0
        %4415 = vmatprep.mubr.f32.mxu0 0.0
        %4416 = vmatmul.mubr.f32.gmra.mxu0 %v4256
        %v4417 = vpop.f32.mrf.mxu0
        %v4418 = vadd.f32 %v4253, %v4417
        %v4419 = vpop.f32.mrf.mxu0
        %4420 = vmatprep.mubr.f32.mxu0 0.0
        %4421 = vmatmul.mubr.f32.gmra.mxu0 %v4259
        %v4422 = vpop.f32.mrf.mxu0
        %v4423 = vadd.f32 %v4253, %v4422
        %v4424 = vpop.f32.mrf.mxu0
        %4425 = vmatprep.mubr.f32.mxu0 0.0
        %4426 = vmatmul.mubr.f32.gmra.mxu0 %v4262
        %v4427 = vpop.f32.mrf.mxu0
        %v4428 = vadd.f32 %v4253, %v4427
        %v4429 = vpop.f32.mrf.mxu0
        %4430 = vmatprep.mubr.f32.mxu0 0.0
        %4431 = vmatmul.mubr.f32.gmra.mxu0 %v4265
        %v4432 = vpop.f32.mrf.mxu0
        %v4433 = vadd.f32 %v4253, %v4432
        %v4434 = vpop.f32.mrf.mxu0
        %4435 = vmatprep.mubr.f32.mxu0 0.0
        %4436 = vmatmul.mubr.f32.gmra.mxu0 %v4268
        %v4437 = vpop.f32.mrf.mxu0
        %v4438 = vadd.f32 %v4253, %v4437
        %v4439 = vpop.f32.mrf.mxu0
        %4440 = vmatprep.mubr.f32.mxu0 0.0
        %4441 = vmatmul.mubr.f32.gmra.mxu0 %v4271
        %v4442 = vpop.f32.mrf.mxu0
        %v4443 = vadd.f32 %v4253, %v4442
        %v4444 = vpop.f32.mrf.mxu0
        %4445 = vmatprep.mubr.f32.mxu0 0.0
        %4446 = vmatmul.mubr.f32.gmra.mxu0 %v4274
        %v4447 = vpop.f32.mrf.mxu0
        %v4448 = vadd.f32 %v4253, %v4447
        %v4449 = vpop.f32.mrf.mxu0
        %4450 = vmatprep.mubr.f32.mxu0 0.0
        %4451 = vmatmul.mubr.f32.gmra.mxu0 %v4277
        %v4452 = vpop.f32.mrf.mxu0
        %v4453 = vadd.f32 %v4253, %v4452
        %v4454 = vpop.f32.mrf.mxu0
        %4455 = vmatprep.mubr.f32.mxu0 0.0
        %4456 = vmatmul.mubr.f32.gmra.mxu0 %v4280
        %v4457 = vpop.f32.mrf.mxu0
        %v4458 = vadd.f32 %v4253, %v4457
        %v4459 = vpop.f32.mrf.mxu0
        %4460 = vmatprep.mubr.f32.mxu0 0.0
        %4461 = vmatmul.mubr.f32.gmra.mxu0 %v4283
        %v4462 = vpop.f32.mrf.mxu0
        %v4463 = vadd.f32 %v4253, %v4462
        %v4464 = vpop.f32.mrf.mxu0
        %4465 = vmatprep.mubr.f32.mxu0 0.0
        %4466 = vmatmul.mubr.f32.gmra.mxu0 %v4286
        %v4467 = vpop.f32.mrf.mxu0
        %v4468 = vadd.f32 %v4253, %v4467
        %v4469 = vpop.f32.mrf.mxu0
        %4470 = vmatprep.mubr.f32.mxu0 0.0
        %4471 = vmatmul.mubr.f32.gmra.mxu0 %v4289
        %v4472 = vpop.f32.mrf.mxu0
        %v4473 = vadd.f32 %v4253, %v4472
        %v4474 = vpop.f32.mrf.mxu0
        %4475 = vmatprep.mubr.f32.mxu0 0.0
        %4476 = vmatmul.mubr.f32.gmra.mxu0 %v4292
        %v4477 = vpop.f32.mrf.mxu0
        %v4478 = vadd.f32 %v4253, %v4477
        %v4479 = vpop.f32.mrf.mxu0
        %4480 = vmatprep.mubr.f32.mxu0 0.0
        %4481 = vmatmul.mubr.f32.gmra.mxu0 %v4295
        %v4482 = vpop.f32.mrf.mxu0
        %v4483 = vadd.f32 %v4253, %v4482
        %v4484 = vpop.f32.mrf.mxu0
        %4485 = vmatprep.mubr.f32.mxu0 0.0
        %4486 = vmatmul.mubr.f32.gmra.mxu0 %v4298
        %v4487 = vpop.f32.mrf.mxu0
        %v4488 = vadd.f32 %v4253, %v4487
        %v4489 = vpop.f32.mrf.mxu0
        %4490 = vmatprep.mubr.f32.mxu0 0.0
        %4491 = vmatmul.mubr.f32.gmra.mxu0 %v4301
        %v4492 = vpop.f32.mrf.mxu0
        %v4493 = vadd.f32 %v4253, %v4492
        %v4494 = vpop.f32.mrf.mxu0
        %4495 = vmatprep.mubr.f32.mxu0 0.0
        %4496 = vmatmul.mubr.f32.gmra.mxu0 %v4304
        %v4497 = vpop.f32.mrf.mxu0
        %v4498 = vadd.f32 %v4253, %v4497
        %v4499 = vpop.f32.mrf.mxu0
        %4500 = vmatprep.mubr.f32.mxu0 0.0
        %4501 = vmatmul.mubr.f32.gmra.mxu0 %v4307
        %v4502 = vpop.f32.mrf.mxu0
        %v4503 = vadd.f32 %v4253, %v4502
        %v4504 = vpop.f32.mrf.mxu0
        %4505 = vmatprep.mubr.f32.mxu0 0.0
        %4506 = vmatmul.mubr.f32.gmra.mxu0 %v4310
        %v4507 = vpop.f32.mrf.mxu0
        %v4508 = vadd.f32 %v4253, %v4507
        %v4509 = vpop.f32.mrf.mxu0
        %4510 = vmatprep.mubr.f32.mxu0 0.0
        %4511 = vmatmul.mubr.f32.gmra.mxu0 %v4313
        %v4512 = vpop.f32.mrf.mxu0
        %v4513 = vadd.f32 %v4253, %v4512
        %v4514 = vpop.f32.mrf.mxu0
        %4515 = vmatprep.mubr.f32.mxu0 0.0
        %4516 = vmatmul.mubr.f32.gmra.mxu0 %v4316
        %v4517 = vpop.f32.mrf.mxu0
        %v4518 = vadd.f32 %v4253, %v4517
        %v4519 = vpop.f32.mrf.mxu0
        %4520 = vmatprep.mubr.f32.mxu0 0.0
        %4521 = vmatmul.mubr.f32.gmra.mxu0 %v4319
        %v4522 = vpop.f32.mrf.mxu0
        %v4523 = vadd.f32 %v4253, %v4522
        %v4524 = vpop.f32.mrf.mxu0
        %4525 = vmatprep.mubr.f32.mxu0 0.0
        %4526 = vmatmul.mubr.f32.gmra.mxu0 %v4322
        %v4527 = vpop.f32.mrf.mxu0
        %v4528 = vadd.f32 %v4253, %v4527
        %v4529 = vpop.f32.mrf.mxu0
        %4530 = vmatprep.mubr.f32.mxu0 0.0
        %4531 = vmatmul.mubr.f32.gmra.mxu0 %v4325
        %v4532 = vpop.f32.mrf.mxu0
        %v4533 = vadd.f32 %v4253, %v4532
        %v4534 = vpop.f32.mrf.mxu0
        %4535 = vmatprep.mubr.f32.mxu0 0.0
        %4536 = vmatmul.mubr.f32.gmra.mxu0 %v4328
        %v4537 = vpop.f32.mrf.mxu0
        %v4538 = vadd.f32 %v4253, %v4537
        %v4539 = vpop.f32.mrf.mxu0
        %4540 = vmatprep.mubr.f32.mxu0 0.0
        %4541 = vmatmul.mubr.f32.gmra.mxu0 %v4331
        %v4542 = vpop.f32.mrf.mxu0
        %v4543 = vadd.f32 %v4253, %v4542
        %v4544 = vpop.f32.mrf.mxu0
        %4545 = vmatprep.mubr.f32.mxu0 0.0
        %4546 = vmatmul.mubr.f32.gmra.mxu0 %v4334
        %v4547 = vpop.f32.mrf.mxu0
        %v4548 = vadd.f32 %v4253, %v4547
        %v4549 = vpop.f32.mrf.mxu0
        %4550 = vmatprep.mubr.f32.mxu0 0.0
        %4551 = vmatmul.mubr.f32.gmra.mxu0 %v4337
        %v4552 = vpop.f32.mrf.mxu0
        %v4553 = vadd.f32 %v4253, %v4552
        %v4554 = vpop.f32.mrf.mxu0
        %4555 = vmatprep.mubr.f32.mxu0 0.0
        %4556 = vmatmul.mubr.f32.gmra.mxu0 %v4340
        %v4557 = vpop.f32.mrf.mxu0
        %v4558 = vadd.f32 %v4253, %v4557
        %v4559 = vpop.f32.mrf.mxu0
        %4560 = vmatprep.mubr.f32.mxu0 0.0
        %4561 = vmatmul.mubr.f32.gmra.mxu0 %v4343
        %v4562 = vpop.f32.mrf.mxu0
        %v4563 = vadd.f32 %v4253, %v4562
        %v4564 = vpop.f32.mrf.mxu0
        %4565 = vmatprep.mubr.f32.mxu0 0.0
        %4566 = vmatmul.mubr.f32.gmra.mxu0 %v4346
        %v4567 = vpop.f32.mrf.mxu0
        %v4568 = vadd.f32 %v4253, %v4567
        %v4569 = vpop.f32.mrf.mxu0
        %4570 = vmatprep.mubr.f32.mxu0 0.0
        %4571 = vmatmul.mubr.f32.gmra.mxu0 %v4349
        %v4572 = vpop.f32.mrf.mxu0
        %v4573 = vadd.f32 %v4253, %v4572
        %v4574 = vpop.f32.mrf.mxu0
        %4575 = vdwg.mxu0
        %v4576 = vadd.f32 %v4418, %v358
        %v4577 = vadd.f32 %v4423, %v359
        %v4578 = vadd.f32 %v4428, %v360
        %v4579 = vadd.f32 %v4433, %v361
        %v4580 = vadd.f32 %v4438, %v362
        %v4581 = vadd.f32 %v4443, %v363
        %v4582 = vadd.f32 %v4448, %v364
        %v4583 = vadd.f32 %v4453, %v365
        %v4584 = vadd.f32 %v4458, %v366
        %v4585 = vadd.f32 %v4463, %v367
        %v4586 = vadd.f32 %v4468, %v368
        %v4587 = vadd.f32 %v4473, %v369
        %v4588 = vadd.f32 %v4478, %v370
        %v4589 = vadd.f32 %v4483, %v371
        %v4590 = vadd.f32 %v4488, %v372
        %v4591 = vadd.f32 %v4493, %v373
        %v4592 = vadd.f32 %v4498, %v374
        %v4593 = vadd.f32 %v4503, %v375
        %v4594 = vadd.f32 %v4508, %v376
        %v4595 = vadd.f32 %v4513, %v377
        %v4596 = vadd.f32 %v4518, %v378
        %v4597 = vadd.f32 %v4523, %v379
        %v4598 = vadd.f32 %v4528, %v380
        %v4599 = vadd.f32 %v4533, %v381
        %v4600 = vadd.f32 %v4538, %v382
        %v4601 = vadd.f32 %v4543, %v383
        %v4602 = vadd.f32 %v4548, %v384
        %v4603 = vadd.f32 %v4553, %v385
        %v4604 = vadd.f32 %v4558, %v386
        %v4605 = vadd.f32 %v4563, %v387
        %v4606 = vadd.f32 %v4568, %v388
        %v4607 = vadd.f32 %v4573, %v389
        %v4608 = vmax.f32 %v4576, 0.0
        %v4609 = vmax.f32 %v4577, 0.0
        %v4610 = vmax.f32 %v4578, 0.0
        %v4611 = vmax.f32 %v4579, 0.0
        %v4612 = vmax.f32 %v4580, 0.0
        %v4613 = vmax.f32 %v4581, 0.0
        %v4614 = vmax.f32 %v4582, 0.0
        %v4615 = vmax.f32 %v4583, 0.0
        %v4616 = vmax.f32 %v4584, 0.0
        %v4617 = vmax.f32 %v4585, 0.0
        %v4618 = vmax.f32 %v4586, 0.0
        %v4619 = vmax.f32 %v4587, 0.0
        %v4620 = vmax.f32 %v4588, 0.0
        %v4621 = vmax.f32 %v4589, 0.0
        %v4622 = vmax.f32 %v4590, 0.0
        %v4623 = vmax.f32 %v4591, 0.0
        %v4624 = vmax.f32 %v4592, 0.0
        %v4625 = vmax.f32 %v4593, 0.0
        %v4626 = vmax.f32 %v4594, 0.0
        %v4627 = vmax.f32 %v4595, 0.0
        %v4628 = vmax.f32 %v4596, 0.0
        %v4629 = vmax.f32 %v4597, 0.0
        %v4630 = vmax.f32 %v4598, 0.0
        %v4631 = vmax.f32 %v4599, 0.0
        %v4632 = vmax.f32 %v4600, 0.0
        %v4633 = vmax.f32 %v4601, 0.0
        %v4634 = vmax.f32 %v4602, 0.0
        %v4635 = vmax.f32 %v4603, 0.0
        %v4636 = vmax.f32 %v4604, 0.0
        %v4637 = vmax.f32 %v4605, 0.0
        %v4638 = vmax.f32 %v4606, 0.0
        %v4639 = vmax.f32 %v4607, 0.0
        %4640 = vst [vmem:[%s311] sm:$0xff] %v4608
        %4641 = vst [vmem:[%s311 + $0x8] sm:$0xff] %v4609
        %4642 = vst [vmem:[%s311 + $0x10] sm:$0xff] %v4610
        %4643 = vst [vmem:[%s311 + $0x18] sm:$0xff] %v4611
        %4644 = vst [vmem:[%s311 + $0x20] sm:$0xff] %v4612
        %4645 = vst [vmem:[%s311 + $0x28] sm:$0xff] %v4613
        %4646 = vst [vmem:[%s311 + $0x30] sm:$0xff] %v4614
        %4647 = vst [vmem:[%s311 + $0x38] sm:$0xff] %v4615
        %4648 = vst [vmem:[%s311 + $0x40] sm:$0xff] %v4616
        %4649 = vst [vmem:[%s311 + $0x48] sm:$0xff] %v4617
        %4650 = vst [vmem:[%s311 + $0x50] sm:$0xff] %v4618
        %4651 = vst [vmem:[%s311 + $0x58] sm:$0xff] %v4619
        %4652 = vst [vmem:[%s311 + $0x60] sm:$0xff] %v4620
        %4653 = vst [vmem:[%s311 + $0x68] sm:$0xff] %v4621
        %4654 = vst [vmem:[%s311 + $0x70] sm:$0xff] %v4622
        %4655 = vst [vmem:[%s311 + $0x78] sm:$0xff] %v4623
        %4656 = vst [vmem:[%s311 + $0x80] sm:$0xff] %v4624
        %4657 = vst [vmem:[%s311 + $0x88] sm:$0xff] %v4625
        %4658 = vst [vmem:[%s311 + $0x90] sm:$0xff] %v4626
        %4659 = vst [vmem:[%s311 + $0x98] sm:$0xff] %v4627
        %4660 = vst [vmem:[%s311 + $0xa0] sm:$0xff] %v4628
        %4661 = vst [vmem:[%s311 + $0xa8] sm:$0xff] %v4629
        %4662 = vst [vmem:[%s311 + $0xb0] sm:$0xff] %v4630
        %4663 = vst [vmem:[%s311 + $0xb8] sm:$0xff] %v4631
        %4664 = vst [vmem:[%s311 + $0xc0] sm:$0xff] %v4632
        %4665 = vst [vmem:[%s311 + $0xc8] sm:$0xff] %v4633
        %4666 = vst [vmem:[%s311 + $0xd0] sm:$0xff] %v4634
        %4667 = vst [vmem:[%s311 + $0xd8] sm:$0xff] %v4635
        %4668 = vst [vmem:[%s311 + $0xe0] sm:$0xff] %v4636
        %4669 = vst [vmem:[%s311 + $0xe8] sm:$0xff] %v4637
        %4670 = vst [vmem:[%s311 + $0xf0] sm:$0xff] %v4638
        %4671 = vst [vmem:[%s311 + $0xf8] sm:$0xff] %v4639
        %s4672 = sand.u32 %s185, 1
        %s4673 = scalar_lea.sflag [#allocation5], %s4672
        %s4674 = sand.u32 %s185, 1
        %s4675 = smul.addr %s4674, 256
        %s4676 = scalar_lea.vmem [#allocation8], %s4675
        // Predicated region
        $region57: #{tpu_custom_call.1} parent=47 // pred_check
          %p4677 = pneg %p195
        $region58: #{tpu_custom_call.1} parent=47 // pred_check_branch
          %4679 = sbr.rel (%p4677) target = $region60
        $region59: #{tpu_custom_call.1} parent=47 // pred_region
          %s4681 = ssub.s32 4096, 4096
          %4682 = vsyncadd %s4673, %s4681
          %s4683 = smul.addr %s25, 32
          %s4684 = smul.addr %s4683, 128
          %s4685 = scalar_lea.hbm %s7, %s4684
          %s4686 = sshll.u32 %s4676, 4
          %s4687 = int_to_ptr.vmem [resolvable:$true] %s4686
          %4692 = dma.vmem_to_hbm [thread:$0]  %s4687, 4096, %s4685, %s4673, 128, 128, 8
        $region60: #{tpu_custom_call.1} parent=47 // pred_fallthru
          _
      $region48: #{tpu_custom_call.1} parent=5 // pred_fallthru
        _
      %p4693 = scmp.le.s32.totalorder 2, %s20
      // Predicated region
      $region61: #{tpu_custom_call.1} parent=5 // pred_check
        %p4694 = pneg %p4693
      $region62: #{tpu_custom_call.1} parent=5 // pred_check_branch
        %4696 = sbr.rel (%p4694) target = $region64
      $region63: #{tpu_custom_call.1} parent=5 // pred_region
        %s4697 = ssub.s32 %s20, 2
        // Predicated region
        $region65: #{tpu_custom_call.1} parent=63 // pred_check
          %p4698 = pneg %p201
        $region66: #{tpu_custom_call.1} parent=63 // pred_check_branch
          %4700 = sbr.rel (%p4698) target = $region68
        $region67: #{tpu_custom_call.1} parent=63 // pred_region
          %s4701 = sand.u32 %s186, 1
          %s4702 = scalar_lea.sflag [#allocation5], %s4701
          %s4703 = sand.u32 %s186, 1
          %s4704 = smul.addr %s4703, 256
          %s4705 = scalar_lea.vmem [#allocation8], %s4704
          %4706 = dma.done %s4702, 4096
        $region68: #{tpu_custom_call.1} parent=63 // pred_fallthru
          _
      $region64: #{tpu_custom_call.1} parent=5 // pred_fallthru
        _
    $region6: #{tpu_custom_call.1} parent=1 // loop_footer
      %s24 = sadd.s32 1, %s20
    $region7: #{tpu_custom_call.1} parent=1 // loop_footer_branch
      %19 = sbr.rel target = $region3
    $region8: #{tpu_custom_call.1} parent=1 // loop_exit
      _
    %4707 = vsyncpa [#allocation4], 1
    %s4708 = scalar_lea.sflag [#allocation4], 1
    %4709 = vsyncpa %s4708, 1
    %4710 = vsyncpa [#allocation7], 1
    %4711 = vsyncpa [#allocation5], 1
    %s4712 = scalar_lea.sflag [#allocation5], 1
    %4713 = vsyncpa %s4712, 1

</llo_original>
